<compile_context>
chip_gen: v6e
topology: v6e:2x2x1
jax: 0.10.0
libtpu: 0.0.40
codegen_flags: <defaults>
</compile_context>

<pallas_src>
import jax
import jax.numpy as jnp
from jax.experimental import pallas as pl
from jax.experimental.pallas import tpu as pltpu

# Problem sizes (DualAttentionLayer defaults: num_feature=32, kernel_size=3, reduction=8).
N, C, H, W = 2, 32, 16, 16
RED = 8
CR = C // RED              # hidden channels in channel attention
HW = H * W                 # 256 -> lane axis (multiple of 128: lane-dense)

TAP_OFFSETS = [(dy, dx) for dy in (-1, 0, 1) for dx in (-1, 0, 1)]
CENTER_TAP = 4             # (0, 0)


# ------------------------- host-side precomputed constants -------------------------

def _make_masks(nb):
    """(9, nb*HW) f32 multiplicative edge masks over the image-major flattened lane axis.

    Position p belongs to image p//HW at pixel (y, x) = divmod(p % HW, W).  Tap (dy,dx)
    is valid iff the source pixel stays inside that image, which also kills every
    cross-image / wrap-around position introduced by pltpu.roll on the folded axis."""
    p = jnp.arange(nb * HW)
    q = p % HW
    yy, xx = q // W, q % W
    rows = []
    for dy, dx in TAP_OFFSETS:
        ok = (yy + dy >= 0) & (yy + dy < H) & (xx + dx >= 0) & (xx + dx < W)
        rows.append(ok.astype(jnp.float32))
    return jnp.stack(rows, axis=0)


def _make_imgsel(nb):
    """(nb, nb*HW) f32 0/1 lane selectors: row n marks the lanes of image n."""
    img = jnp.arange(nb * HW) // HW
    return (img[None, :] == jnp.arange(nb)[:, None]).astype(jnp.float32)


# ------------------------------------- kernel --------------------------------------

def dual_attention_kernel(x_ref, masks_ref, sel_ref,
                          w1_ref, b1_ref, w2_ref, b2_ref,
                          wsp_ref, bsp_ref,
                          wc1t_ref, bc1_ref, wc2_ref, bc2_ref,
                          wsp11_ref, wch11_ref, b11_ref,
                          o_ref, col_ref):
    Lb = x_ref.shape[-1]                 # nb * HW (static)
    nb = sel_ref.shape[0]
    masks = masks_ref[...]               # (9, Lb) f32, loaded once

    def tap_shift(a, t):
        """a[:, p] -> a[:, p + shift_t], zero outside the image (f32 roll + f32 mask)."""
        dy, dx = TAP_OFFSETS[t]
        shift = dy * W + dx
        if shift != 0:
            a = pltpu.roll(a, (-shift) % Lb, 1)      # XLU lane rotate
        if t != CENTER_TAP:
            a = a * masks[t:t + 1, :]                # multiplicative mask, f32 (v5e-safe)
        return a

    def conv3x3(feat, w_ref, b):
        """3x3 'same' conv: im2col into persistent scratch, one K=9C MXU matmul."""
        for t in range(9):
            col_ref[pl.ds(t * C, C), :] = tap_shift(feat, t).astype(jnp.bfloat16)
        return jnp.dot(w_ref[...], col_ref[...],
                       preferred_element_type=jnp.float32) + b

    # ---- conv_pre: conv3x3 -> ReLU -> conv3x3 ----
    x = x_ref[...]                                                  # (C, Lb) f32
    t1 = jnp.maximum(conv3x3(x, w1_ref, b1_ref[...]), 0.0)
    res = conv3x3(t1, w2_ref, b2_ref[...])
    res_bf = res.astype(jnp.bfloat16)

    # Spatial-branch matmul of the final 1x1 issues now (independent of both gates).
    sp_mm = jnp.dot(wsp11_ref[...], res_bf, preferred_element_type=jnp.float32)

    # ---- spatial attention gate: [channel-max ; channel-mean] -> 3x3 conv(2->1) -> sigmoid
    pooled = jnp.concatenate(
        [jnp.max(res, axis=0, keepdims=True),
         jnp.mean(res, axis=0, keepdims=True)], axis=0)             # (2, Lb)
    d = jnp.full((1, Lb), bsp_ref[0], jnp.float32)
    for t in range(9):                       # 9 rolls/masks total (stacked max+mean)
        tp = tap_shift(pooled, t)
        # torch ChannelPool = cat([max, mean]); conv weight ch0 -> max, ch1 -> mean.
        d = d + wsp_ref[t] * tp[0:1, :] + wsp_ref[9 + t] * tp[1:2, :]
    sgate = jax.nn.sigmoid(d)                                       # (1, Lb)

    # ---- channel attention (per image!): avg pool -> 1x1 -> ReLU -> 1x1 -> sigmoid ----
    # Tiny matmuls replaced by VPU multiply + reduce; 1/HW is folded into wc1t on host.
    wc1t = wc1t_ref[...]; bc1 = bc1_ref[...]
    wc2 = wc2_ref[...];  bc2 = bc2_ref[...]
    if nb == 1:
        ysum = jnp.sum(res, axis=1, keepdims=True)                              # (C, 1)
        h = jnp.maximum(jnp.sum(wc1t * ysum, axis=0, keepdims=True) + bc1, 0.0)  # (1, CR)
        att_full = jax.nn.sigmoid(jnp.sum(wc2 * h, axis=1, keepdims=True) + bc2)  # (C, 1)
    else:
        sel = sel_ref[...]                                          # (nb, Lb) 0/1
        att_full = jnp.zeros((C, Lb), jnp.float32)
        for n in range(nb):                                         # tiny per-image work
            sel_n = sel[n:n + 1, :]
            ysum = jnp.sum(res * sel_n, axis=1, keepdims=True)                  # (C, 1)
            h = jnp.maximum(jnp.sum(wc1t * ysum, axis=0, keepdims=True) + bc1, 0.0)
            att = jax.nn.sigmoid(jnp.sum(wc2 * h, axis=1, keepdims=True) + bc2)  # (C, 1)
            att_full = att_full + att * sel_n                       # piecewise-constant gate

    # ---- final 1x1 (split, concat removed) + residual ----
    ch_mm = jnp.dot(wch11_ref[...], (res * att_full).astype(jnp.bfloat16),
                    preferred_element_type=jnp.float32)
    o_ref[...] = sp_mm * sgate + ch_mm + b11_ref[...] + x


# ------------------------------------ wrapper ---------------------------------------

def _fold_batch_default():
    """v7x (two TensorCores): keep one image per grid step so the 'parallel' grid axis
    splits across cores.  Single-TC chips (v5e/v6e): fold the batch into the lane axis."""
    try:
        kind = jax.devices()[0].device_kind.lower()
    except Exception:
        kind = ""
    return "v7" not in kind


def dual_attention(x_nchw, params, fold_batch=None):
    n, c, h, w = x_nchw.shape
    assert (c, h, w) == (C, H, W)
    if fold_batch is None:
        fold_batch = _fold_batch_default()
    nb = n if fold_batch else 1
    Lb = nb * HW

    (w1, b1, w2, b2, wsp, bsp, wc1t, bc1, wc2, bc2, wsp11, wch11, b11) = params

    # NCHW -> (C, N*HW): channels on sublanes, image-major flattened spatial on lanes.
    x2 = jnp.transpose(x_nchw.reshape(n, C, HW), (1, 0, 2)).reshape(C, n * HW)
    masks = _make_masks(nb)
    sel = _make_imgsel(nb)

    def full(shape):
        return pl.BlockSpec(shape, lambda i, _s=shape: (0,) * len(_s))

    smem = pl.BlockSpec(memory_space=pltpu.MemorySpace.SMEM)

    # ~21 MFLOP, <1 MiB traffic: advisory estimate for XLA scheduling around the call.
    flops = 2 * 2 * C * (9 * C) * (n * HW) + 2 * 2 * C * C * (n * HW)
    cost = pl.CostEstimate(
        flops=flops,
        transcendentals=n * HW + n * C,
        bytes_accessed=2 * (C * n * HW * 4) + 4 * (C * 9 * C) + 4 * (C * C))

    out = pl.pallas_call(
        dual_attention_kernel,
        out_shape=jax.ShapeDtypeStruct((C, n * HW), jnp.float32),
        grid_spec=pltpu.PrefetchScalarGridSpec(
            num_scalar_prefetch=0,
            grid=(n // nb,),
            in_specs=[
                pl.BlockSpec((C, Lb), lambda i: (0, i)),      # x (lane-block per step)
                full((9, Lb)),                                # multiplicative edge masks
                full((nb, Lb)),                               # per-image lane selectors
                full((C, 9 * C)), full((C, 1)),               # conv_pre[0] (bf16 w, f32 b)
                full((C, 9 * C)), full((C, 1)),               # conv_pre[2]
                smem, smem,                                   # spatial conv w(18,), b(1,)
                full((C, CR)), full((1, CR)),                 # channel att #1 (w^T / HW)
                full((C, CR)), full((C, 1)),                  # channel att #2
                full((C, C)), full((C, C)), full((C, 1)),     # final 1x1 split [W_sp | W_ch]
            ],
            out_specs=pl.BlockSpec((C, Lb), lambda i: (0, i)),
            scratch_shapes=[pltpu.VMEM((9 * C, Lb), jnp.bfloat16)],   # persistent im2col
        ),
        compiler_params=pltpu.CompilerParams(
            dimension_semantics=("parallel",)),
        cost_estimate=cost,
    )(x2, masks, sel, w1, b1, w2, b2, wsp, bsp, wc1t, bc1, wc2, bc2,
      wsp11, wch11, b11)

    return jnp.transpose(out.reshape(C, n, HW), (1, 0, 2)).reshape(n, C, H, W)


# ---------------- parameter construction (torch layouts -> kernel layouts) ----------------

def init_params_torch_layout(key):
    """Random params in the same layouts PyTorch uses."""
    ks = jax.random.split(key, 12)

    def rnd(k, shape, scale=0.05):
        return jax.random.normal(k, shape, jnp.float32) * scale

    return dict(
        w1=rnd(ks[0], (C, C, 3, 3)),        b1=rnd(ks[1], (C,)),        # Conv2d(C,C,3,p=1)
        w2=rnd(ks[2], (C, C, 3, 3)),        b2=rnd(ks[3], (C,)),        # Conv2d(C,C,3,p=1)
        wsp=rnd(ks[4], (1, 2, 3, 3), 0.1),  bsp=rnd(ks[5], (1,), 0.1),  # Conv2d(2,1,3,p=1)
        wc1=rnd(ks[6], (CR, C, 1, 1), 0.1), bc1=rnd(ks[7], (CR,), 0.1), # Conv2d(C,C//r,1)
        wc2=rnd(ks[8], (C, CR, 1, 1), 0.1), bc2=rnd(ks[9], (C,), 0.1),  # Conv2d(C//r,C,1)
        w11=rnd(ks[10], (C, 2 * C, 1, 1)),  b11=rnd(ks[11], (C,)),      # Conv2d(2C,C,1)
    )


def prepare_params(p):
    """Torch layout -> kernel layout.

    3x3 conv:  (Cout,Cin,kh,kw) -> (Cout,kh,kw,Cin) -> (Cout, 9*Cin) tap-major, bf16.
    spatial:   (1,2,3,3).flatten() == [9 max-channel taps, then 9 mean taps] (SMEM scalars).
    channel:   wc1 transposed to (C, CR) with 1/HW folded in (kernel uses sums, not means).
    final 1x1: split into spatial half (:,:C) and channel half (:,C:), bf16; biases (Cout,1).
    """
    def conv3x3_w(w):
        return jnp.transpose(w, (0, 2, 3, 1)).reshape(C, 9 * C).astype(jnp.bfloat16)

    w11 = p["w11"].reshape(C, 2 * C)
    return (
        conv3x3_w(p["w1"]), p["b1"].reshape(C, 1),
        conv3x3_w(p["w2"]), p["b2"].reshape(C, 1),
        p["wsp"].reshape(18), p["bsp"].reshape(1),
        (p["wc1"].reshape(CR, C).T / HW).astype(jnp.float32), p["bc1"].reshape(1, CR),
        p["wc2"].reshape(C, CR), p["bc2"].reshape(C, 1),
        w11[:, :C].astype(jnp.bfloat16), w11[:, C:].astype(jnp.bfloat16),
        p["b11"].reshape(C, 1),
    )


if __name__ == "__main__":
    key = jax.random.PRNGKey(0)
    kx, kp = jax.random.split(key)
    x = jax.random.normal(kx, (N, C, H, W), jnp.float32)   # NCHW, as in the PyTorch module
    params = prepare_params(init_params_torch_layout(kp))

    out = jax.block_until_ready(dual_attention(x, params))
    assert out.shape == (N, C, H, W) and bool(jnp.all(jnp.isfinite(out)))
    print("KERNEL_OK")
</pallas_src>

<mosaic_0001>
module attributes {stable_mosaic.version = 11 : i64} {
  func.func @dual_attention_kernel(%arg0: i32, %arg1: memref<32x512xf32, #tpu.memory_space<vmem>>, %arg2: memref<9x512xf32, #tpu.memory_space<vmem>>, %arg3: memref<2x512xf32, #tpu.memory_space<vmem>>, %arg4: memref<32x288xbf16, #tpu.memory_space<vmem>>, %arg5: memref<32x1xf32, #tpu.memory_space<vmem>>, %arg6: memref<32x288xbf16, #tpu.memory_space<vmem>>, %arg7: memref<32x1xf32, #tpu.memory_space<vmem>>, %arg8: memref<18xf32, #tpu.memory_space<smem>>, %arg9: memref<1xf32, #tpu.memory_space<smem>>, %arg10: memref<32x4xf32, #tpu.memory_space<vmem>>, %arg11: memref<1x4xf32, #tpu.memory_space<vmem>>, %arg12: memref<32x4xf32, #tpu.memory_space<vmem>>, %arg13: memref<32x1xf32, #tpu.memory_space<vmem>>, %arg14: memref<32x32xbf16, #tpu.memory_space<vmem>>, %arg15: memref<32x32xbf16, #tpu.memory_space<vmem>>, %arg16: memref<32x1xf32, #tpu.memory_space<vmem>>, %arg17: memref<32x512xf32, #tpu.memory_space<vmem>>, %arg18: memref<288x512xbf16, #tpu.memory_space<vmem>>) attributes {dimension_semantics = [#tpu.dimension_semantics<parallel>], iteration_bounds = array<i64: 1>, scalar_prefetch = 0 : i64, scratch_operands = 1 : i64, tpu.core_type = #tpu.core_type<tc>, window_params = [{transform_indices = @transform_0, window_bounds = array<i64: 32, 512>}, {pipeline_mode = #tpu.pipeline_mode<synchronous>, transform_indices = @transform_1, window_bounds = array<i64: 9, 512>}, {pipeline_mode = #tpu.pipeline_mode<synchronous>, transform_indices = @transform_2, window_bounds = array<i64: 2, 512>}, {pipeline_mode = #tpu.pipeline_mode<synchronous>, transform_indices = @transform_3, window_bounds = array<i64: 32, 288>}, {pipeline_mode = #tpu.pipeline_mode<synchronous>, transform_indices = @transform_4, window_bounds = array<i64: 32, 1>}, {pipeline_mode = #tpu.pipeline_mode<synchronous>, transform_indices = @transform_5, window_bounds = array<i64: 32, 288>}, {pipeline_mode = #tpu.pipeline_mode<synchronous>, transform_indices = @transform_6, window_bounds = array<i64: 32, 1>}, {transform_indices = @transform_7, window_bounds = array<i64: 18>}, {transform_indices = @transform_8, window_bounds = array<i64: 1>}, {pipeline_mode = #tpu.pipeline_mode<synchronous>, transform_indices = @transform_9, window_bounds = array<i64: 32, 4>}, {pipeline_mode = #tpu.pipeline_mode<synchronous>, transform_indices = @transform_10, window_bounds = array<i64: 1, 4>}, {pipeline_mode = #tpu.pipeline_mode<synchronous>, transform_indices = @transform_11, window_bounds = array<i64: 32, 4>}, {pipeline_mode = #tpu.pipeline_mode<synchronous>, transform_indices = @transform_12, window_bounds = array<i64: 32, 1>}, {pipeline_mode = #tpu.pipeline_mode<synchronous>, transform_indices = @transform_13, window_bounds = array<i64: 32, 32>}, {pipeline_mode = #tpu.pipeline_mode<synchronous>, transform_indices = @transform_14, window_bounds = array<i64: 32, 32>}, {pipeline_mode = #tpu.pipeline_mode<synchronous>, transform_indices = @transform_15, window_bounds = array<i64: 32, 1>}, {transform_indices = @transform_16, window_bounds = array<i64: 32, 512>}]} {
    %c0 = arith.constant 0 : index
    %c0_0 = arith.constant 0 : index
    %0 = vector.load %arg2[%c0, %c0_0] : memref<9x512xf32, #tpu.memory_space<vmem>>, vector<9x512xf32>
    %c0_1 = arith.constant 0 : index
    %c0_2 = arith.constant 0 : index
    %1 = vector.load %arg1[%c0_1, %c0_2] : memref<32x512xf32, #tpu.memory_space<vmem>>, vector<32x512xf32>
    %c0_3 = arith.constant 0 : index
    %c0_4 = arith.constant 0 : index
    %2 = vector.load %arg5[%c0_3, %c0_4] : memref<32x1xf32, #tpu.memory_space<vmem>>, vector<32x1xf32>
    %c17_i32 = arith.constant 17 : i32
    %3 = tpu.dynamic_rotate %1 by %c17_i32 dim 1 : vector<32x512xf32>, i32 -> vector<32x512xf32>
    %4 = vector.extract_strided_slice %0 {offsets = [0, 0], sizes = [1, 512], strides = [1, 1]} : vector<9x512xf32> to vector<1x512xf32>
    %5 = vector.broadcast %4 : vector<1x512xf32> to vector<32x512xf32>
    %6 = arith.mulf %3, %5 : vector<32x512xf32>
    %7 = arith.truncf %6 : vector<32x512xf32> to vector<32x512xbf16>
    %c0_5 = arith.constant 0 : index
    %c0_6 = arith.constant 0 : index
    %8 = vector.load %arg18[%c0_5, %c0_6] : memref<288x512xbf16, #tpu.memory_space<vmem>>, vector<32x512xbf16>
    tpu.vector_store %arg18[%c0_5, %c0_6], %7 {strides = array<i32>} : memref<288x512xbf16, #tpu.memory_space<vmem>>, vector<32x512xbf16>,
    %c16_i32 = arith.constant 16 : i32
    %9 = tpu.dynamic_rotate %1 by %c16_i32 dim 1 : vector<32x512xf32>, i32 -> vector<32x512xf32>
    %10 = vector.extract_strided_slice %0 {offsets = [1, 0], sizes = [1, 512], strides = [1, 1]} : vector<9x512xf32> to vector<1x512xf32>
    %11 = vector.broadcast %10 : vector<1x512xf32> to vector<32x512xf32>
    %12 = arith.mulf %9, %11 : vector<32x512xf32>
    %13 = arith.truncf %12 : vector<32x512xf32> to vector<32x512xbf16>
    %c32 = arith.constant 32 : index
    %c0_7 = arith.constant 0 : index
    %14 = vector.load %arg18[%c32, %c0_7] : memref<288x512xbf16, #tpu.memory_space<vmem>>, vector<32x512xbf16>
    tpu.vector_store %arg18[%c32, %c0_7], %13 {strides = array<i32>} : memref<288x512xbf16, #tpu.memory_space<vmem>>, vector<32x512xbf16>,
    %c15_i32 = arith.constant 15 : i32
    %15 = tpu.dynamic_rotate %1 by %c15_i32 dim 1 : vector<32x512xf32>, i32 -> vector<32x512xf32>
    %16 = vector.extract_strided_slice %0 {offsets = [2, 0], sizes = [1, 512], strides = [1, 1]} : vector<9x512xf32> to vector<1x512xf32>
    %17 = vector.broadcast %16 : vector<1x512xf32> to vector<32x512xf32>
    %18 = arith.mulf %15, %17 : vector<32x512xf32>
    %19 = arith.truncf %18 : vector<32x512xf32> to vector<32x512xbf16>
    %c64 = arith.constant 64 : index
    %c0_8 = arith.constant 0 : index
    %20 = vector.load %arg18[%c64, %c0_8] : memref<288x512xbf16, #tpu.memory_space<vmem>>, vector<32x512xbf16>
    tpu.vector_store %arg18[%c64, %c0_8], %19 {strides = array<i32>} : memref<288x512xbf16, #tpu.memory_space<vmem>>, vector<32x512xbf16>,
    %c1_i32 = arith.constant 1 : i32
    %21 = tpu.dynamic_rotate %1 by %c1_i32 dim 1 : vector<32x512xf32>, i32 -> vector<32x512xf32>
    %22 = vector.extract_strided_slice %0 {offsets = [3, 0], sizes = [1, 512], strides = [1, 1]} : vector<9x512xf32> to vector<1x512xf32>
    %23 = vector.broadcast %22 : vector<1x512xf32> to vector<32x512xf32>
    %24 = arith.mulf %21, %23 : vector<32x512xf32>
    %25 = arith.truncf %24 : vector<32x512xf32> to vector<32x512xbf16>
    %c96 = arith.constant 96 : index
    %c0_9 = arith.constant 0 : index
    %26 = vector.load %arg18[%c96, %c0_9] : memref<288x512xbf16, #tpu.memory_space<vmem>>, vector<32x512xbf16>
    tpu.vector_store %arg18[%c96, %c0_9], %25 {strides = array<i32>} : memref<288x512xbf16, #tpu.memory_space<vmem>>, vector<32x512xbf16>,
    %27 = arith.truncf %1 : vector<32x512xf32> to vector<32x512xbf16>
    %c128 = arith.constant 128 : index
    %c0_10 = arith.constant 0 : index
    %28 = vector.load %arg18[%c128, %c0_10] : memref<288x512xbf16, #tpu.memory_space<vmem>>, vector<32x512xbf16>
    tpu.vector_store %arg18[%c128, %c0_10], %27 {strides = array<i32>} : memref<288x512xbf16, #tpu.memory_space<vmem>>, vector<32x512xbf16>,
    %c511_i32 = arith.constant 511 : i32
    %29 = tpu.dynamic_rotate %1 by %c511_i32 dim 1 : vector<32x512xf32>, i32 -> vector<32x512xf32>
    %30 = vector.extract_strided_slice %0 {offsets = [5, 0], sizes = [1, 512], strides = [1, 1]} : vector<9x512xf32> to vector<1x512xf32>
    %31 = vector.broadcast %30 : vector<1x512xf32> to vector<32x512xf32>
    %32 = arith.mulf %29, %31 : vector<32x512xf32>
    %33 = arith.truncf %32 : vector<32x512xf32> to vector<32x512xbf16>
    %c160 = arith.constant 160 : index
    %c0_11 = arith.constant 0 : index
    %34 = vector.load %arg18[%c160, %c0_11] : memref<288x512xbf16, #tpu.memory_space<vmem>>, vector<32x512xbf16>
    tpu.vector_store %arg18[%c160, %c0_11], %33 {strides = array<i32>} : memref<288x512xbf16, #tpu.memory_space<vmem>>, vector<32x512xbf16>,
    %c497_i32 = arith.constant 497 : i32
    %35 = tpu.dynamic_rotate %1 by %c497_i32 dim 1 : vector<32x512xf32>, i32 -> vector<32x512xf32>
    %36 = vector.extract_strided_slice %0 {offsets = [6, 0], sizes = [1, 512], strides = [1, 1]} : vector<9x512xf32> to vector<1x512xf32>
    %37 = vector.broadcast %36 : vector<1x512xf32> to vector<32x512xf32>
    %38 = arith.mulf %35, %37 : vector<32x512xf32>
    %39 = arith.truncf %38 : vector<32x512xf32> to vector<32x512xbf16>
    %c192 = arith.constant 192 : index
    %c0_12 = arith.constant 0 : index
    %40 = vector.load %arg18[%c192, %c0_12] : memref<288x512xbf16, #tpu.memory_space<vmem>>, vector<32x512xbf16>
    tpu.vector_store %arg18[%c192, %c0_12], %39 {strides = array<i32>} : memref<288x512xbf16, #tpu.memory_space<vmem>>, vector<32x512xbf16>,
    %c496_i32 = arith.constant 496 : i32
    %41 = tpu.dynamic_rotate %1 by %c496_i32 dim 1 : vector<32x512xf32>, i32 -> vector<32x512xf32>
    %42 = vector.extract_strided_slice %0 {offsets = [7, 0], sizes = [1, 512], strides = [1, 1]} : vector<9x512xf32> to vector<1x512xf32>
    %43 = vector.broadcast %42 : vector<1x512xf32> to vector<32x512xf32>
    %44 = arith.mulf %41, %43 : vector<32x512xf32>
    %45 = arith.truncf %44 : vector<32x512xf32> to vector<32x512xbf16>
    %c224 = arith.constant 224 : index
    %c0_13 = arith.constant 0 : index
    %46 = vector.load %arg18[%c224, %c0_13] : memref<288x512xbf16, #tpu.memory_space<vmem>>, vector<32x512xbf16>
    tpu.vector_store %arg18[%c224, %c0_13], %45 {strides = array<i32>} : memref<288x512xbf16, #tpu.memory_space<vmem>>, vector<32x512xbf16>,
    %c495_i32 = arith.constant 495 : i32
    %47 = tpu.dynamic_rotate %1 by %c495_i32 dim 1 : vector<32x512xf32>, i32 -> vector<32x512xf32>
    %48 = vector.extract_strided_slice %0 {offsets = [8, 0], sizes = [1, 512], strides = [1, 1]} : vector<9x512xf32> to vector<1x512xf32>
    %49 = vector.broadcast %48 : vector<1x512xf32> to vector<32x512xf32>
    %50 = arith.mulf %47, %49 : vector<32x512xf32>
    %51 = arith.truncf %50 : vector<32x512xf32> to vector<32x512xbf16>
    %c256 = arith.constant 256 : index
    %c0_14 = arith.constant 0 : index
    %52 = vector.load %arg18[%c256, %c0_14] : memref<288x512xbf16, #tpu.memory_space<vmem>>, vector<32x512xbf16>
    tpu.vector_store %arg18[%c256, %c0_14], %51 {strides = array<i32>} : memref<288x512xbf16, #tpu.memory_space<vmem>>, vector<32x512xbf16>,
    %c0_15 = arith.constant 0 : index
    %c0_16 = arith.constant 0 : index
    %53 = vector.load %arg4[%c0_15, %c0_16] : memref<32x288xbf16, #tpu.memory_space<vmem>>, vector<32x288xbf16>
    %c0_17 = arith.constant 0 : index
    %c0_18 = arith.constant 0 : index
    %54 = vector.load %arg18[%c0_17, %c0_18] : memref<288x512xbf16, #tpu.memory_space<vmem>>, vector<288x512xbf16>
    %cst = arith.constant dense<0.000000e+00> : vector<32x512xf32>
    %55 = tpu.matmul %53, %54, %cst {dimension_numbers = #tpu.dot_dimension_numbers<[1], [0], [0], [1], [0, 0, 1, 1], [], []>} : vector<32x288xbf16>, vector<288x512xbf16>, vector<32x512xf32> -> vector<32x512xf32>
    %56 = vector.broadcast %2 : vector<32x1xf32> to vector<32x512xf32>
    %57 = arith.addf %55, %56 : vector<32x512xf32>
    %cst_19 = arith.constant 0.000000e+00 : f32
    %58 = vector.broadcast %cst_19 : f32 to vector<32x512xf32>
    %59 = arith.maximumf %57, %58 : vector<32x512xf32>
    %c0_20 = arith.constant 0 : index
    %c0_21 = arith.constant 0 : index
    %60 = vector.load %arg7[%c0_20, %c0_21] : memref<32x1xf32, #tpu.memory_space<vmem>>, vector<32x1xf32>
    %c17_i32_22 = arith.constant 17 : i32
    %61 = tpu.dynamic_rotate %59 by %c17_i32_22 dim 1 : vector<32x512xf32>, i32 -> vector<32x512xf32>
    %62 = vector.extract_strided_slice %0 {offsets = [0, 0], sizes = [1, 512], strides = [1, 1]} : vector<9x512xf32> to vector<1x512xf32>
    %63 = vector.broadcast %62 : vector<1x512xf32> to vector<32x512xf32>
    %64 = arith.mulf %61, %63 : vector<32x512xf32>
    %65 = arith.truncf %64 : vector<32x512xf32> to vector<32x512xbf16>
    %c0_23 = arith.constant 0 : index
    %c0_24 = arith.constant 0 : index
    %66 = vector.load %arg18[%c0_23, %c0_24] : memref<288x512xbf16, #tpu.memory_space<vmem>>, vector<32x512xbf16>
    tpu.vector_store %arg18[%c0_23, %c0_24], %65 {strides = array<i32>} : memref<288x512xbf16, #tpu.memory_space<vmem>>, vector<32x512xbf16>,
    %c16_i32_25 = arith.constant 16 : i32
    %67 = tpu.dynamic_rotate %59 by %c16_i32_25 dim 1 : vector<32x512xf32>, i32 -> vector<32x512xf32>
    %68 = vector.extract_strided_slice %0 {offsets = [1, 0], sizes = [1, 512], strides = [1, 1]} : vector<9x512xf32> to vector<1x512xf32>
    %69 = vector.broadcast %68 : vector<1x512xf32> to vector<32x512xf32>
    %70 = arith.mulf %67, %69 : vector<32x512xf32>
    %71 = arith.truncf %70 : vector<32x512xf32> to vector<32x512xbf16>
    %c32_26 = arith.constant 32 : index
    %c0_27 = arith.constant 0 : index
    %72 = vector.load %arg18[%c32_26, %c0_27] : memref<288x512xbf16, #tpu.memory_space<vmem>>, vector<32x512xbf16>
    tpu.vector_store %arg18[%c32_26, %c0_27], %71 {strides = array<i32>} : memref<288x512xbf16, #tpu.memory_space<vmem>>, vector<32x512xbf16>,
    %c15_i32_28 = arith.constant 15 : i32
    %73 = tpu.dynamic_rotate %59 by %c15_i32_28 dim 1 : vector<32x512xf32>, i32 -> vector<32x512xf32>
    %74 = vector.extract_strided_slice %0 {offsets = [2, 0], sizes = [1, 512], strides = [1, 1]} : vector<9x512xf32> to vector<1x512xf32>
    %75 = vector.broadcast %74 : vector<1x512xf32> to vector<32x512xf32>
    %76 = arith.mulf %73, %75 : vector<32x512xf32>
    %77 = arith.truncf %76 : vector<32x512xf32> to vector<32x512xbf16>
    %c64_29 = arith.constant 64 : index
    %c0_30 = arith.constant 0 : index
    %78 = vector.load %arg18[%c64_29, %c0_30] : memref<288x512xbf16, #tpu.memory_space<vmem>>, vector<32x512xbf16>
    tpu.vector_store %arg18[%c64_29, %c0_30], %77 {strides = array<i32>} : memref<288x512xbf16, #tpu.memory_space<vmem>>, vector<32x512xbf16>,
    %c1_i32_31 = arith.constant 1 : i32
    %79 = tpu.dynamic_rotate %59 by %c1_i32_31 dim 1 : vector<32x512xf32>, i32 -> vector<32x512xf32>
    %80 = vector.extract_strided_slice %0 {offsets = [3, 0], sizes = [1, 512], strides = [1, 1]} : vector<9x512xf32> to vector<1x512xf32>
    %81 = vector.broadcast %80 : vector<1x512xf32> to vector<32x512xf32>
    %82 = arith.mulf %79, %81 : vector<32x512xf32>
    %83 = arith.truncf %82 : vector<32x512xf32> to vector<32x512xbf16>
    %c96_32 = arith.constant 96 : index
    %c0_33 = arith.constant 0 : index
    %84 = vector.load %arg18[%c96_32, %c0_33] : memref<288x512xbf16, #tpu.memory_space<vmem>>, vector<32x512xbf16>
    tpu.vector_store %arg18[%c96_32, %c0_33], %83 {strides = array<i32>} : memref<288x512xbf16, #tpu.memory_space<vmem>>, vector<32x512xbf16>,
    %85 = arith.truncf %59 : vector<32x512xf32> to vector<32x512xbf16>
    %c128_34 = arith.constant 128 : index
    %c0_35 = arith.constant 0 : index
    %86 = vector.load %arg18[%c128_34, %c0_35] : memref<288x512xbf16, #tpu.memory_space<vmem>>, vector<32x512xbf16>
    tpu.vector_store %arg18[%c128_34, %c0_35], %85 {strides = array<i32>} : memref<288x512xbf16, #tpu.memory_space<vmem>>, vector<32x512xbf16>,
    %c511_i32_36 = arith.constant 511 : i32
    %87 = tpu.dynamic_rotate %59 by %c511_i32_36 dim 1 : vector<32x512xf32>, i32 -> vector<32x512xf32>
    %88 = vector.extract_strided_slice %0 {offsets = [5, 0], sizes = [1, 512], strides = [1, 1]} : vector<9x512xf32> to vector<1x512xf32>
    %89 = vector.broadcast %88 : vector<1x512xf32> to vector<32x512xf32>
    %90 = arith.mulf %87, %89 : vector<32x512xf32>
    %91 = arith.truncf %90 : vector<32x512xf32> to vector<32x512xbf16>
    %c160_37 = arith.constant 160 : index
    %c0_38 = arith.constant 0 : index
    %92 = vector.load %arg18[%c160_37, %c0_38] : memref<288x512xbf16, #tpu.memory_space<vmem>>, vector<32x512xbf16>
    tpu.vector_store %arg18[%c160_37, %c0_38], %91 {strides = array<i32>} : memref<288x512xbf16, #tpu.memory_space<vmem>>, vector<32x512xbf16>,
    %c497_i32_39 = arith.constant 497 : i32
    %93 = tpu.dynamic_rotate %59 by %c497_i32_39 dim 1 : vector<32x512xf32>, i32 -> vector<32x512xf32>
    %94 = vector.extract_strided_slice %0 {offsets = [6, 0], sizes = [1, 512], strides = [1, 1]} : vector<9x512xf32> to vector<1x512xf32>
    %95 = vector.broadcast %94 : vector<1x512xf32> to vector<32x512xf32>
    %96 = arith.mulf %93, %95 : vector<32x512xf32>
    %97 = arith.truncf %96 : vector<32x512xf32> to vector<32x512xbf16>
    %c192_40 = arith.constant 192 : index
    %c0_41 = arith.constant 0 : index
    %98 = vector.load %arg18[%c192_40, %c0_41] : memref<288x512xbf16, #tpu.memory_space<vmem>>, vector<32x512xbf16>
    tpu.vector_store %arg18[%c192_40, %c0_41], %97 {strides = array<i32>} : memref<288x512xbf16, #tpu.memory_space<vmem>>, vector<32x512xbf16>,
    %c496_i32_42 = arith.constant 496 : i32
    %99 = tpu.dynamic_rotate %59 by %c496_i32_42 dim 1 : vector<32x512xf32>, i32 -> vector<32x512xf32>
    %100 = vector.extract_strided_slice %0 {offsets = [7, 0], sizes = [1, 512], strides = [1, 1]} : vector<9x512xf32> to vector<1x512xf32>
    %101 = vector.broadcast %100 : vector<1x512xf32> to vector<32x512xf32>
    %102 = arith.mulf %99, %101 : vector<32x512xf32>
    %103 = arith.truncf %102 : vector<32x512xf32> to vector<32x512xbf16>
    %c224_43 = arith.constant 224 : index
    %c0_44 = arith.constant 0 : index
    %104 = vector.load %arg18[%c224_43, %c0_44] : memref<288x512xbf16, #tpu.memory_space<vmem>>, vector<32x512xbf16>
    tpu.vector_store %arg18[%c224_43, %c0_44], %103 {strides = array<i32>} : memref<288x512xbf16, #tpu.memory_space<vmem>>, vector<32x512xbf16>,
    %c495_i32_45 = arith.constant 495 : i32
    %105 = tpu.dynamic_rotate %59 by %c495_i32_45 dim 1 : vector<32x512xf32>, i32 -> vector<32x512xf32>
    %106 = vector.extract_strided_slice %0 {offsets = [8, 0], sizes = [1, 512], strides = [1, 1]} : vector<9x512xf32> to vector<1x512xf32>
    %107 = vector.broadcast %106 : vector<1x512xf32> to vector<32x512xf32>
    %108 = arith.mulf %105, %107 : vector<32x512xf32>
    %109 = arith.truncf %108 : vector<32x512xf32> to vector<32x512xbf16>
    %c256_46 = arith.constant 256 : index
    %c0_47 = arith.constant 0 : index
    %110 = vector.load %arg18[%c256_46, %c0_47] : memref<288x512xbf16, #tpu.memory_space<vmem>>, vector<32x512xbf16>
    tpu.vector_store %arg18[%c256_46, %c0_47], %109 {strides = array<i32>} : memref<288x512xbf16, #tpu.memory_space<vmem>>, vector<32x512xbf16>,
    %c0_48 = arith.constant 0 : index
    %c0_49 = arith.constant 0 : index
    %111 = vector.load %arg6[%c0_48, %c0_49] : memref<32x288xbf16, #tpu.memory_space<vmem>>, vector<32x288xbf16>
    %c0_50 = arith.constant 0 : index
    %c0_51 = arith.constant 0 : index
    %112 = vector.load %arg18[%c0_50, %c0_51] : memref<288x512xbf16, #tpu.memory_space<vmem>>, vector<288x512xbf16>
    %cst_52 = arith.constant dense<0.000000e+00> : vector<32x512xf32>
    %113 = tpu.matmul %111, %112, %cst_52 {dimension_numbers = #tpu.dot_dimension_numbers<[1], [0], [0], [1], [0, 0, 1, 1], [], []>} : vector<32x288xbf16>, vector<288x512xbf16>, vector<32x512xf32> -> vector<32x512xf32>
    %114 = vector.broadcast %60 : vector<32x1xf32> to vector<32x512xf32>
    %115 = arith.addf %113, %114 : vector<32x512xf32>
    %116 = arith.truncf %115 : vector<32x512xf32> to vector<32x512xbf16>
    %c0_53 = arith.constant 0 : index
    %c0_54 = arith.constant 0 : index
    %117 = vector.load %arg14[%c0_53, %c0_54] : memref<32x32xbf16, #tpu.memory_space<vmem>>, vector<32x32xbf16>
    %cst_55 = arith.constant dense<0.000000e+00> : vector<32x512xf32>
    %118 = tpu.matmul %117, %116, %cst_55 {dimension_numbers = #tpu.dot_dimension_numbers<[1], [0], [0], [1], [0, 0, 1, 1], [], []>} : vector<32x32xbf16>, vector<32x512xbf16>, vector<32x512xf32> -> vector<32x512xf32>
    %cst_56 = arith.constant dense<0xFF800000> : vector<512xf32>
    %119 = vector.multi_reduction <maximumf>, %115, %cst_56 [0] : vector<32x512xf32> to vector<512xf32>
    %120 = vector.shape_cast %119 : vector<512xf32> to vector<1x512xf32>
    %cst_57 = arith.constant dense<0.000000e+00> : vector<512xf32>
    %121 = vector.multi_reduction <add>, %115, %cst_57 [0] : vector<32x512xf32> to vector<512xf32>
    %122 = vector.shape_cast %121 : vector<512xf32> to vector<1x512xf32>
    %cst_58 = arith.constant 3.200000e+01 : f32
    %123 = vector.broadcast %cst_58 : f32 to vector<1x512xf32>
    %124 = arith.divf %122, %123 : vector<1x512xf32>
    %125 = tpu.concatenate %120, %124 in 0 : vector<1x512xf32>, vector<1x512xf32> -> vector<2x512xf32>
    %c0_59 = arith.constant 0 : index
    %126 = memref.load %arg9[%c0_59] : memref<1xf32, #tpu.memory_space<smem>>
    %127 = vector.broadcast %126 : f32 to vector<1x512xf32>
    %c17_i32_60 = arith.constant 17 : i32
    %128 = tpu.dynamic_rotate %125 by %c17_i32_60 dim 1 : vector<2x512xf32>, i32 -> vector<2x512xf32>
    %129 = vector.extract_strided_slice %0 {offsets = [0, 0], sizes = [1, 512], strides = [1, 1]} : vector<9x512xf32> to vector<1x512xf32>
    %130 = vector.broadcast %129 : vector<1x512xf32> to vector<2x512xf32>
    %131 = arith.mulf %128, %130 : vector<2x512xf32>
    %c0_61 = arith.constant 0 : index
    %132 = memref.load %arg8[%c0_61] : memref<18xf32, #tpu.memory_space<smem>>
    %133 = vector.extract_strided_slice %131 {offsets = [0, 0], sizes = [1, 512], strides = [1, 1]} : vector<2x512xf32> to vector<1x512xf32>
    %134 = vector.broadcast %132 : f32 to vector<1x512xf32>
    %135 = arith.mulf %134, %133 : vector<1x512xf32>
    %136 = arith.addf %127, %135 : vector<1x512xf32>
    %c9 = arith.constant 9 : index
    %137 = memref.load %arg8[%c9] : memref<18xf32, #tpu.memory_space<smem>>
    %138 = vector.extract_strided_slice %131 {offsets = [1, 0], sizes = [1, 512], strides = [1, 1]} : vector<2x512xf32> to vector<1x512xf32>
    %139 = vector.broadcast %137 : f32 to vector<1x512xf32>
    %140 = arith.mulf %139, %138 : vector<1x512xf32>
    %141 = arith.addf %136, %140 : vector<1x512xf32>
    %c16_i32_62 = arith.constant 16 : i32
    %142 = tpu.dynamic_rotate %125 by %c16_i32_62 dim 1 : vector<2x512xf32>, i32 -> vector<2x512xf32>
    %143 = vector.extract_strided_slice %0 {offsets = [1, 0], sizes = [1, 512], strides = [1, 1]} : vector<9x512xf32> to vector<1x512xf32>
    %144 = vector.broadcast %143 : vector<1x512xf32> to vector<2x512xf32>
    %145 = arith.mulf %142, %144 : vector<2x512xf32>
    %c1 = arith.constant 1 : index
    %146 = memref.load %arg8[%c1] : memref<18xf32, #tpu.memory_space<smem>>
    %147 = vector.extract_strided_slice %145 {offsets = [0, 0], sizes = [1, 512], strides = [1, 1]} : vector<2x512xf32> to vector<1x512xf32>
    %148 = vector.broadcast %146 : f32 to vector<1x512xf32>
    %149 = arith.mulf %148, %147 : vector<1x512xf32>
    %150 = arith.addf %141, %149 : vector<1x512xf32>
    %c10 = arith.constant 10 : index
    %151 = memref.load %arg8[%c10] : memref<18xf32, #tpu.memory_space<smem>>
    %152 = vector.extract_strided_slice %145 {offsets = [1, 0], sizes = [1, 512], strides = [1, 1]} : vector<2x512xf32> to vector<1x512xf32>
    %153 = vector.broadcast %151 : f32 to vector<1x512xf32>
    %154 = arith.mulf %153, %152 : vector<1x512xf32>
    %155 = arith.addf %150, %154 : vector<1x512xf32>
    %c15_i32_63 = arith.constant 15 : i32
    %156 = tpu.dynamic_rotate %125 by %c15_i32_63 dim 1 : vector<2x512xf32>, i32 -> vector<2x512xf32>
    %157 = vector.extract_strided_slice %0 {offsets = [2, 0], sizes = [1, 512], strides = [1, 1]} : vector<9x512xf32> to vector<1x512xf32>
    %158 = vector.broadcast %157 : vector<1x512xf32> to vector<2x512xf32>
    %159 = arith.mulf %156, %158 : vector<2x512xf32>
    %c2 = arith.constant 2 : index
    %160 = memref.load %arg8[%c2] : memref<18xf32, #tpu.memory_space<smem>>
    %161 = vector.extract_strided_slice %159 {offsets = [0, 0], sizes = [1, 512], strides = [1, 1]} : vector<2x512xf32> to vector<1x512xf32>
    %162 = vector.broadcast %160 : f32 to vector<1x512xf32>
    %163 = arith.mulf %162, %161 : vector<1x512xf32>
    %164 = arith.addf %155, %163 : vector<1x512xf32>
    %c11 = arith.constant 11 : index
    %165 = memref.load %arg8[%c11] : memref<18xf32, #tpu.memory_space<smem>>
    %166 = vector.extract_strided_slice %159 {offsets = [1, 0], sizes = [1, 512], strides = [1, 1]} : vector<2x512xf32> to vector<1x512xf32>
    %167 = vector.broadcast %165 : f32 to vector<1x512xf32>
    %168 = arith.mulf %167, %166 : vector<1x512xf32>
    %169 = arith.addf %164, %168 : vector<1x512xf32>
    %c1_i32_64 = arith.constant 1 : i32
    %170 = tpu.dynamic_rotate %125 by %c1_i32_64 dim 1 : vector<2x512xf32>, i32 -> vector<2x512xf32>
    %171 = vector.extract_strided_slice %0 {offsets = [3, 0], sizes = [1, 512], strides = [1, 1]} : vector<9x512xf32> to vector<1x512xf32>
    %172 = vector.broadcast %171 : vector<1x512xf32> to vector<2x512xf32>
    %173 = arith.mulf %170, %172 : vector<2x512xf32>
    %c3 = arith.constant 3 : index
    %174 = memref.load %arg8[%c3] : memref<18xf32, #tpu.memory_space<smem>>
    %175 = vector.extract_strided_slice %173 {offsets = [0, 0], sizes = [1, 512], strides = [1, 1]} : vector<2x512xf32> to vector<1x512xf32>
    %176 = vector.broadcast %174 : f32 to vector<1x512xf32>
    %177 = arith.mulf %176, %175 : vector<1x512xf32>
    %178 = arith.addf %169, %177 : vector<1x512xf32>
    %c12 = arith.constant 12 : index
    %179 = memref.load %arg8[%c12] : memref<18xf32, #tpu.memory_space<smem>>
    %180 = vector.extract_strided_slice %173 {offsets = [1, 0], sizes = [1, 512], strides = [1, 1]} : vector<2x512xf32> to vector<1x512xf32>
    %181 = vector.broadcast %179 : f32 to vector<1x512xf32>
    %182 = arith.mulf %181, %180 : vector<1x512xf32>
    %183 = arith.addf %178, %182 : vector<1x512xf32>
    %c4 = arith.constant 4 : index
    %184 = memref.load %arg8[%c4] : memref<18xf32, #tpu.memory_space<smem>>
    %185 = vector.extract_strided_slice %125 {offsets = [0, 0], sizes = [1, 512], strides = [1, 1]} : vector<2x512xf32> to vector<1x512xf32>
    %186 = vector.broadcast %184 : f32 to vector<1x512xf32>
    %187 = arith.mulf %186, %185 : vector<1x512xf32>
    %188 = arith.addf %183, %187 : vector<1x512xf32>
    %c13 = arith.constant 13 : index
    %189 = memref.load %arg8[%c13] : memref<18xf32, #tpu.memory_space<smem>>
    %190 = vector.extract_strided_slice %125 {offsets = [1, 0], sizes = [1, 512], strides = [1, 1]} : vector<2x512xf32> to vector<1x512xf32>
    %191 = vector.broadcast %189 : f32 to vector<1x512xf32>
    %192 = arith.mulf %191, %190 : vector<1x512xf32>
    %193 = arith.addf %188, %192 : vector<1x512xf32>
    %c511_i32_65 = arith.constant 511 : i32
    %194 = tpu.dynamic_rotate %125 by %c511_i32_65 dim 1 : vector<2x512xf32>, i32 -> vector<2x512xf32>
    %195 = vector.extract_strided_slice %0 {offsets = [5, 0], sizes = [1, 512], strides = [1, 1]} : vector<9x512xf32> to vector<1x512xf32>
    %196 = vector.broadcast %195 : vector<1x512xf32> to vector<2x512xf32>
    %197 = arith.mulf %194, %196 : vector<2x512xf32>
    %c5 = arith.constant 5 : index
    %198 = memref.load %arg8[%c5] : memref<18xf32, #tpu.memory_space<smem>>
    %199 = vector.extract_strided_slice %197 {offsets = [0, 0], sizes = [1, 512], strides = [1, 1]} : vector<2x512xf32> to vector<1x512xf32>
    %200 = vector.broadcast %198 : f32 to vector<1x512xf32>
    %201 = arith.mulf %200, %199 : vector<1x512xf32>
    %202 = arith.addf %193, %201 : vector<1x512xf32>
    %c14 = arith.constant 14 : index
    %203 = memref.load %arg8[%c14] : memref<18xf32, #tpu.memory_space<smem>>
    %204 = vector.extract_strided_slice %197 {offsets = [1, 0], sizes = [1, 512], strides = [1, 1]} : vector<2x512xf32> to vector<1x512xf32>
    %205 = vector.broadcast %203 : f32 to vector<1x512xf32>
    %206 = arith.mulf %205, %204 : vector<1x512xf32>
    %207 = arith.addf %202, %206 : vector<1x512xf32>
    %c497_i32_66 = arith.constant 497 : i32
    %208 = tpu.dynamic_rotate %125 by %c497_i32_66 dim 1 : vector<2x512xf32>, i32 -> vector<2x512xf32>
    %209 = vector.extract_strided_slice %0 {offsets = [6, 0], sizes = [1, 512], strides = [1, 1]} : vector<9x512xf32> to vector<1x512xf32>
    %210 = vector.broadcast %209 : vector<1x512xf32> to vector<2x512xf32>
    %211 = arith.mulf %208, %210 : vector<2x512xf32>
    %c6 = arith.constant 6 : index
    %212 = memref.load %arg8[%c6] : memref<18xf32, #tpu.memory_space<smem>>
    %213 = vector.extract_strided_slice %211 {offsets = [0, 0], sizes = [1, 512], strides = [1, 1]} : vector<2x512xf32> to vector<1x512xf32>
    %214 = vector.broadcast %212 : f32 to vector<1x512xf32>
    %215 = arith.mulf %214, %213 : vector<1x512xf32>
    %216 = arith.addf %207, %215 : vector<1x512xf32>
    %c15 = arith.constant 15 : index
    %217 = memref.load %arg8[%c15] : memref<18xf32, #tpu.memory_space<smem>>
    %218 = vector.extract_strided_slice %211 {offsets = [1, 0], sizes = [1, 512], strides = [1, 1]} : vector<2x512xf32> to vector<1x512xf32>
    %219 = vector.broadcast %217 : f32 to vector<1x512xf32>
    %220 = arith.mulf %219, %218 : vector<1x512xf32>
    %221 = arith.addf %216, %220 : vector<1x512xf32>
    %c496_i32_67 = arith.constant 496 : i32
    %222 = tpu.dynamic_rotate %125 by %c496_i32_67 dim 1 : vector<2x512xf32>, i32 -> vector<2x512xf32>
    %223 = vector.extract_strided_slice %0 {offsets = [7, 0], sizes = [1, 512], strides = [1, 1]} : vector<9x512xf32> to vector<1x512xf32>
    %224 = vector.broadcast %223 : vector<1x512xf32> to vector<2x512xf32>
    %225 = arith.mulf %222, %224 : vector<2x512xf32>
    %c7 = arith.constant 7 : index
    %226 = memref.load %arg8[%c7] : memref<18xf32, #tpu.memory_space<smem>>
    %227 = vector.extract_strided_slice %225 {offsets = [0, 0], sizes = [1, 512], strides = [1, 1]} : vector<2x512xf32> to vector<1x512xf32>
    %228 = vector.broadcast %226 : f32 to vector<1x512xf32>
    %229 = arith.mulf %228, %227 : vector<1x512xf32>
    %230 = arith.addf %221, %229 : vector<1x512xf32>
    %c16 = arith.constant 16 : index
    %231 = memref.load %arg8[%c16] : memref<18xf32, #tpu.memory_space<smem>>
    %232 = vector.extract_strided_slice %225 {offsets = [1, 0], sizes = [1, 512], strides = [1, 1]} : vector<2x512xf32> to vector<1x512xf32>
    %233 = vector.broadcast %231 : f32 to vector<1x512xf32>
    %234 = arith.mulf %233, %232 : vector<1x512xf32>
    %235 = arith.addf %230, %234 : vector<1x512xf32>
    %c495_i32_68 = arith.constant 495 : i32
    %236 = tpu.dynamic_rotate %125 by %c495_i32_68 dim 1 : vector<2x512xf32>, i32 -> vector<2x512xf32>
    %237 = vector.extract_strided_slice %0 {offsets = [8, 0], sizes = [1, 512], strides = [1, 1]} : vector<9x512xf32> to vector<1x512xf32>
    %238 = vector.broadcast %237 : vector<1x512xf32> to vector<2x512xf32>
    %239 = arith.mulf %236, %238 : vector<2x512xf32>
    %c8 = arith.constant 8 : index
    %240 = memref.load %arg8[%c8] : memref<18xf32, #tpu.memory_space<smem>>
    %241 = vector.extract_strided_slice %239 {offsets = [0, 0], sizes = [1, 512], strides = [1, 1]} : vector<2x512xf32> to vector<1x512xf32>
    %242 = vector.broadcast %240 : f32 to vector<1x512xf32>
    %243 = arith.mulf %242, %241 : vector<1x512xf32>
    %244 = arith.addf %235, %243 : vector<1x512xf32>
    %c17 = arith.constant 17 : index
    %245 = memref.load %arg8[%c17] : memref<18xf32, #tpu.memory_space<smem>>
    %246 = vector.extract_strided_slice %239 {offsets = [1, 0], sizes = [1, 512], strides = [1, 1]} : vector<2x512xf32> to vector<1x512xf32>
    %247 = vector.broadcast %245 : f32 to vector<1x512xf32>
    %248 = arith.mulf %247, %246 : vector<1x512xf32>
    %249 = arith.addf %244, %248 : vector<1x512xf32>
    %250 = arith.negf %249 : vector<1x512xf32>
    %251 = math.exp %250 : vector<1x512xf32>
    %cst_69 = arith.constant 1.000000e+00 : f32
    %252 = vector.broadcast %cst_69 : f32 to vector<1x512xf32>
    %253 = arith.addf %252, %251 : vector<1x512xf32>
    %254 = arith.divf %252, %253 : vector<1x512xf32>
    %c0_70 = arith.constant 0 : index
    %c0_71 = arith.constant 0 : index
    %255 = vector.load %arg10[%c0_70, %c0_71] : memref<32x4xf32, #tpu.memory_space<vmem>>, vector<32x4xf32>
    %c0_72 = arith.constant 0 : index
    %c0_73 = arith.constant 0 : index
    %256 = vector.load %arg11[%c0_72, %c0_73] : memref<1x4xf32, #tpu.memory_space<vmem>>, vector<1x4xf32>
    %c0_74 = arith.constant 0 : index
    %c0_75 = arith.constant 0 : index
    %257 = vector.load %arg12[%c0_74, %c0_75] : memref<32x4xf32, #tpu.memory_space<vmem>>, vector<32x4xf32>
    %c0_76 = arith.constant 0 : index
    %c0_77 = arith.constant 0 : index
    %258 = vector.load %arg13[%c0_76, %c0_77] : memref<32x1xf32, #tpu.memory_space<vmem>>, vector<32x1xf32>
    %c0_78 = arith.constant 0 : index
    %c0_79 = arith.constant 0 : index
    %259 = vector.load %arg3[%c0_78, %c0_79] : memref<2x512xf32, #tpu.memory_space<vmem>>, vector<2x512xf32>
    %cst_80 = arith.constant 0.000000e+00 : f32
    %260 = vector.broadcast %cst_80 : f32 to vector<32x512xf32>
    %261 = vector.extract_strided_slice %259 {offsets = [0, 0], sizes = [1, 512], strides = [1, 1]} : vector<2x512xf32> to vector<1x512xf32>
    %262 = vector.broadcast %261 : vector<1x512xf32> to vector<32x512xf32>
    %263 = arith.mulf %115, %262 : vector<32x512xf32>
    %cst_81 = arith.constant dense<0.000000e+00> : vector<32xf32>
    %264 = vector.multi_reduction <add>, %263, %cst_81 [1] : vector<32x512xf32> to vector<32xf32>
    %265 = vector.shape_cast %264 : vector<32xf32> to vector<32x1xf32>
    %266 = vector.broadcast %265 : vector<32x1xf32> to vector<32x4xf32>
    %267 = arith.mulf %255, %266 : vector<32x4xf32>
    %cst_82 = arith.constant dense<0.000000e+00> : vector<4xf32>
    %268 = vector.multi_reduction <add>, %267, %cst_82 [0] : vector<32x4xf32> to vector<4xf32>
    %269 = vector.shape_cast %268 : vector<4xf32> to vector<1x4xf32>
    %270 = arith.addf %269, %256 : vector<1x4xf32>
    %cst_83 = arith.constant 0.000000e+00 : f32
    %271 = vector.broadcast %cst_83 : f32 to vector<1x4xf32>
    %272 = arith.maximumf %270, %271 : vector<1x4xf32>
    %273 = vector.broadcast %272 : vector<1x4xf32> to vector<32x4xf32>
    %274 = arith.mulf %257, %273 : vector<32x4xf32>
    %cst_84 = arith.constant dense<0.000000e+00> : vector<32xf32>
    %275 = vector.multi_reduction <add>, %274, %cst_84 [1] : vector<32x4xf32> to vector<32xf32>
    %276 = vector.shape_cast %275 : vector<32xf32> to vector<32x1xf32>
    %277 = arith.addf %276, %258 : vector<32x1xf32>
    %278 = arith.negf %277 : vector<32x1xf32>
    %279 = math.exp %278 : vector<32x1xf32>
    %cst_85 = arith.constant 1.000000e+00 : f32
    %280 = vector.broadcast %cst_85 : f32 to vector<32x1xf32>
    %281 = arith.addf %280, %279 : vector<32x1xf32>
    %282 = arith.divf %280, %281 : vector<32x1xf32>
    %283 = vector.broadcast %282 : vector<32x1xf32> to vector<32x512xf32>
    %284 = vector.broadcast %261 : vector<1x512xf32> to vector<32x512xf32>
    %285 = arith.mulf %283, %284 : vector<32x512xf32>
    %286 = arith.addf %260, %285 : vector<32x512xf32>
    %287 = vector.extract_strided_slice %259 {offsets = [1, 0], sizes = [1, 512], strides = [1, 1]} : vector<2x512xf32> to vector<1x512xf32>
    %288 = vector.broadcast %287 : vector<1x512xf32> to vector<32x512xf32>
    %289 = arith.mulf %115, %288 : vector<32x512xf32>
    %cst_86 = arith.constant dense<0.000000e+00> : vector<32xf32>
    %290 = vector.multi_reduction <add>, %289, %cst_86 [1] : vector<32x512xf32> to vector<32xf32>
    %291 = vector.shape_cast %290 : vector<32xf32> to vector<32x1xf32>
    %292 = vector.broadcast %291 : vector<32x1xf32> to vector<32x4xf32>
    %293 = arith.mulf %255, %292 : vector<32x4xf32>
    %cst_87 = arith.constant dense<0.000000e+00> : vector<4xf32>
    %294 = vector.multi_reduction <add>, %293, %cst_87 [0] : vector<32x4xf32> to vector<4xf32>
    %295 = vector.shape_cast %294 : vector<4xf32> to vector<1x4xf32>
    %296 = arith.addf %295, %256 : vector<1x4xf32>
    %cst_88 = arith.constant 0.000000e+00 : f32
    %297 = vector.broadcast %cst_88 : f32 to vector<1x4xf32>
    %298 = arith.maximumf %296, %297 : vector<1x4xf32>
    %299 = vector.broadcast %298 : vector<1x4xf32> to vector<32x4xf32>
    %300 = arith.mulf %257, %299 : vector<32x4xf32>
    %cst_89 = arith.constant dense<0.000000e+00> : vector<32xf32>
    %301 = vector.multi_reduction <add>, %300, %cst_89 [1] : vector<32x4xf32> to vector<32xf32>
    %302 = vector.shape_cast %301 : vector<32xf32> to vector<32x1xf32>
    %303 = arith.addf %302, %258 : vector<32x1xf32>
    %304 = arith.negf %303 : vector<32x1xf32>
    %305 = math.exp %304 : vector<32x1xf32>
    %cst_90 = arith.constant 1.000000e+00 : f32
    %306 = vector.broadcast %cst_90 : f32 to vector<32x1xf32>
    %307 = arith.addf %306, %305 : vector<32x1xf32>
    %308 = arith.divf %306, %307 : vector<32x1xf32>
    %309 = vector.broadcast %308 : vector<32x1xf32> to vector<32x512xf32>
    %310 = vector.broadcast %287 : vector<1x512xf32> to vector<32x512xf32>
    %311 = arith.mulf %309, %310 : vector<32x512xf32>
    %312 = arith.addf %286, %311 : vector<32x512xf32>
    %c0_91 = arith.constant 0 : index
    %c0_92 = arith.constant 0 : index
    %313 = vector.load %arg15[%c0_91, %c0_92] : memref<32x32xbf16, #tpu.memory_space<vmem>>, vector<32x32xbf16>
    %314 = arith.mulf %115, %312 : vector<32x512xf32>
    %315 = arith.truncf %314 : vector<32x512xf32> to vector<32x512xbf16>
    %cst_93 = arith.constant dense<0.000000e+00> : vector<32x512xf32>
    %316 = tpu.matmul %313, %315, %cst_93 {dimension_numbers = #tpu.dot_dimension_numbers<[1], [0], [0], [1], [0, 0, 1, 1], [], []>} : vector<32x32xbf16>, vector<32x512xbf16>, vector<32x512xf32> -> vector<32x512xf32>
    %317 = vector.broadcast %254 : vector<1x512xf32> to vector<32x512xf32>
    %318 = arith.mulf %118, %317 : vector<32x512xf32>
    %319 = arith.addf %318, %316 : vector<32x512xf32>
    %c0_94 = arith.constant 0 : index
    %c0_95 = arith.constant 0 : index
    %320 = vector.load %arg16[%c0_94, %c0_95] : memref<32x1xf32, #tpu.memory_space<vmem>>, vector<32x1xf32>
    %321 = vector.broadcast %320 : vector<32x1xf32> to vector<32x512xf32>
    %322 = arith.addf %319, %321 : vector<32x512xf32>
    %323 = arith.addf %322, %1 : vector<32x512xf32>
    %c0_96 = arith.constant 0 : index
    %c0_97 = arith.constant 0 : index
    %324 = vector.load %arg17[%c0_96, %c0_97] : memref<32x512xf32, #tpu.memory_space<vmem>>, vector<32x512xf32>
    tpu.vector_store %arg17[%c0_96, %c0_97], %323 {strides = array<i32>} : memref<32x512xf32, #tpu.memory_space<vmem>>, vector<32x512xf32>,
    return
  }
  func.func @transform_0(%arg0: i32) -> (i32, i32) {
    %c0_i32 = arith.constant 0 : i32
    %c0_i32_0 = arith.constant 0 : i32
    return %c0_i32, %arg0 : i32, i32
  }
  func.func @transform_1(%arg0: i32) -> (i32, i32) {
    %c0_i32 = arith.constant 0 : i32
    %c0_i32_0 = arith.constant 0 : i32
    %c0_i32_1 = arith.constant 0 : i32
    return %c0_i32, %c0_i32_0 : i32, i32
  }
  func.func @transform_2(%arg0: i32) -> (i32, i32) {
    %c0_i32 = arith.constant 0 : i32
    %c0_i32_0 = arith.constant 0 : i32
    %c0_i32_1 = arith.constant 0 : i32
    return %c0_i32, %c0_i32_0 : i32, i32
  }
  func.func @transform_3(%arg0: i32) -> (i32, i32) {
    %c0_i32 = arith.constant 0 : i32
    %c0_i32_0 = arith.constant 0 : i32
    %c0_i32_1 = arith.constant 0 : i32
    return %c0_i32, %c0_i32_0 : i32, i32
  }
  func.func @transform_4(%arg0: i32) -> (i32, i32) {
    %c0_i32 = arith.constant 0 : i32
    %c0_i32_0 = arith.constant 0 : i32
    %c0_i32_1 = arith.constant 0 : i32
    return %c0_i32, %c0_i32_0 : i32, i32
  }
  func.func @transform_5(%arg0: i32) -> (i32, i32) {
    %c0_i32 = arith.constant 0 : i32
    %c0_i32_0 = arith.constant 0 : i32
    %c0_i32_1 = arith.constant 0 : i32
    return %c0_i32, %c0_i32_0 : i32, i32
  }
  func.func @transform_6(%arg0: i32) -> (i32, i32) {
    %c0_i32 = arith.constant 0 : i32
    %c0_i32_0 = arith.constant 0 : i32
    %c0_i32_1 = arith.constant 0 : i32
    return %c0_i32, %c0_i32_0 : i32, i32
  }
  func.func @transform_7(%arg0: i32) -> i32 {
    %c0_i32 = arith.constant 0 : i32
    %c0_i32_0 = arith.constant 0 : i32
    return %c0_i32 : i32
  }
  func.func @transform_8(%arg0: i32) -> i32 {
    %c0_i32 = arith.constant 0 : i32
    %c0_i32_0 = arith.constant 0 : i32
    return %c0_i32 : i32
  }
  func.func @transform_9(%arg0: i32) -> (i32, i32) {
    %c0_i32 = arith.constant 0 : i32
    %c0_i32_0 = arith.constant 0 : i32
    %c0_i32_1 = arith.constant 0 : i32
    return %c0_i32, %c0_i32_0 : i32, i32
  }
  func.func @transform_10(%arg0: i32) -> (i32, i32) {
    %c0_i32 = arith.constant 0 : i32
    %c0_i32_0 = arith.constant 0 : i32
    %c0_i32_1 = arith.constant 0 : i32
    return %c0_i32, %c0_i32_0 : i32, i32
  }
  func.func @transform_11(%arg0: i32) -> (i32, i32) {
    %c0_i32 = arith.constant 0 : i32
    %c0_i32_0 = arith.constant 0 : i32
    %c0_i32_1 = arith.constant 0 : i32
    return %c0_i32, %c0_i32_0 : i32, i32
  }
  func.func @transform_12(%arg0: i32) -> (i32, i32) {
    %c0_i32 = arith.constant 0 : i32
    %c0_i32_0 = arith.constant 0 : i32
    %c0_i32_1 = arith.constant 0 : i32
    return %c0_i32, %c0_i32_0 : i32, i32
  }
  func.func @transform_13(%arg0: i32) -> (i32, i32) {
    %c0_i32 = arith.constant 0 : i32
    %c0_i32_0 = arith.constant 0 : i32
    %c0_i32_1 = arith.constant 0 : i32
    return %c0_i32, %c0_i32_0 : i32, i32
  }
  func.func @transform_14(%arg0: i32) -> (i32, i32) {
    %c0_i32 = arith.constant 0 : i32
    %c0_i32_0 = arith.constant 0 : i32
    %c0_i32_1 = arith.constant 0 : i32
    return %c0_i32, %c0_i32_0 : i32, i32
  }
  func.func @transform_15(%arg0: i32) -> (i32, i32) {
    %c0_i32 = arith.constant 0 : i32
    %c0_i32_0 = arith.constant 0 : i32
    %c0_i32_1 = arith.constant 0 : i32
    return %c0_i32, %c0_i32_0 : i32, i32
  }
  func.func @transform_16(%arg0: i32) -> (i32, i32) {
    %c0_i32 = arith.constant 0 : i32
    %c0_i32_0 = arith.constant 0 : i32
    return %c0_i32, %arg0 : i32, i32
  }
}

</mosaic_0001>

<llo_original>
// kernel: tpu_custom_call.1
$region0: #{tpu_custom_call.1}
  #allocation0 [shape = 'u32[]', space=smem, size = 0x4, offset = 0x4, fixed_abs, tag = 'smem constant byte address 0x4 - core index']
  #allocation1 [shape = 'u32[144,128]{1,0:T(1,128)}', space=vmem, size = 0x12000, scoped, tag = 'internal scratch']
  #allocation2 [shape = 'bf16[288,512]{1,0:T(8,128)(2,1)}', space=vmem, size = 0x48000, scoped, tag = 'scratch operand']
  #allocation3 [shape = 'f32[1]{0:T(128)S(6)}', space=smem, size = 0x200, scoped, tag = 'scoped memory for tpu_custom_call.1']
  %s0 = inlined_call_operand.vmem [shape: f32[32,512], index: 0, kind: input, shape index: {}]
  %s1 = inlined_call_operand.vmem [shape: f32[9,512], index: 1, kind: input, shape index: {}]
  %s2 = inlined_call_operand.hbm [shape: f32[2,512], index: 2, kind: input, shape index: {}]
  %s3 = inlined_call_operand.hbm [shape: bf16[32,288], index: 3, kind: input, shape index: {}]
  %s4 = inlined_call_operand.vmem [shape: f32[32,1], index: 4, kind: input, shape index: {}]
  %s5 = inlined_call_operand.hbm [shape: bf16[32,288], index: 5, kind: input, shape index: {}]
  %s6 = inlined_call_operand.vmem [shape: f32[32,1], index: 6, kind: input, shape index: {}]
  %s7 = inlined_call_operand.hbm [shape: f32[18], index: 7, kind: input, shape index: {}]
  %s8 = inlined_call_operand.<no memory space> [shape: f32[1], index: 8, kind: input, shape index: {}]
  %s9 = inlined_call_operand.vmem [shape: f32[32,4], index: 9, kind: input, shape index: {}]
  %s10 = inlined_call_operand.hbm [shape: f32[1,4], index: 10, kind: input, shape index: {}]
  %s11 = inlined_call_operand.vmem [shape: f32[32,4], index: 11, kind: input, shape index: {}]
  %s12 = inlined_call_operand.vmem [shape: f32[32,1], index: 12, kind: input, shape index: {}]
  %s13 = inlined_call_operand.vmem [shape: bf16[32,32], index: 13, kind: input, shape index: {}]
  %s14 = inlined_call_operand.vmem [shape: bf16[32,32], index: 14, kind: input, shape index: {}]
  %s15 = inlined_call_operand.vmem [shape: f32[32,1], index: 15, kind: input, shape index: {}]
  %s16 = inlined_call_operand.hbm [shape: f32[32,512], index: 16, kind: output, shape index: {}]
  %s17 = sld [smem:[#allocation0]]
  $region94: #{tpu_custom_call.1} parent=0
    _
  %s19 = ssub.s32 1, %s17
  %s20 = scalar_select 0, %s19, %s17
  %21 = sst [smem:[#allocation3]] %s8
  $region1: #{tpu_custom_call.1} parent=0
    #allocation4 [shape = 'u8[4096]{0}', space=vmem, size = 0x1000, scoped, tag = 'input window, operand 2, single buffered']
    #allocation5 [shape = 's32[1]{0}', space=sflag, size = 0x4, scoped, tag = 'scoped memory for tpu_custom_call.1']
    #allocation6 [shape = 's32[1]{0}', space=sflag, size = 0x4, scoped, tag = 'scoped memory for tpu_custom_call.1']
    #allocation7 [shape = 's32[1]{0}', space=sflag, size = 0x4, scoped, tag = 'scoped memory for tpu_custom_call.1']
    #allocation8 [shape = 'u8[24576]{0}', space=vmem, size = 0x6000, scoped, tag = 'input window, operand 3, single buffered']
    #allocation9 [shape = 's32[1]{0}', space=sflag, size = 0x4, scoped, tag = 'scoped memory for tpu_custom_call.1']
    #allocation10 [shape = 'u8[24576]{0}', space=vmem, size = 0x6000, scoped, tag = 'input window, operand 5, single buffered']
    #allocation11 [shape = 'u8[512]{0}', space=smem, size = 0x200, scoped, tag = 'input window, operand 7, single buffered']
    #allocation12 [shape = 'u8[512]{0}', space=vmem, size = 0x400, scoped, tag = 'input window, operand 10, single buffered']
    #allocation13 [shape = 's32[1]{0}', space=sflag, size = 0x4, scoped, tag = 'scoped memory for tpu_custom_call.1']
    #allocation14 [shape = 'u8[65536]{0}', space=vmem, size = 0x10000, scoped, tag = 'output window, operand 0, single buffered']
    %22 = vsyncpa [#allocation5], 0
    %23 = vsyncpa [#allocation9], 0
    %24 = vsyncpa [#allocation7], 0
    %25 = vsyncpa [#allocation13], 0
    %26 = vsyncpa [#allocation6], 0
    // Predicated region
    $region2: #{tpu_custom_call.1} parent=1 // pred_check
      _
    $region3: #{tpu_custom_call.1} parent=1 // pred_check_branch
      %28 = sbr.rel (0) target = $region5
    $region4: #{tpu_custom_call.1} parent=1 // pred_region
      _
    $region5: #{tpu_custom_call.1} parent=1 // pred_fallthru
      _
    // Predicated region
    $region6: #{tpu_custom_call.1} parent=1 // pred_check
      _
    $region7: #{tpu_custom_call.1} parent=1 // pred_check_branch
      %30 = sbr.rel (0) target = $region9
    $region8: #{tpu_custom_call.1} parent=1 // pred_region
      _
    $region9: #{tpu_custom_call.1} parent=1 // pred_fallthru
      _
    // Predicated region
    $region10: #{tpu_custom_call.1} parent=1 // pred_check
      _
    $region11: #{tpu_custom_call.1} parent=1 // pred_check_branch
      %32 = sbr.rel (0) target = $region13
    $region12: #{tpu_custom_call.1} parent=1 // pred_region
      %s34 = ssub.s32 128, 128
      %35 = vsyncadd [#allocation5], %s34
      %s37 = sshll.u32 [#allocation4], 4
      %s38 = int_to_ptr.vmem [resolvable:$true] %s37
      %40 = dma.hbm_to_vmem [thread:$0]  %s2, 128, %s38, [#allocation5]
    $region13: #{tpu_custom_call.1} parent=1 // pred_fallthru
      _
    // Predicated region
    $region14: #{tpu_custom_call.1} parent=1 // pred_check
      _
    $region15: #{tpu_custom_call.1} parent=1 // pred_check_branch
      %42 = sbr.rel (0) target = $region17
    $region16: #{tpu_custom_call.1} parent=1 // pred_region
      %s44 = ssub.s32 768, 768
      %45 = vsyncadd [#allocation9], %s44
      %s46 = sshll.u32 [#allocation8], 4
      %s47 = int_to_ptr.vmem [resolvable:$true] %s46
      %52 = dma.hbm_to_vmem [thread:$0]  %s3, 768, %s47, [#allocation9], 192, 192, 12
    $region17: #{tpu_custom_call.1} parent=1 // pred_fallthru
      _
    // Predicated region
    $region18: #{tpu_custom_call.1} parent=1 // pred_check
      _
    $region19: #{tpu_custom_call.1} parent=1 // pred_check_branch
      %54 = sbr.rel (0) target = $region21
    $region20: #{tpu_custom_call.1} parent=1 // pred_region
      _
    $region21: #{tpu_custom_call.1} parent=1 // pred_fallthru
      _
    // Predicated region
    $region22: #{tpu_custom_call.1} parent=1 // pred_check
      _
    $region23: #{tpu_custom_call.1} parent=1 // pred_check_branch
      %56 = sbr.rel (0) target = $region25
    $region24: #{tpu_custom_call.1} parent=1 // pred_region
      %s58 = ssub.s32 768, 768
      %59 = vsyncadd [#allocation9], %s58
      %s60 = sshll.u32 [#allocation10], 4
      %s61 = int_to_ptr.vmem [resolvable:$true] %s60
      %66 = dma.hbm_to_vmem [thread:$0]  %s5, 768, %s61, [#allocation9], 192, 192, 12
    $region25: #{tpu_custom_call.1} parent=1 // pred_fallthru
      _
    // Predicated region
    $region26: #{tpu_custom_call.1} parent=1 // pred_check
      _
    $region27: #{tpu_custom_call.1} parent=1 // pred_check_branch
      %68 = sbr.rel (0) target = $region29
    $region28: #{tpu_custom_call.1} parent=1 // pred_region
      _
    $region29: #{tpu_custom_call.1} parent=1 // pred_fallthru
      _
    // Predicated region
    $region30: #{tpu_custom_call.1} parent=1 // pred_check
      _
    $region31: #{tpu_custom_call.1} parent=1 // pred_check_branch
      %70 = sbr.rel (0) target = $region33
    $region32: #{tpu_custom_call.1} parent=1 // pred_region
      %s72 = ssub.s32 16, 16
      %73 = vsyncadd [#allocation7], %s72
      %76 = dma.hbm_to_smem %s7, 16, [#allocation11], [#allocation7]
    $region33: #{tpu_custom_call.1} parent=1 // pred_fallthru
      _
    // Predicated region
    $region34: #{tpu_custom_call.1} parent=1 // pred_check
      _
    $region35: #{tpu_custom_call.1} parent=1 // pred_check_branch
      %78 = sbr.rel (0) target = $region37
    $region36: #{tpu_custom_call.1} parent=1 // pred_region
      _
    $region37: #{tpu_custom_call.1} parent=1 // pred_fallthru
      _
    // Predicated region
    $region38: #{tpu_custom_call.1} parent=1 // pred_check
      _
    $region39: #{tpu_custom_call.1} parent=1 // pred_check_branch
      %80 = sbr.rel (0) target = $region41
    $region40: #{tpu_custom_call.1} parent=1 // pred_region
      _
    $region41: #{tpu_custom_call.1} parent=1 // pred_fallthru
      _
    // Predicated region
    $region42: #{tpu_custom_call.1} parent=1 // pred_check
      _
    $region43: #{tpu_custom_call.1} parent=1 // pred_check_branch
      %82 = sbr.rel (0) target = $region45
    $region44: #{tpu_custom_call.1} parent=1 // pred_region
      %s84 = ssub.s32 16, 16
      %85 = vsyncadd [#allocation13], %s84
      %s87 = sshll.u32 [#allocation12], 4
      %s88 = int_to_ptr.vmem [resolvable:$true] %s87
      %90 = dma.hbm_to_vmem [thread:$0]  %s10, 16, %s88, [#allocation13]
    $region45: #{tpu_custom_call.1} parent=1 // pred_fallthru
      _
    // Predicated region
    $region46: #{tpu_custom_call.1} parent=1 // pred_check
      _
    $region47: #{tpu_custom_call.1} parent=1 // pred_check_branch
      %92 = sbr.rel (0) target = $region49
    $region48: #{tpu_custom_call.1} parent=1 // pred_region
      _
    $region49: #{tpu_custom_call.1} parent=1 // pred_fallthru
      _
    // Predicated region
    $region50: #{tpu_custom_call.1} parent=1 // pred_check
      _
    $region51: #{tpu_custom_call.1} parent=1 // pred_check_branch
      %94 = sbr.rel (0) target = $region53
    $region52: #{tpu_custom_call.1} parent=1 // pred_region
      _
    $region53: #{tpu_custom_call.1} parent=1 // pred_fallthru
      _
    // Predicated region
    $region54: #{tpu_custom_call.1} parent=1 // pred_check
      _
    $region55: #{tpu_custom_call.1} parent=1 // pred_check_branch
      %96 = sbr.rel (0) target = $region57
    $region56: #{tpu_custom_call.1} parent=1 // pred_region
      _
    $region57: #{tpu_custom_call.1} parent=1 // pred_fallthru
      _
    // Predicated region
    $region58: #{tpu_custom_call.1} parent=1 // pred_check
      _
    $region59: #{tpu_custom_call.1} parent=1 // pred_check_branch
      %98 = sbr.rel (0) target = $region61
    $region60: #{tpu_custom_call.1} parent=1 // pred_region
      _
    $region61: #{tpu_custom_call.1} parent=1 // pred_fallthru
      _
    // Predicated region
    $region62: #{tpu_custom_call.1} parent=1 // pred_check
      _
    $region63: #{tpu_custom_call.1} parent=1 // pred_check_branch
      %100 = sbr.rel (0) target = $region65
    $region64: #{tpu_custom_call.1} parent=1 // pred_region
      _
    $region65: #{tpu_custom_call.1} parent=1 // pred_fallthru
      _
    // Predicated region
    $region66: #{tpu_custom_call.1} parent=1 // pred_check
      _
    $region67: #{tpu_custom_call.1} parent=1 // pred_check_branch
      %102 = sbr.rel (0) target = $region69
    $region68: #{tpu_custom_call.1} parent=1 // pred_region
      %103 = dma.done [#allocation5], 128
    $region69: #{tpu_custom_call.1} parent=1 // pred_fallthru
      _
    // Predicated region
    $region70: #{tpu_custom_call.1} parent=1 // pred_check
      _
    $region71: #{tpu_custom_call.1} parent=1 // pred_check_branch
      %105 = sbr.rel (0) target = $region73
    $region72: #{tpu_custom_call.1} parent=1 // pred_region
      %106 = dma.done [#allocation9], 768
    $region73: #{tpu_custom_call.1} parent=1 // pred_fallthru
      _
    // Predicated region
    $region74: #{tpu_custom_call.1} parent=1 // pred_check
      _
    $region75: #{tpu_custom_call.1} parent=1 // pred_check_branch
      %108 = sbr.rel (0) target = $region77
    $region76: #{tpu_custom_call.1} parent=1 // pred_region
      %109 = dma.done [#allocation9], 768
    $region77: #{tpu_custom_call.1} parent=1 // pred_fallthru
      _
    // Predicated region
    $region78: #{tpu_custom_call.1} parent=1 // pred_check
      _
    $region79: #{tpu_custom_call.1} parent=1 // pred_check_branch
      %111 = sbr.rel (0) target = $region81
    $region80: #{tpu_custom_call.1} parent=1 // pred_region
      %112 = dma.done [#allocation7], 16
    $region81: #{tpu_custom_call.1} parent=1 // pred_fallthru
      _
    // Predicated region
    $region82: #{tpu_custom_call.1} parent=1 // pred_check
      _
    $region83: #{tpu_custom_call.1} parent=1 // pred_check_branch
      %114 = sbr.rel (0) target = $region85
    $region84: #{tpu_custom_call.1} parent=1 // pred_region
      %115 = dma.done [#allocation13], 16
    $region85: #{tpu_custom_call.1} parent=1 // pred_fallthru
      _
    %116 = sfence
    %v118 = vld [vmem:[%s1] sm:$0xff]
    %v119 = vld [vmem:[%s1 + $0x8] sm:$0xff]
    %v120 = vld [vmem:[%s1 + $0x10] sm:$0xff]
    %v121 = vld [vmem:[%s1 + $0x18] sm:$0xff]
    %v122 = vld [vmem:[%s1 + $0x20] sm:$0x1]
    %v123 = vld [vmem:[%s1 + $0x28] sm:$0x1]
    %v124 = vld [vmem:[%s1 + $0x30] sm:$0x1]
    %v125 = vld [vmem:[%s1 + $0x38] sm:$0x1]
    %v126 = vld [vmem:[%s0] sm:$0xff]
    %v127 = vld [vmem:[%s0 + $0x8] sm:$0xff]
    %v128 = vld [vmem:[%s0 + $0x10] sm:$0xff]
    %v129 = vld [vmem:[%s0 + $0x18] sm:$0xff]
    %v130 = vld [vmem:[%s0 + $0x20] sm:$0xff]
    %v131 = vld [vmem:[%s0 + $0x28] sm:$0xff]
    %v132 = vld [vmem:[%s0 + $0x30] sm:$0xff]
    %v133 = vld [vmem:[%s0 + $0x38] sm:$0xff]
    %v134 = vld [vmem:[%s0 + $0x40] sm:$0xff]
    %v135 = vld [vmem:[%s0 + $0x48] sm:$0xff]
    %v136 = vld [vmem:[%s0 + $0x50] sm:$0xff]
    %v137 = vld [vmem:[%s0 + $0x58] sm:$0xff]
    %v138 = vld [vmem:[%s0 + $0x60] sm:$0xff]
    %v139 = vld [vmem:[%s0 + $0x68] sm:$0xff]
    %v140 = vld [vmem:[%s0 + $0x70] sm:$0xff]
    %v141 = vld [vmem:[%s0 + $0x78] sm:$0xff]
    %v142 = vld [vmem:[%s4] sm:$0xff]
    %v143 = vld [vmem:[%s4 + $0x8] sm:$0xff]
    %v144 = vld [vmem:[%s4 + $0x10] sm:$0xff]
    %v145 = vld [vmem:[%s4 + $0x18] sm:$0xff]
    %146 = vrot.lane.b32.xlu0 %v126, 17
    %v147 = vpop.permute.xlu0 %146
    %148 = vrot.lane.b32.xlu0 %v130, 17
    %v149 = vpop.permute.xlu0 %148
    %150 = vrot.lane.b32.xlu0 %v134, 17
    %v151 = vpop.permute.xlu0 %150
    %152 = vrot.lane.b32.xlu0 %v138, 17
    %v153 = vpop.permute.xlu0 %152
    %154 = vrot.lane.b32.xlu0 %v127, 17
    %v155 = vpop.permute.xlu0 %154
    %156 = vrot.lane.b32.xlu0 %v131, 17
    %v157 = vpop.permute.xlu0 %156
    %158 = vrot.lane.b32.xlu0 %v135, 17
    %v159 = vpop.permute.xlu0 %158
    %160 = vrot.lane.b32.xlu0 %v139, 17
    %v161 = vpop.permute.xlu0 %160
    %162 = vrot.lane.b32.xlu0 %v128, 17
    %v163 = vpop.permute.xlu0 %162
    %164 = vrot.lane.b32.xlu0 %v132, 17
    %v165 = vpop.permute.xlu0 %164
    %166 = vrot.lane.b32.xlu0 %v136, 17
    %v167 = vpop.permute.xlu0 %166
    %168 = vrot.lane.b32.xlu0 %v140, 17
    %v169 = vpop.permute.xlu0 %168
    %170 = vrot.lane.b32.xlu0 %v129, 17
    %v171 = vpop.permute.xlu0 %170
    %172 = vrot.lane.b32.xlu0 %v133, 17
    %v173 = vpop.permute.xlu0 %172
    %174 = vrot.lane.b32.xlu0 %v137, 17
    %v175 = vpop.permute.xlu0 %174
    %176 = vrot.lane.b32.xlu0 %v141, 17
    %v177 = vpop.permute.xlu0 %176
    %v178 = vlaneseq
    %v179 = vand.u32 %v178, 127
    %vm180 = vcmp.lt.s32.totalorder %v179, 17
    %v181 = vsel %vm180, %v163, %v171
    %v182 = vsel %vm180, %v165, %v173
    %v183 = vsel %vm180, %v167, %v175
    %v184 = vsel %vm180, %v169, %v177
    %v185 = vsel %vm180, %v155, %v163
    %v186 = vsel %vm180, %v157, %v165
    %v187 = vsel %vm180, %v159, %v167
    %v188 = vsel %vm180, %v161, %v169
    %v189 = vsel %vm180, %v147, %v155
    %v190 = vsel %vm180, %v149, %v157
    %v191 = vsel %vm180, %v151, %v159
    %v192 = vsel %vm180, %v153, %v161
    %v193 = vsel %vm180, %v171, %v147
    %v194 = vsel %vm180, %v173, %v149
    %v195 = vsel %vm180, %v175, %v151
    %v196 = vsel %vm180, %v177, %v153
    %v197 = vlaneseq
    %v198 = vshrl.u32 %v197, 7
    %v199 = vsub.s32 0, %v198
    %v200 = vrot.slane %v118, %v199
    %v201 = vlaneseq
    %v202 = vshrl.u32 %v201, 7
    %v203 = vsub.s32 0, %v202
    %v204 = vrot.slane %v119, %v203
    %v205 = vlaneseq
    %v206 = vshrl.u32 %v205, 7
    %v207 = vsub.s32 0, %v206
    %v208 = vrot.slane %v120, %v207
    %v209 = vlaneseq
    %v210 = vshrl.u32 %v209, 7
    %v211 = vsub.s32 0, %v210
    %v212 = vrot.slane %v121, %v211
    %v213 = vmul.f32 %v193, %v200
    %v214 = vmul.f32 %v189, %v204
    %v215 = vmul.f32 %v185, %v208
    %v216 = vmul.f32 %v181, %v212
    %v217 = vmul.f32 %v194, %v200
    %v218 = vmul.f32 %v190, %v204
    %v219 = vmul.f32 %v186, %v208
    %v220 = vmul.f32 %v182, %v212
    %v221 = vmul.f32 %v195, %v200
    %v222 = vmul.f32 %v191, %v204
    %v223 = vmul.f32 %v187, %v208
    %v224 = vmul.f32 %v183, %v212
    %v225 = vmul.f32 %v196, %v200
    %v226 = vmul.f32 %v192, %v204
    %v227 = vmul.f32 %v188, %v208
    %v228 = vmul.f32 %v184, %v212
    %v229 = vpack.c.bf16 %v217, %v213
    %v230 = vpack.c.bf16 %v218, %v214
    %v231 = vpack.c.bf16 %v219, %v215
    %v232 = vpack.c.bf16 %v220, %v216
    %v233 = vpack.c.bf16 %v225, %v221
    %v234 = vpack.c.bf16 %v226, %v222
    %v235 = vpack.c.bf16 %v227, %v223
    %v236 = vpack.c.bf16 %v228, %v224
    %v245 = vunpack.c.l.b16 %v229
    %v246 = vunpack.c.l.b16 %v230
    %v247 = vunpack.c.l.b16 %v231
    %v248 = vunpack.c.l.b16 %v232
    %v249 = vunpack.c.h.b16 %v229
    %v250 = vunpack.c.h.b16 %v230
    %v251 = vunpack.c.h.b16 %v231
    %v252 = vunpack.c.h.b16 %v232
    %v253 = vunpack.c.l.b16 %v233
    %v254 = vunpack.c.l.b16 %v234
    %v255 = vunpack.c.l.b16 %v235
    %v256 = vunpack.c.l.b16 %v236
    %v257 = vunpack.c.h.b16 %v233
    %v258 = vunpack.c.h.b16 %v234
    %v259 = vunpack.c.h.b16 %v235
    %v260 = vunpack.c.h.b16 %v236
    %v261 = vpack.c.b16 %v246, %v245
    %v262 = vpack.c.b16 %v248, %v247
    %v263 = vpack.c.b16 %v250, %v249
    %v264 = vpack.c.b16 %v252, %v251
    %v265 = vpack.c.b16 %v254, %v253
    %v266 = vpack.c.b16 %v256, %v255
    %v267 = vpack.c.b16 %v258, %v257
    %v268 = vpack.c.b16 %v260, %v259
    %277 = vst [vmem:[#allocation2] sm:$0xff] %v261
    %278 = vst [vmem:[#allocation2 + $0x8] sm:$0xff] %v262
    %279 = vst [vmem:[#allocation2 + $0x10] sm:$0xff] %v263
    %280 = vst [vmem:[#allocation2 + $0x18] sm:$0xff] %v264
    %281 = vst [vmem:[#allocation2 + $0x20] sm:$0xff] %v265
    %282 = vst [vmem:[#allocation2 + $0x28] sm:$0xff] %v266
    %283 = vst [vmem:[#allocation2 + $0x30] sm:$0xff] %v267
    %284 = vst [vmem:[#allocation2 + $0x38] sm:$0xff] %v268
    %285 = vrot.lane.b32.xlu0 %v126, 16
    %v286 = vpop.permute.xlu0 %285
    %287 = vrot.lane.b32.xlu0 %v130, 16
    %v288 = vpop.permute.xlu0 %287
    %289 = vrot.lane.b32.xlu0 %v134, 16
    %v290 = vpop.permute.xlu0 %289
    %291 = vrot.lane.b32.xlu0 %v138, 16
    %v292 = vpop.permute.xlu0 %291
    %293 = vrot.lane.b32.xlu0 %v127, 16
    %v294 = vpop.permute.xlu0 %293
    %295 = vrot.lane.b32.xlu0 %v131, 16
    %v296 = vpop.permute.xlu0 %295
    %297 = vrot.lane.b32.xlu0 %v135, 16
    %v298 = vpop.permute.xlu0 %297
    %299 = vrot.lane.b32.xlu0 %v139, 16
    %v300 = vpop.permute.xlu0 %299
    %301 = vrot.lane.b32.xlu0 %v128, 16
    %v302 = vpop.permute.xlu0 %301
    %303 = vrot.lane.b32.xlu0 %v132, 16
    %v304 = vpop.permute.xlu0 %303
    %305 = vrot.lane.b32.xlu0 %v136, 16
    %v306 = vpop.permute.xlu0 %305
    %307 = vrot.lane.b32.xlu0 %v140, 16
    %v308 = vpop.permute.xlu0 %307
    %309 = vrot.lane.b32.xlu0 %v129, 16
    %v310 = vpop.permute.xlu0 %309
    %311 = vrot.lane.b32.xlu0 %v133, 16
    %v312 = vpop.permute.xlu0 %311
    %313 = vrot.lane.b32.xlu0 %v137, 16
    %v314 = vpop.permute.xlu0 %313
    %315 = vrot.lane.b32.xlu0 %v141, 16
    %v316 = vpop.permute.xlu0 %315
    %vm317 = vcmp.lt.s32.totalorder %v179, 16
    %v318 = vsel %vm317, %v302, %v310
    %v319 = vsel %vm317, %v304, %v312
    %v320 = vsel %vm317, %v306, %v314
    %v321 = vsel %vm317, %v308, %v316
    %v322 = vsel %vm317, %v294, %v302
    %v323 = vsel %vm317, %v296, %v304
    %v324 = vsel %vm317, %v298, %v306
    %v325 = vsel %vm317, %v300, %v308
    %v326 = vsel %vm317, %v286, %v294
    %v327 = vsel %vm317, %v288, %v296
    %v328 = vsel %vm317, %v290, %v298
    %v329 = vsel %vm317, %v292, %v300
    %v330 = vsel %vm317, %v310, %v286
    %v331 = vsel %vm317, %v312, %v288
    %v332 = vsel %vm317, %v314, %v290
    %v333 = vsel %vm317, %v316, %v292
    %v334 = vlaneseq
    %v335 = vshrl.u32 %v334, 7
    %v336 = vsub.s32 1, %v335
    %v337 = vrot.slane %v118, %v336
    %v338 = vlaneseq
    %v339 = vshrl.u32 %v338, 7
    %v340 = vsub.s32 1, %v339
    %v341 = vrot.slane %v119, %v340
    %v342 = vlaneseq
    %v343 = vshrl.u32 %v342, 7
    %v344 = vsub.s32 1, %v343
    %v345 = vrot.slane %v120, %v344
    %v346 = vlaneseq
    %v347 = vshrl.u32 %v346, 7
    %v348 = vsub.s32 1, %v347
    %v349 = vrot.slane %v121, %v348
    %v350 = vmul.f32 %v330, %v337
    %v351 = vmul.f32 %v326, %v341
    %v352 = vmul.f32 %v322, %v345
    %v353 = vmul.f32 %v318, %v349
    %v354 = vmul.f32 %v331, %v337
    %v355 = vmul.f32 %v327, %v341
    %v356 = vmul.f32 %v323, %v345
    %v357 = vmul.f32 %v319, %v349
    %v358 = vmul.f32 %v332, %v337
    %v359 = vmul.f32 %v328, %v341
    %v360 = vmul.f32 %v324, %v345
    %v361 = vmul.f32 %v320, %v349
    %v362 = vmul.f32 %v333, %v337
    %v363 = vmul.f32 %v329, %v341
    %v364 = vmul.f32 %v325, %v345
    %v365 = vmul.f32 %v321, %v349
    %v366 = vpack.c.bf16 %v354, %v350
    %v367 = vpack.c.bf16 %v355, %v351
    %v368 = vpack.c.bf16 %v356, %v352
    %v369 = vpack.c.bf16 %v357, %v353
    %v370 = vpack.c.bf16 %v362, %v358
    %v371 = vpack.c.bf16 %v363, %v359
    %v372 = vpack.c.bf16 %v364, %v360
    %v373 = vpack.c.bf16 %v365, %v361
    %v382 = vunpack.c.l.b16 %v366
    %v383 = vunpack.c.l.b16 %v367
    %v384 = vunpack.c.l.b16 %v368
    %v385 = vunpack.c.l.b16 %v369
    %v386 = vunpack.c.h.b16 %v366
    %v387 = vunpack.c.h.b16 %v367
    %v388 = vunpack.c.h.b16 %v368
    %v389 = vunpack.c.h.b16 %v369
    %v390 = vunpack.c.l.b16 %v370
    %v391 = vunpack.c.l.b16 %v371
    %v392 = vunpack.c.l.b16 %v372
    %v393 = vunpack.c.l.b16 %v373
    %v394 = vunpack.c.h.b16 %v370
    %v395 = vunpack.c.h.b16 %v371
    %v396 = vunpack.c.h.b16 %v372
    %v397 = vunpack.c.h.b16 %v373
    %v398 = vpack.c.b16 %v383, %v382
    %v399 = vpack.c.b16 %v385, %v384
    %v400 = vpack.c.b16 %v387, %v386
    %v401 = vpack.c.b16 %v389, %v388
    %v402 = vpack.c.b16 %v391, %v390
    %v403 = vpack.c.b16 %v393, %v392
    %v404 = vpack.c.b16 %v395, %v394
    %v405 = vpack.c.b16 %v397, %v396
    %414 = vst [vmem:[#allocation2 + $0x40] sm:$0xff] %v398
    %415 = vst [vmem:[#allocation2 + $0x48] sm:$0xff] %v399
    %416 = vst [vmem:[#allocation2 + $0x50] sm:$0xff] %v400
    %417 = vst [vmem:[#allocation2 + $0x58] sm:$0xff] %v401
    %418 = vst [vmem:[#allocation2 + $0x60] sm:$0xff] %v402
    %419 = vst [vmem:[#allocation2 + $0x68] sm:$0xff] %v403
    %420 = vst [vmem:[#allocation2 + $0x70] sm:$0xff] %v404
    %421 = vst [vmem:[#allocation2 + $0x78] sm:$0xff] %v405
    %422 = vrot.lane.b32.xlu0 %v126, 15
    %v423 = vpop.permute.xlu0 %422
    %424 = vrot.lane.b32.xlu0 %v130, 15
    %v425 = vpop.permute.xlu0 %424
    %426 = vrot.lane.b32.xlu0 %v134, 15
    %v427 = vpop.permute.xlu0 %426
    %428 = vrot.lane.b32.xlu0 %v138, 15
    %v429 = vpop.permute.xlu0 %428
    %430 = vrot.lane.b32.xlu0 %v127, 15
    %v431 = vpop.permute.xlu0 %430
    %432 = vrot.lane.b32.xlu0 %v131, 15
    %v433 = vpop.permute.xlu0 %432
    %434 = vrot.lane.b32.xlu0 %v135, 15
    %v435 = vpop.permute.xlu0 %434
    %436 = vrot.lane.b32.xlu0 %v139, 15
    %v437 = vpop.permute.xlu0 %436
    %438 = vrot.lane.b32.xlu0 %v128, 15
    %v439 = vpop.permute.xlu0 %438
    %440 = vrot.lane.b32.xlu0 %v132, 15
    %v441 = vpop.permute.xlu0 %440
    %442 = vrot.lane.b32.xlu0 %v136, 15
    %v443 = vpop.permute.xlu0 %442
    %444 = vrot.lane.b32.xlu0 %v140, 15
    %v445 = vpop.permute.xlu0 %444
    %446 = vrot.lane.b32.xlu0 %v129, 15
    %v447 = vpop.permute.xlu0 %446
    %448 = vrot.lane.b32.xlu0 %v133, 15
    %v449 = vpop.permute.xlu0 %448
    %450 = vrot.lane.b32.xlu0 %v137, 15
    %v451 = vpop.permute.xlu0 %450
    %452 = vrot.lane.b32.xlu0 %v141, 15
    %v453 = vpop.permute.xlu0 %452
    %vm454 = vcmp.lt.s32.totalorder %v179, 15
    %v455 = vsel %vm454, %v439, %v447
    %v456 = vsel %vm454, %v441, %v449
    %v457 = vsel %vm454, %v443, %v451
    %v458 = vsel %vm454, %v445, %v453
    %v459 = vsel %vm454, %v431, %v439
    %v460 = vsel %vm454, %v433, %v441
    %v461 = vsel %vm454, %v435, %v443
    %v462 = vsel %vm454, %v437, %v445
    %v463 = vsel %vm454, %v423, %v431
    %v464 = vsel %vm454, %v425, %v433
    %v465 = vsel %vm454, %v427, %v435
    %v466 = vsel %vm454, %v429, %v437
    %v467 = vsel %vm454, %v447, %v423
    %v468 = vsel %vm454, %v449, %v425
    %v469 = vsel %vm454, %v451, %v427
    %v470 = vsel %vm454, %v453, %v429
    %v471 = vlaneseq
    %v472 = vshrl.u32 %v471, 7
    %v473 = vsub.s32 2, %v472
    %v474 = vrot.slane %v118, %v473
    %v475 = vlaneseq
    %v476 = vshrl.u32 %v475, 7
    %v477 = vsub.s32 2, %v476
    %v478 = vrot.slane %v119, %v477
    %v479 = vlaneseq
    %v480 = vshrl.u32 %v479, 7
    %v481 = vsub.s32 2, %v480
    %v482 = vrot.slane %v120, %v481
    %v483 = vlaneseq
    %v484 = vshrl.u32 %v483, 7
    %v485 = vsub.s32 2, %v484
    %v486 = vrot.slane %v121, %v485
    %v487 = vmul.f32 %v467, %v474
    %v488 = vmul.f32 %v463, %v478
    %v489 = vmul.f32 %v459, %v482
    %v490 = vmul.f32 %v455, %v486
    %v491 = vmul.f32 %v468, %v474
    %v492 = vmul.f32 %v464, %v478
    %v493 = vmul.f32 %v460, %v482
    %v494 = vmul.f32 %v456, %v486
    %v495 = vmul.f32 %v469, %v474
    %v496 = vmul.f32 %v465, %v478
    %v497 = vmul.f32 %v461, %v482
    %v498 = vmul.f32 %v457, %v486
    %v499 = vmul.f32 %v470, %v474
    %v500 = vmul.f32 %v466, %v478
    %v501 = vmul.f32 %v462, %v482
    %v502 = vmul.f32 %v458, %v486
    %v503 = vpack.c.bf16 %v491, %v487
    %v504 = vpack.c.bf16 %v492, %v488
    %v505 = vpack.c.bf16 %v493, %v489
    %v506 = vpack.c.bf16 %v494, %v490
    %v507 = vpack.c.bf16 %v499, %v495
    %v508 = vpack.c.bf16 %v500, %v496
    %v509 = vpack.c.bf16 %v501, %v497
    %v510 = vpack.c.bf16 %v502, %v498
    %v519 = vunpack.c.l.b16 %v503
    %v520 = vunpack.c.l.b16 %v504
    %v521 = vunpack.c.l.b16 %v505
    %v522 = vunpack.c.l.b16 %v506
    %v523 = vunpack.c.h.b16 %v503
    %v524 = vunpack.c.h.b16 %v504
    %v525 = vunpack.c.h.b16 %v505
    %v526 = vunpack.c.h.b16 %v506
    %v527 = vunpack.c.l.b16 %v507
    %v528 = vunpack.c.l.b16 %v508
    %v529 = vunpack.c.l.b16 %v509
    %v530 = vunpack.c.l.b16 %v510
    %v531 = vunpack.c.h.b16 %v507
    %v532 = vunpack.c.h.b16 %v508
    %v533 = vunpack.c.h.b16 %v509
    %v534 = vunpack.c.h.b16 %v510
    %v535 = vpack.c.b16 %v520, %v519
    %v536 = vpack.c.b16 %v522, %v521
    %v537 = vpack.c.b16 %v524, %v523
    %v538 = vpack.c.b16 %v526, %v525
    %v539 = vpack.c.b16 %v528, %v527
    %v540 = vpack.c.b16 %v530, %v529
    %v541 = vpack.c.b16 %v532, %v531
    %v542 = vpack.c.b16 %v534, %v533
    %551 = vst [vmem:[#allocation2 + $0x80] sm:$0xff] %v535
    %552 = vst [vmem:[#allocation2 + $0x88] sm:$0xff] %v536
    %553 = vst [vmem:[#allocation2 + $0x90] sm:$0xff] %v537
    %554 = vst [vmem:[#allocation2 + $0x98] sm:$0xff] %v538
    %555 = vst [vmem:[#allocation2 + $0xa0] sm:$0xff] %v539
    %556 = vst [vmem:[#allocation2 + $0xa8] sm:$0xff] %v540
    %557 = vst [vmem:[#allocation2 + $0xb0] sm:$0xff] %v541
    %558 = vst [vmem:[#allocation2 + $0xb8] sm:$0xff] %v542
    %559 = vrot.lane.b32.xlu0 %v126, 1
    %v560 = vpop.permute.xlu0 %559
    %561 = vrot.lane.b32.xlu0 %v130, 1
    %v562 = vpop.permute.xlu0 %561
    %563 = vrot.lane.b32.xlu0 %v134, 1
    %v564 = vpop.permute.xlu0 %563
    %565 = vrot.lane.b32.xlu0 %v138, 1
    %v566 = vpop.permute.xlu0 %565
    %567 = vrot.lane.b32.xlu0 %v127, 1
    %v568 = vpop.permute.xlu0 %567
    %569 = vrot.lane.b32.xlu0 %v131, 1
    %v570 = vpop.permute.xlu0 %569
    %571 = vrot.lane.b32.xlu0 %v135, 1
    %v572 = vpop.permute.xlu0 %571
    %573 = vrot.lane.b32.xlu0 %v139, 1
    %v574 = vpop.permute.xlu0 %573
    %575 = vrot.lane.b32.xlu0 %v128, 1
    %v576 = vpop.permute.xlu0 %575
    %577 = vrot.lane.b32.xlu0 %v132, 1
    %v578 = vpop.permute.xlu0 %577
    %579 = vrot.lane.b32.xlu0 %v136, 1
    %v580 = vpop.permute.xlu0 %579
    %581 = vrot.lane.b32.xlu0 %v140, 1
    %v582 = vpop.permute.xlu0 %581
    %583 = vrot.lane.b32.xlu0 %v129, 1
    %v584 = vpop.permute.xlu0 %583
    %585 = vrot.lane.b32.xlu0 %v133, 1
    %v586 = vpop.permute.xlu0 %585
    %587 = vrot.lane.b32.xlu0 %v137, 1
    %v588 = vpop.permute.xlu0 %587
    %589 = vrot.lane.b32.xlu0 %v141, 1
    %v590 = vpop.permute.xlu0 %589
    %vm591 = vcmp.lt.s32.totalorder %v179, 1
    %v592 = vsel %vm591, %v576, %v584
    %v593 = vsel %vm591, %v578, %v586
    %v594 = vsel %vm591, %v580, %v588
    %v595 = vsel %vm591, %v582, %v590
    %v596 = vsel %vm591, %v568, %v576
    %v597 = vsel %vm591, %v570, %v578
    %v598 = vsel %vm591, %v572, %v580
    %v599 = vsel %vm591, %v574, %v582
    %v600 = vsel %vm591, %v560, %v568
    %v601 = vsel %vm591, %v562, %v570
    %v602 = vsel %vm591, %v564, %v572
    %v603 = vsel %vm591, %v566, %v574
    %v604 = vsel %vm591, %v584, %v560
    %v605 = vsel %vm591, %v586, %v562
    %v606 = vsel %vm591, %v588, %v564
    %v607 = vsel %vm591, %v590, %v566
    %v608 = vlaneseq
    %v609 = vshrl.u32 %v608, 7
    %v610 = vsub.s32 3, %v609
    %v611 = vrot.slane %v118, %v610
    %v612 = vlaneseq
    %v613 = vshrl.u32 %v612, 7
    %v614 = vsub.s32 3, %v613
    %v615 = vrot.slane %v119, %v614
    %v616 = vlaneseq
    %v617 = vshrl.u32 %v616, 7
    %v618 = vsub.s32 3, %v617
    %v619 = vrot.slane %v120, %v618
    %v620 = vlaneseq
    %v621 = vshrl.u32 %v620, 7
    %v622 = vsub.s32 3, %v621
    %v623 = vrot.slane %v121, %v622
    %v624 = vmul.f32 %v604, %v611
    %v625 = vmul.f32 %v600, %v615
    %v626 = vmul.f32 %v596, %v619
    %v627 = vmul.f32 %v592, %v623
    %v628 = vmul.f32 %v605, %v611
    %v629 = vmul.f32 %v601, %v615
    %v630 = vmul.f32 %v597, %v619
    %v631 = vmul.f32 %v593, %v623
    %v632 = vmul.f32 %v606, %v611
    %v633 = vmul.f32 %v602, %v615
    %v634 = vmul.f32 %v598, %v619
    %v635 = vmul.f32 %v594, %v623
    %v636 = vmul.f32 %v607, %v611
    %v637 = vmul.f32 %v603, %v615
    %v638 = vmul.f32 %v599, %v619
    %v639 = vmul.f32 %v595, %v623
    %v640 = vpack.c.bf16 %v628, %v624
    %v641 = vpack.c.bf16 %v629, %v625
    %v642 = vpack.c.bf16 %v630, %v626
    %v643 = vpack.c.bf16 %v631, %v627
    %v644 = vpack.c.bf16 %v636, %v632
    %v645 = vpack.c.bf16 %v637, %v633
    %v646 = vpack.c.bf16 %v638, %v634
    %v647 = vpack.c.bf16 %v639, %v635
    %v656 = vunpack.c.l.b16 %v640
    %v657 = vunpack.c.l.b16 %v641
    %v658 = vunpack.c.l.b16 %v642
    %v659 = vunpack.c.l.b16 %v643
    %v660 = vunpack.c.h.b16 %v640
    %v661 = vunpack.c.h.b16 %v641
    %v662 = vunpack.c.h.b16 %v642
    %v663 = vunpack.c.h.b16 %v643
    %v664 = vunpack.c.l.b16 %v644
    %v665 = vunpack.c.l.b16 %v645
    %v666 = vunpack.c.l.b16 %v646
    %v667 = vunpack.c.l.b16 %v647
    %v668 = vunpack.c.h.b16 %v644
    %v669 = vunpack.c.h.b16 %v645
    %v670 = vunpack.c.h.b16 %v646
    %v671 = vunpack.c.h.b16 %v647
    %v672 = vpack.c.b16 %v657, %v656
    %v673 = vpack.c.b16 %v659, %v658
    %v674 = vpack.c.b16 %v661, %v660
    %v675 = vpack.c.b16 %v663, %v662
    %v676 = vpack.c.b16 %v665, %v664
    %v677 = vpack.c.b16 %v667, %v666
    %v678 = vpack.c.b16 %v669, %v668
    %v679 = vpack.c.b16 %v671, %v670
    %688 = vst [vmem:[#allocation2 + $0xc0] sm:$0xff] %v672
    %689 = vst [vmem:[#allocation2 + $0xc8] sm:$0xff] %v673
    %690 = vst [vmem:[#allocation2 + $0xd0] sm:$0xff] %v674
    %691 = vst [vmem:[#allocation2 + $0xd8] sm:$0xff] %v675
    %692 = vst [vmem:[#allocation2 + $0xe0] sm:$0xff] %v676
    %693 = vst [vmem:[#allocation2 + $0xe8] sm:$0xff] %v677
    %694 = vst [vmem:[#allocation2 + $0xf0] sm:$0xff] %v678
    %695 = vst [vmem:[#allocation2 + $0xf8] sm:$0xff] %v679
    %v696 = vpack.c.bf16 %v130, %v126
    %v697 = vpack.c.bf16 %v131, %v127
    %v698 = vpack.c.bf16 %v132, %v128
    %v699 = vpack.c.bf16 %v133, %v129
    %v700 = vpack.c.bf16 %v138, %v134
    %v701 = vpack.c.bf16 %v139, %v135
    %v702 = vpack.c.bf16 %v140, %v136
    %v703 = vpack.c.bf16 %v141, %v137
    %v712 = vunpack.c.l.b16 %v696
    %v713 = vunpack.c.l.b16 %v697
    %v714 = vunpack.c.l.b16 %v698
    %v715 = vunpack.c.l.b16 %v699
    %v716 = vunpack.c.h.b16 %v696
    %v717 = vunpack.c.h.b16 %v697
    %v718 = vunpack.c.h.b16 %v698
    %v719 = vunpack.c.h.b16 %v699
    %v720 = vunpack.c.l.b16 %v700
    %v721 = vunpack.c.l.b16 %v701
    %v722 = vunpack.c.l.b16 %v702
    %v723 = vunpack.c.l.b16 %v703
    %v724 = vunpack.c.h.b16 %v700
    %v725 = vunpack.c.h.b16 %v701
    %v726 = vunpack.c.h.b16 %v702
    %v727 = vunpack.c.h.b16 %v703
    %v728 = vpack.c.b16 %v713, %v712
    %v729 = vpack.c.b16 %v715, %v714
    %v730 = vpack.c.b16 %v717, %v716
    %v731 = vpack.c.b16 %v719, %v718
    %v732 = vpack.c.b16 %v721, %v720
    %v733 = vpack.c.b16 %v723, %v722
    %v734 = vpack.c.b16 %v725, %v724
    %v735 = vpack.c.b16 %v727, %v726
    %744 = vst [vmem:[#allocation2 + $0x100] sm:$0xff] %v728
    %745 = vst [vmem:[#allocation2 + $0x108] sm:$0xff] %v729
    %746 = vst [vmem:[#allocation2 + $0x110] sm:$0xff] %v730
    %747 = vst [vmem:[#allocation2 + $0x118] sm:$0xff] %v731
    %748 = vst [vmem:[#allocation2 + $0x120] sm:$0xff] %v732
    %749 = vst [vmem:[#allocation2 + $0x128] sm:$0xff] %v733
    %750 = vst [vmem:[#allocation2 + $0x130] sm:$0xff] %v734
    %751 = vst [vmem:[#allocation2 + $0x138] sm:$0xff] %v735
    %752 = vrot.lane.b32.xlu0 %v126, 127
    %v753 = vpop.permute.xlu0 %752
    %754 = vrot.lane.b32.xlu0 %v130, 127
    %v755 = vpop.permute.xlu0 %754
    %756 = vrot.lane.b32.xlu0 %v134, 127
    %v757 = vpop.permute.xlu0 %756
    %758 = vrot.lane.b32.xlu0 %v138, 127
    %v759 = vpop.permute.xlu0 %758
    %760 = vrot.lane.b32.xlu0 %v127, 127
    %v761 = vpop.permute.xlu0 %760
    %762 = vrot.lane.b32.xlu0 %v131, 127
    %v763 = vpop.permute.xlu0 %762
    %764 = vrot.lane.b32.xlu0 %v135, 127
    %v765 = vpop.permute.xlu0 %764
    %766 = vrot.lane.b32.xlu0 %v139, 127
    %v767 = vpop.permute.xlu0 %766
    %768 = vrot.lane.b32.xlu0 %v128, 127
    %v769 = vpop.permute.xlu0 %768
    %770 = vrot.lane.b32.xlu0 %v132, 127
    %v771 = vpop.permute.xlu0 %770
    %772 = vrot.lane.b32.xlu0 %v136, 127
    %v773 = vpop.permute.xlu0 %772
    %774 = vrot.lane.b32.xlu0 %v140, 127
    %v775 = vpop.permute.xlu0 %774
    %776 = vrot.lane.b32.xlu0 %v129, 127
    %v777 = vpop.permute.xlu0 %776
    %778 = vrot.lane.b32.xlu0 %v133, 127
    %v779 = vpop.permute.xlu0 %778
    %780 = vrot.lane.b32.xlu0 %v137, 127
    %v781 = vpop.permute.xlu0 %780
    %782 = vrot.lane.b32.xlu0 %v141, 127
    %v783 = vpop.permute.xlu0 %782
    %vm784 = vcmp.lt.s32.totalorder %v179, 127
    %v785 = vsel %vm784, %v769, %v777
    %v786 = vsel %vm784, %v771, %v779
    %v787 = vsel %vm784, %v773, %v781
    %v788 = vsel %vm784, %v775, %v783
    %v789 = vsel %vm784, %v761, %v769
    %v790 = vsel %vm784, %v763, %v771
    %v791 = vsel %vm784, %v765, %v773
    %v792 = vsel %vm784, %v767, %v775
    %v793 = vsel %vm784, %v753, %v761
    %v794 = vsel %vm784, %v755, %v763
    %v795 = vsel %vm784, %v757, %v765
    %v796 = vsel %vm784, %v759, %v767
    %v797 = vsel %vm784, %v777, %v753
    %v798 = vsel %vm784, %v779, %v755
    %v799 = vsel %vm784, %v781, %v757
    %v800 = vsel %vm784, %v783, %v759
    %v801 = vlaneseq
    %v802 = vshrl.u32 %v801, 7
    %v803 = vsub.s32 5, %v802
    %v804 = vrot.slane %v118, %v803
    %v805 = vlaneseq
    %v806 = vshrl.u32 %v805, 7
    %v807 = vsub.s32 5, %v806
    %v808 = vrot.slane %v119, %v807
    %v809 = vlaneseq
    %v810 = vshrl.u32 %v809, 7
    %v811 = vsub.s32 5, %v810
    %v812 = vrot.slane %v120, %v811
    %v813 = vlaneseq
    %v814 = vshrl.u32 %v813, 7
    %v815 = vsub.s32 5, %v814
    %v816 = vrot.slane %v121, %v815
    %v817 = vmul.f32 %v793, %v804
    %v818 = vmul.f32 %v789, %v808
    %v819 = vmul.f32 %v785, %v812
    %v820 = vmul.f32 %v797, %v816
    %v821 = vmul.f32 %v794, %v804
    %v822 = vmul.f32 %v790, %v808
    %v823 = vmul.f32 %v786, %v812
    %v824 = vmul.f32 %v798, %v816
    %v825 = vmul.f32 %v795, %v804
    %v826 = vmul.f32 %v791, %v808
    %v827 = vmul.f32 %v787, %v812
    %v828 = vmul.f32 %v799, %v816
    %v829 = vmul.f32 %v796, %v804
    %v830 = vmul.f32 %v792, %v808
    %v831 = vmul.f32 %v788, %v812
    %v832 = vmul.f32 %v800, %v816
    %v833 = vpack.c.bf16 %v821, %v817
    %v834 = vpack.c.bf16 %v822, %v818
    %v835 = vpack.c.bf16 %v823, %v819
    %v836 = vpack.c.bf16 %v824, %v820
    %v837 = vpack.c.bf16 %v829, %v825
    %v838 = vpack.c.bf16 %v830, %v826
    %v839 = vpack.c.bf16 %v831, %v827
    %v840 = vpack.c.bf16 %v832, %v828
    %v849 = vunpack.c.l.b16 %v833
    %v850 = vunpack.c.l.b16 %v834
    %v851 = vunpack.c.l.b16 %v835
    %v852 = vunpack.c.l.b16 %v836
    %v853 = vunpack.c.h.b16 %v833
    %v854 = vunpack.c.h.b16 %v834
    %v855 = vunpack.c.h.b16 %v835
    %v856 = vunpack.c.h.b16 %v836
    %v857 = vunpack.c.l.b16 %v837
    %v858 = vunpack.c.l.b16 %v838
    %v859 = vunpack.c.l.b16 %v839
    %v860 = vunpack.c.l.b16 %v840
    %v861 = vunpack.c.h.b16 %v837
    %v862 = vunpack.c.h.b16 %v838
    %v863 = vunpack.c.h.b16 %v839
    %v864 = vunpack.c.h.b16 %v840
    %v865 = vpack.c.b16 %v850, %v849
    %v866 = vpack.c.b16 %v852, %v851
    %v867 = vpack.c.b16 %v854, %v853
    %v868 = vpack.c.b16 %v856, %v855
    %v869 = vpack.c.b16 %v858, %v857
    %v870 = vpack.c.b16 %v860, %v859
    %v871 = vpack.c.b16 %v862, %v861
    %v872 = vpack.c.b16 %v864, %v863
    %881 = vst [vmem:[#allocation2 + $0x140] sm:$0xff] %v865
    %882 = vst [vmem:[#allocation2 + $0x148] sm:$0xff] %v866
    %883 = vst [vmem:[#allocation2 + $0x150] sm:$0xff] %v867
    %884 = vst [vmem:[#allocation2 + $0x158] sm:$0xff] %v868
    %885 = vst [vmem:[#allocation2 + $0x160] sm:$0xff] %v869
    %886 = vst [vmem:[#allocation2 + $0x168] sm:$0xff] %v870
    %887 = vst [vmem:[#allocation2 + $0x170] sm:$0xff] %v871
    %888 = vst [vmem:[#allocation2 + $0x178] sm:$0xff] %v872
    %889 = vrot.lane.b32.xlu0 %v126, 113
    %v890 = vpop.permute.xlu0 %889
    %891 = vrot.lane.b32.xlu0 %v130, 113
    %v892 = vpop.permute.xlu0 %891
    %893 = vrot.lane.b32.xlu0 %v134, 113
    %v894 = vpop.permute.xlu0 %893
    %895 = vrot.lane.b32.xlu0 %v138, 113
    %v896 = vpop.permute.xlu0 %895
    %897 = vrot.lane.b32.xlu0 %v127, 113
    %v898 = vpop.permute.xlu0 %897
    %899 = vrot.lane.b32.xlu0 %v131, 113
    %v900 = vpop.permute.xlu0 %899
    %901 = vrot.lane.b32.xlu0 %v135, 113
    %v902 = vpop.permute.xlu0 %901
    %903 = vrot.lane.b32.xlu0 %v139, 113
    %v904 = vpop.permute.xlu0 %903
    %905 = vrot.lane.b32.xlu0 %v128, 113
    %v906 = vpop.permute.xlu0 %905
    %907 = vrot.lane.b32.xlu0 %v132, 113
    %v908 = vpop.permute.xlu0 %907
    %909 = vrot.lane.b32.xlu0 %v136, 113
    %v910 = vpop.permute.xlu0 %909
    %911 = vrot.lane.b32.xlu0 %v140, 113
    %v912 = vpop.permute.xlu0 %911
    %913 = vrot.lane.b32.xlu0 %v129, 113
    %v914 = vpop.permute.xlu0 %913
    %915 = vrot.lane.b32.xlu0 %v133, 113
    %v916 = vpop.permute.xlu0 %915
    %917 = vrot.lane.b32.xlu0 %v137, 113
    %v918 = vpop.permute.xlu0 %917
    %919 = vrot.lane.b32.xlu0 %v141, 113
    %v920 = vpop.permute.xlu0 %919
    %vm921 = vcmp.lt.s32.totalorder %v179, 113
    %v922 = vsel %vm921, %v906, %v914
    %v923 = vsel %vm921, %v908, %v916
    %v924 = vsel %vm921, %v910, %v918
    %v925 = vsel %vm921, %v912, %v920
    %v926 = vsel %vm921, %v898, %v906
    %v927 = vsel %vm921, %v900, %v908
    %v928 = vsel %vm921, %v902, %v910
    %v929 = vsel %vm921, %v904, %v912
    %v930 = vsel %vm921, %v890, %v898
    %v931 = vsel %vm921, %v892, %v900
    %v932 = vsel %vm921, %v894, %v902
    %v933 = vsel %vm921, %v896, %v904
    %v934 = vsel %vm921, %v914, %v890
    %v935 = vsel %vm921, %v916, %v892
    %v936 = vsel %vm921, %v918, %v894
    %v937 = vsel %vm921, %v920, %v896
    %v938 = vlaneseq
    %v939 = vshrl.u32 %v938, 7
    %v940 = vsub.s32 6, %v939
    %v941 = vrot.slane %v118, %v940
    %v942 = vlaneseq
    %v943 = vshrl.u32 %v942, 7
    %v944 = vsub.s32 6, %v943
    %v945 = vrot.slane %v119, %v944
    %v946 = vlaneseq
    %v947 = vshrl.u32 %v946, 7
    %v948 = vsub.s32 6, %v947
    %v949 = vrot.slane %v120, %v948
    %v950 = vlaneseq
    %v951 = vshrl.u32 %v950, 7
    %v952 = vsub.s32 6, %v951
    %v953 = vrot.slane %v121, %v952
    %v954 = vmul.f32 %v930, %v941
    %v955 = vmul.f32 %v926, %v945
    %v956 = vmul.f32 %v922, %v949
    %v957 = vmul.f32 %v934, %v953
    %v958 = vmul.f32 %v931, %v941
    %v959 = vmul.f32 %v927, %v945
    %v960 = vmul.f32 %v923, %v949
    %v961 = vmul.f32 %v935, %v953
    %v962 = vmul.f32 %v932, %v941
    %v963 = vmul.f32 %v928, %v945
    %v964 = vmul.f32 %v924, %v949
    %v965 = vmul.f32 %v936, %v953
    %v966 = vmul.f32 %v933, %v941
    %v967 = vmul.f32 %v929, %v945
    %v968 = vmul.f32 %v925, %v949
    %v969 = vmul.f32 %v937, %v953
    %v970 = vpack.c.bf16 %v958, %v954
    %v971 = vpack.c.bf16 %v959, %v955
    %v972 = vpack.c.bf16 %v960, %v956
    %v973 = vpack.c.bf16 %v961, %v957
    %v974 = vpack.c.bf16 %v966, %v962
    %v975 = vpack.c.bf16 %v967, %v963
    %v976 = vpack.c.bf16 %v968, %v964
    %v977 = vpack.c.bf16 %v969, %v965
    %v986 = vunpack.c.l.b16 %v970
    %v987 = vunpack.c.l.b16 %v971
    %v988 = vunpack.c.l.b16 %v972
    %v989 = vunpack.c.l.b16 %v973
    %v990 = vunpack.c.h.b16 %v970
    %v991 = vunpack.c.h.b16 %v971
    %v992 = vunpack.c.h.b16 %v972
    %v993 = vunpack.c.h.b16 %v973
    %v994 = vunpack.c.l.b16 %v974
    %v995 = vunpack.c.l.b16 %v975
    %v996 = vunpack.c.l.b16 %v976
    %v997 = vunpack.c.l.b16 %v977
    %v998 = vunpack.c.h.b16 %v974
    %v999 = vunpack.c.h.b16 %v975
    %v1000 = vunpack.c.h.b16 %v976
    %v1001 = vunpack.c.h.b16 %v977
    %v1002 = vpack.c.b16 %v987, %v986
    %v1003 = vpack.c.b16 %v989, %v988
    %v1004 = vpack.c.b16 %v991, %v990
    %v1005 = vpack.c.b16 %v993, %v992
    %v1006 = vpack.c.b16 %v995, %v994
    %v1007 = vpack.c.b16 %v997, %v996
    %v1008 = vpack.c.b16 %v999, %v998
    %v1009 = vpack.c.b16 %v1001, %v1000
    %1018 = vst [vmem:[#allocation2 + $0x180] sm:$0xff] %v1002
    %1019 = vst [vmem:[#allocation2 + $0x188] sm:$0xff] %v1003
    %1020 = vst [vmem:[#allocation2 + $0x190] sm:$0xff] %v1004
    %1021 = vst [vmem:[#allocation2 + $0x198] sm:$0xff] %v1005
    %1022 = vst [vmem:[#allocation2 + $0x1a0] sm:$0xff] %v1006
    %1023 = vst [vmem:[#allocation2 + $0x1a8] sm:$0xff] %v1007
    %1024 = vst [vmem:[#allocation2 + $0x1b0] sm:$0xff] %v1008
    %1025 = vst [vmem:[#allocation2 + $0x1b8] sm:$0xff] %v1009
    %1026 = vrot.lane.b32.xlu0 %v126, 112
    %v1027 = vpop.permute.xlu0 %1026
    %1028 = vrot.lane.b32.xlu0 %v130, 112
    %v1029 = vpop.permute.xlu0 %1028
    %1030 = vrot.lane.b32.xlu0 %v134, 112
    %v1031 = vpop.permute.xlu0 %1030
    %1032 = vrot.lane.b32.xlu0 %v138, 112
    %v1033 = vpop.permute.xlu0 %1032
    %1034 = vrot.lane.b32.xlu0 %v127, 112
    %v1035 = vpop.permute.xlu0 %1034
    %1036 = vrot.lane.b32.xlu0 %v131, 112
    %v1037 = vpop.permute.xlu0 %1036
    %1038 = vrot.lane.b32.xlu0 %v135, 112
    %v1039 = vpop.permute.xlu0 %1038
    %1040 = vrot.lane.b32.xlu0 %v139, 112
    %v1041 = vpop.permute.xlu0 %1040
    %1042 = vrot.lane.b32.xlu0 %v128, 112
    %v1043 = vpop.permute.xlu0 %1042
    %1044 = vrot.lane.b32.xlu0 %v132, 112
    %v1045 = vpop.permute.xlu0 %1044
    %1046 = vrot.lane.b32.xlu0 %v136, 112
    %v1047 = vpop.permute.xlu0 %1046
    %1048 = vrot.lane.b32.xlu0 %v140, 112
    %v1049 = vpop.permute.xlu0 %1048
    %1050 = vrot.lane.b32.xlu0 %v129, 112
    %v1051 = vpop.permute.xlu0 %1050
    %1052 = vrot.lane.b32.xlu0 %v133, 112
    %v1053 = vpop.permute.xlu0 %1052
    %1054 = vrot.lane.b32.xlu0 %v137, 112
    %v1055 = vpop.permute.xlu0 %1054
    %1056 = vrot.lane.b32.xlu0 %v141, 112
    %v1057 = vpop.permute.xlu0 %1056
    %vm1058 = vcmp.lt.s32.totalorder %v179, 112
    %v1059 = vsel %vm1058, %v1043, %v1051
    %v1060 = vsel %vm1058, %v1045, %v1053
    %v1061 = vsel %vm1058, %v1047, %v1055
    %v1062 = vsel %vm1058, %v1049, %v1057
    %v1063 = vsel %vm1058, %v1035, %v1043
    %v1064 = vsel %vm1058, %v1037, %v1045
    %v1065 = vsel %vm1058, %v1039, %v1047
    %v1066 = vsel %vm1058, %v1041, %v1049
    %v1067 = vsel %vm1058, %v1027, %v1035
    %v1068 = vsel %vm1058, %v1029, %v1037
    %v1069 = vsel %vm1058, %v1031, %v1039
    %v1070 = vsel %vm1058, %v1033, %v1041
    %v1071 = vsel %vm1058, %v1051, %v1027
    %v1072 = vsel %vm1058, %v1053, %v1029
    %v1073 = vsel %vm1058, %v1055, %v1031
    %v1074 = vsel %vm1058, %v1057, %v1033
    %v1075 = vlaneseq
    %v1076 = vshrl.u32 %v1075, 7
    %v1077 = vsub.s32 7, %v1076
    %v1078 = vrot.slane %v118, %v1077
    %v1079 = vlaneseq
    %v1080 = vshrl.u32 %v1079, 7
    %v1081 = vsub.s32 7, %v1080
    %v1082 = vrot.slane %v119, %v1081
    %v1083 = vlaneseq
    %v1084 = vshrl.u32 %v1083, 7
    %v1085 = vsub.s32 7, %v1084
    %v1086 = vrot.slane %v120, %v1085
    %v1087 = vlaneseq
    %v1088 = vshrl.u32 %v1087, 7
    %v1089 = vsub.s32 7, %v1088
    %v1090 = vrot.slane %v121, %v1089
    %v1091 = vmul.f32 %v1067, %v1078
    %v1092 = vmul.f32 %v1063, %v1082
    %v1093 = vmul.f32 %v1059, %v1086
    %v1094 = vmul.f32 %v1071, %v1090
    %v1095 = vmul.f32 %v1068, %v1078
    %v1096 = vmul.f32 %v1064, %v1082
    %v1097 = vmul.f32 %v1060, %v1086
    %v1098 = vmul.f32 %v1072, %v1090
    %v1099 = vmul.f32 %v1069, %v1078
    %v1100 = vmul.f32 %v1065, %v1082
    %v1101 = vmul.f32 %v1061, %v1086
    %v1102 = vmul.f32 %v1073, %v1090
    %v1103 = vmul.f32 %v1070, %v1078
    %v1104 = vmul.f32 %v1066, %v1082
    %v1105 = vmul.f32 %v1062, %v1086
    %v1106 = vmul.f32 %v1074, %v1090
    %v1107 = vpack.c.bf16 %v1095, %v1091
    %v1108 = vpack.c.bf16 %v1096, %v1092
    %v1109 = vpack.c.bf16 %v1097, %v1093
    %v1110 = vpack.c.bf16 %v1098, %v1094
    %v1111 = vpack.c.bf16 %v1103, %v1099
    %v1112 = vpack.c.bf16 %v1104, %v1100
    %v1113 = vpack.c.bf16 %v1105, %v1101
    %v1114 = vpack.c.bf16 %v1106, %v1102
    %v1123 = vunpack.c.l.b16 %v1107
    %v1124 = vunpack.c.l.b16 %v1108
    %v1125 = vunpack.c.l.b16 %v1109
    %v1126 = vunpack.c.l.b16 %v1110
    %v1127 = vunpack.c.h.b16 %v1107
    %v1128 = vunpack.c.h.b16 %v1108
    %v1129 = vunpack.c.h.b16 %v1109
    %v1130 = vunpack.c.h.b16 %v1110
    %v1131 = vunpack.c.l.b16 %v1111
    %v1132 = vunpack.c.l.b16 %v1112
    %v1133 = vunpack.c.l.b16 %v1113
    %v1134 = vunpack.c.l.b16 %v1114
    %v1135 = vunpack.c.h.b16 %v1111
    %v1136 = vunpack.c.h.b16 %v1112
    %v1137 = vunpack.c.h.b16 %v1113
    %v1138 = vunpack.c.h.b16 %v1114
    %v1139 = vpack.c.b16 %v1124, %v1123
    %v1140 = vpack.c.b16 %v1126, %v1125
    %v1141 = vpack.c.b16 %v1128, %v1127
    %v1142 = vpack.c.b16 %v1130, %v1129
    %v1143 = vpack.c.b16 %v1132, %v1131
    %v1144 = vpack.c.b16 %v1134, %v1133
    %v1145 = vpack.c.b16 %v1136, %v1135
    %v1146 = vpack.c.b16 %v1138, %v1137
    %1155 = vst [vmem:[#allocation2 + $0x1c0] sm:$0xff] %v1139
    %1156 = vst [vmem:[#allocation2 + $0x1c8] sm:$0xff] %v1140
    %1157 = vst [vmem:[#allocation2 + $0x1d0] sm:$0xff] %v1141
    %1158 = vst [vmem:[#allocation2 + $0x1d8] sm:$0xff] %v1142
    %1159 = vst [vmem:[#allocation2 + $0x1e0] sm:$0xff] %v1143
    %1160 = vst [vmem:[#allocation2 + $0x1e8] sm:$0xff] %v1144
    %1161 = vst [vmem:[#allocation2 + $0x1f0] sm:$0xff] %v1145
    %1162 = vst [vmem:[#allocation2 + $0x1f8] sm:$0xff] %v1146
    %1163 = vrot.lane.b32.xlu0 %v126, 111
    %v1164 = vpop.permute.xlu0 %1163
    %1165 = vrot.lane.b32.xlu0 %v130, 111
    %v1166 = vpop.permute.xlu0 %1165
    %1167 = vrot.lane.b32.xlu0 %v134, 111
    %v1168 = vpop.permute.xlu0 %1167
    %1169 = vrot.lane.b32.xlu0 %v138, 111
    %v1170 = vpop.permute.xlu0 %1169
    %1171 = vrot.lane.b32.xlu0 %v127, 111
    %v1172 = vpop.permute.xlu0 %1171
    %1173 = vrot.lane.b32.xlu0 %v131, 111
    %v1174 = vpop.permute.xlu0 %1173
    %1175 = vrot.lane.b32.xlu0 %v135, 111
    %v1176 = vpop.permute.xlu0 %1175
    %1177 = vrot.lane.b32.xlu0 %v139, 111
    %v1178 = vpop.permute.xlu0 %1177
    %1179 = vrot.lane.b32.xlu0 %v128, 111
    %v1180 = vpop.permute.xlu0 %1179
    %1181 = vrot.lane.b32.xlu0 %v132, 111
    %v1182 = vpop.permute.xlu0 %1181
    %1183 = vrot.lane.b32.xlu0 %v136, 111
    %v1184 = vpop.permute.xlu0 %1183
    %1185 = vrot.lane.b32.xlu0 %v140, 111
    %v1186 = vpop.permute.xlu0 %1185
    %1187 = vrot.lane.b32.xlu0 %v129, 111
    %v1188 = vpop.permute.xlu0 %1187
    %1189 = vrot.lane.b32.xlu0 %v133, 111
    %v1190 = vpop.permute.xlu0 %1189
    %1191 = vrot.lane.b32.xlu0 %v137, 111
    %v1192 = vpop.permute.xlu0 %1191
    %1193 = vrot.lane.b32.xlu0 %v141, 111
    %v1194 = vpop.permute.xlu0 %1193
    %vm1195 = vcmp.lt.s32.totalorder %v179, 111
    %v1196 = vsel %vm1195, %v1180, %v1188
    %v1197 = vsel %vm1195, %v1182, %v1190
    %v1198 = vsel %vm1195, %v1184, %v1192
    %v1199 = vsel %vm1195, %v1186, %v1194
    %v1200 = vsel %vm1195, %v1172, %v1180
    %v1201 = vsel %vm1195, %v1174, %v1182
    %v1202 = vsel %vm1195, %v1176, %v1184
    %v1203 = vsel %vm1195, %v1178, %v1186
    %v1204 = vsel %vm1195, %v1164, %v1172
    %v1205 = vsel %vm1195, %v1166, %v1174
    %v1206 = vsel %vm1195, %v1168, %v1176
    %v1207 = vsel %vm1195, %v1170, %v1178
    %v1208 = vsel %vm1195, %v1188, %v1164
    %v1209 = vsel %vm1195, %v1190, %v1166
    %v1210 = vsel %vm1195, %v1192, %v1168
    %v1211 = vsel %vm1195, %v1194, %v1170
    %v1212 = vlaneseq
    %v1213 = vshrl.u32 %v1212, 7
    %v1214 = vsub.s32 0, %v1213
    %v1215 = vrot.slane %v122, %v1214
    %v1216 = vlaneseq
    %v1217 = vshrl.u32 %v1216, 7
    %v1218 = vsub.s32 0, %v1217
    %v1219 = vrot.slane %v123, %v1218
    %v1220 = vlaneseq
    %v1221 = vshrl.u32 %v1220, 7
    %v1222 = vsub.s32 0, %v1221
    %v1223 = vrot.slane %v124, %v1222
    %v1224 = vlaneseq
    %v1225 = vshrl.u32 %v1224, 7
    %v1226 = vsub.s32 0, %v1225
    %v1227 = vrot.slane %v125, %v1226
    %v1228 = vmul.f32 %v1204, %v1215
    %v1229 = vmul.f32 %v1200, %v1219
    %v1230 = vmul.f32 %v1196, %v1223
    %v1231 = vmul.f32 %v1208, %v1227
    %v1232 = vmul.f32 %v1205, %v1215
    %v1233 = vmul.f32 %v1201, %v1219
    %v1234 = vmul.f32 %v1197, %v1223
    %v1235 = vmul.f32 %v1209, %v1227
    %v1236 = vmul.f32 %v1206, %v1215
    %v1237 = vmul.f32 %v1202, %v1219
    %v1238 = vmul.f32 %v1198, %v1223
    %v1239 = vmul.f32 %v1210, %v1227
    %v1240 = vmul.f32 %v1207, %v1215
    %v1241 = vmul.f32 %v1203, %v1219
    %v1242 = vmul.f32 %v1199, %v1223
    %v1243 = vmul.f32 %v1211, %v1227
    %v1244 = vpack.c.bf16 %v1232, %v1228
    %v1245 = vpack.c.bf16 %v1233, %v1229
    %v1246 = vpack.c.bf16 %v1234, %v1230
    %v1247 = vpack.c.bf16 %v1235, %v1231
    %v1248 = vpack.c.bf16 %v1240, %v1236
    %v1249 = vpack.c.bf16 %v1241, %v1237
    %v1250 = vpack.c.bf16 %v1242, %v1238
    %v1251 = vpack.c.bf16 %v1243, %v1239
    %v1260 = vunpack.c.l.b16 %v1244
    %v1261 = vunpack.c.l.b16 %v1245
    %v1262 = vunpack.c.l.b16 %v1246
    %v1263 = vunpack.c.l.b16 %v1247
    %v1264 = vunpack.c.h.b16 %v1244
    %v1265 = vunpack.c.h.b16 %v1245
    %v1266 = vunpack.c.h.b16 %v1246
    %v1267 = vunpack.c.h.b16 %v1247
    %v1268 = vunpack.c.l.b16 %v1248
    %v1269 = vunpack.c.l.b16 %v1249
    %v1270 = vunpack.c.l.b16 %v1250
    %v1271 = vunpack.c.l.b16 %v1251
    %v1272 = vunpack.c.h.b16 %v1248
    %v1273 = vunpack.c.h.b16 %v1249
    %v1274 = vunpack.c.h.b16 %v1250
    %v1275 = vunpack.c.h.b16 %v1251
    %v1276 = vpack.c.b16 %v1261, %v1260
    %v1277 = vpack.c.b16 %v1263, %v1262
    %v1278 = vpack.c.b16 %v1265, %v1264
    %v1279 = vpack.c.b16 %v1267, %v1266
    %v1280 = vpack.c.b16 %v1269, %v1268
    %v1281 = vpack.c.b16 %v1271, %v1270
    %v1282 = vpack.c.b16 %v1273, %v1272
    %v1283 = vpack.c.b16 %v1275, %v1274
    %1292 = vst [vmem:[#allocation2 + $0x200] sm:$0xff] %v1276
    %1293 = vst [vmem:[#allocation2 + $0x208] sm:$0xff] %v1277
    %1294 = vst [vmem:[#allocation2 + $0x210] sm:$0xff] %v1278
    %1295 = vst [vmem:[#allocation2 + $0x218] sm:$0xff] %v1279
    %1296 = vst [vmem:[#allocation2 + $0x220] sm:$0xff] %v1280
    %1297 = vst [vmem:[#allocation2 + $0x228] sm:$0xff] %v1281
    %1298 = vst [vmem:[#allocation2 + $0x230] sm:$0xff] %v1282
    %1299 = vst [vmem:[#allocation2 + $0x238] sm:$0xff] %v1283
    %v1300 = vld [vmem:[#allocation8] sm:$0xff]
    %v1301 = vld [vmem:[#allocation8 + $0x8] sm:$0xf]
    %v1302 = vld [vmem:[#allocation8 + $0xc] sm:$0xff]
    %v1303 = vld [vmem:[#allocation8 + $0x14] sm:$0xf]
    %v1304 = vld [vmem:[#allocation8 + $0x18] sm:$0xff]
    %v1305 = vld [vmem:[#allocation8 + $0x20] sm:$0xf]
    %v1306 = vld [vmem:[#allocation8 + $0x24] sm:$0xff]
    %v1307 = vld [vmem:[#allocation8 + $0x2c] sm:$0xf]
    %v1308 = vld [vmem:[#allocation2] sm:$0xff]
    %v1309 = vld [vmem:[#allocation2 + $0x8] sm:$0xff]
    %v1310 = vld [vmem:[#allocation2 + $0x10] sm:$0xff]
    %v1311 = vld [vmem:[#allocation2 + $0x18] sm:$0xff]
    %v1312 = vld [vmem:[#allocation2 + $0x20] sm:$0xff]
    %v1313 = vld [vmem:[#allocation2 + $0x28] sm:$0xff]
    %v1314 = vld [vmem:[#allocation2 + $0x30] sm:$0xff]
    %v1315 = vld [vmem:[#allocation2 + $0x38] sm:$0xff]
    %v1316 = vld [vmem:[#allocation2 + $0x40] sm:$0xff]
    %v1317 = vld [vmem:[#allocation2 + $0x48] sm:$0xff]
    %v1318 = vld [vmem:[#allocation2 + $0x50] sm:$0xff]
    %v1319 = vld [vmem:[#allocation2 + $0x58] sm:$0xff]
    %v1320 = vld [vmem:[#allocation2 + $0x60] sm:$0xff]
    %v1321 = vld [vmem:[#allocation2 + $0x68] sm:$0xff]
    %v1322 = vld [vmem:[#allocation2 + $0x70] sm:$0xff]
    %v1323 = vld [vmem:[#allocation2 + $0x78] sm:$0xff]
    %v1324 = vld [vmem:[#allocation2 + $0x80] sm:$0xff]
    %v1325 = vld [vmem:[#allocation2 + $0x88] sm:$0xff]
    %v1326 = vld [vmem:[#allocation2 + $0x90] sm:$0xff]
    %v1327 = vld [vmem:[#allocation2 + $0x98] sm:$0xff]
    %v1328 = vld [vmem:[#allocation2 + $0xa0] sm:$0xff]
    %v1329 = vld [vmem:[#allocation2 + $0xa8] sm:$0xff]
    %v1330 = vld [vmem:[#allocation2 + $0xb0] sm:$0xff]
    %v1331 = vld [vmem:[#allocation2 + $0xb8] sm:$0xff]
    %v1332 = vld [vmem:[#allocation2 + $0xc0] sm:$0xff]
    %v1333 = vld [vmem:[#allocation2 + $0xc8] sm:$0xff]
    %v1334 = vld [vmem:[#allocation2 + $0xd0] sm:$0xff]
    %v1335 = vld [vmem:[#allocation2 + $0xd8] sm:$0xff]
    %v1336 = vld [vmem:[#allocation2 + $0xe0] sm:$0xff]
    %v1337 = vld [vmem:[#allocation2 + $0xe8] sm:$0xff]
    %v1338 = vld [vmem:[#allocation2 + $0xf0] sm:$0xff]
    %v1339 = vld [vmem:[#allocation2 + $0xf8] sm:$0xff]
    %v1340 = vld [vmem:[#allocation2 + $0x100] sm:$0xff]
    %v1341 = vld [vmem:[#allocation2 + $0x108] sm:$0xff]
    %v1342 = vld [vmem:[#allocation2 + $0x110] sm:$0xff]
    %v1343 = vld [vmem:[#allocation2 + $0x118] sm:$0xff]
    %v1344 = vld [vmem:[#allocation2 + $0x120] sm:$0xff]
    %v1345 = vld [vmem:[#allocation2 + $0x128] sm:$0xff]
    %v1346 = vld [vmem:[#allocation2 + $0x130] sm:$0xff]
    %v1347 = vld [vmem:[#allocation2 + $0x138] sm:$0xff]
    %v1348 = vld [vmem:[#allocation2 + $0x140] sm:$0xff]
    %v1349 = vld [vmem:[#allocation2 + $0x148] sm:$0xff]
    %v1350 = vld [vmem:[#allocation2 + $0x150] sm:$0xff]
    %v1351 = vld [vmem:[#allocation2 + $0x158] sm:$0xff]
    %v1352 = vld [vmem:[#allocation2 + $0x160] sm:$0xff]
    %v1353 = vld [vmem:[#allocation2 + $0x168] sm:$0xff]
    %v1354 = vld [vmem:[#allocation2 + $0x170] sm:$0xff]
    %v1355 = vld [vmem:[#allocation2 + $0x178] sm:$0xff]
    %v1356 = vld [vmem:[#allocation2 + $0x180] sm:$0xff]
    %v1357 = vld [vmem:[#allocation2 + $0x188] sm:$0xff]
    %v1358 = vld [vmem:[#allocation2 + $0x190] sm:$0xff]
    %v1359 = vld [vmem:[#allocation2 + $0x198] sm:$0xff]
    %v1360 = vld [vmem:[#allocation2 + $0x1a0] sm:$0xff]
    %v1361 = vld [vmem:[#allocation2 + $0x1a8] sm:$0xff]
    %v1362 = vld [vmem:[#allocation2 + $0x1b0] sm:$0xff]
    %v1363 = vld [vmem:[#allocation2 + $0x1b8] sm:$0xff]
    %v1364 = vld [vmem:[#allocation2 + $0x1c0] sm:$0xff]
    %v1365 = vld [vmem:[#allocation2 + $0x1c8] sm:$0xff]
    %v1366 = vld [vmem:[#allocation2 + $0x1d0] sm:$0xff]
    %v1367 = vld [vmem:[#allocation2 + $0x1d8] sm:$0xff]
    %v1368 = vld [vmem:[#allocation2 + $0x1e0] sm:$0xff]
    %v1369 = vld [vmem:[#allocation2 + $0x1e8] sm:$0xff]
    %v1370 = vld [vmem:[#allocation2 + $0x1f0] sm:$0xff]
    %v1371 = vld [vmem:[#allocation2 + $0x1f8] sm:$0xff]
    %v1372 = vld [vmem:[#allocation2 + $0x200] sm:$0xff]
    %v1373 = vld [vmem:[#allocation2 + $0x208] sm:$0xff]
    %v1374 = vld [vmem:[#allocation2 + $0x210] sm:$0xff]
    %v1375 = vld [vmem:[#allocation2 + $0x218] sm:$0xff]
    %v1376 = vld [vmem:[#allocation2 + $0x220] sm:$0xff]
    %v1377 = vld [vmem:[#allocation2 + $0x228] sm:$0xff]
    %v1378 = vld [vmem:[#allocation2 + $0x230] sm:$0xff]
    %v1379 = vld [vmem:[#allocation2 + $0x238] sm:$0xff]
    %1381 = vset.pattern.permute.xlu0 0
    %1382 = vperm.xlu0 %1381, %v142
    %v1383 = vpop.permute.xlu0 %1382
    %1386 = vset.pattern.permute.xlu0 0
    %1387 = vperm.xlu0 %1386, %v143
    %v1388 = vpop.permute.xlu0 %1387
    %1391 = vset.pattern.permute.xlu0 0
    %1392 = vperm.xlu0 %1391, %v144
    %v1393 = vpop.permute.xlu0 %1392
    %1396 = vset.pattern.permute.xlu0 0
    %1397 = vperm.xlu0 %1396, %v145
    %v1398 = vpop.permute.xlu0 %1397
    %v1408 = vunpack.c.l.b16 %v1300
    %v1409 = vunpack.c.h.b16 %v1300
    %v1410 = vunpack.c.l.b16 %v1301
    %v1411 = vunpack.c.l.b16 %v1302
    %v1412 = vunpack.c.h.b16 %v1302
    %v1413 = vunpack.c.l.b16 %v1303
    %v1414 = vunpack.c.l.b16 %v1304
    %v1415 = vunpack.c.h.b16 %v1304
    %v1416 = vunpack.c.l.b16 %v1305
    %v1417 = vunpack.c.l.b16 %v1306
    %v1418 = vunpack.c.h.b16 %v1306
    %v1419 = vunpack.c.l.b16 %v1307
    %v1420 = vpack.c.b16 %v1411, %v1408
    %v1421 = vpack.c.b16 %v1412, %v1409
    %v1422 = vpack.c.b16 %v1413, %v1410
    %v1423 = vpack.c.b16 %v1417, %v1414
    %v1424 = vpack.c.b16 %v1418, %v1415
    %v1425 = vpack.c.b16 %v1419, %v1416
    %v1502 = vunpack.c.l.b16 %v1308
    %v1503 = vunpack.c.h.b16 %v1308
    %v1504 = vunpack.c.l.b16 %v1309
    %v1505 = vunpack.c.h.b16 %v1309
    %v1506 = vunpack.c.l.b16 %v1310
    %v1507 = vunpack.c.h.b16 %v1310
    %v1508 = vunpack.c.l.b16 %v1311
    %v1509 = vunpack.c.h.b16 %v1311
    %v1510 = vunpack.c.l.b16 %v1312
    %v1511 = vunpack.c.h.b16 %v1312
    %v1512 = vunpack.c.l.b16 %v1313
    %v1513 = vunpack.c.h.b16 %v1313
    %v1514 = vunpack.c.l.b16 %v1314
    %v1515 = vunpack.c.h.b16 %v1314
    %v1516 = vunpack.c.l.b16 %v1315
    %v1517 = vunpack.c.h.b16 %v1315
    %v1518 = vunpack.c.l.b16 %v1316
    %v1519 = vunpack.c.h.b16 %v1316
    %v1520 = vunpack.c.l.b16 %v1317
    %v1521 = vunpack.c.h.b16 %v1317
    %v1522 = vunpack.c.l.b16 %v1318
    %v1523 = vunpack.c.h.b16 %v1318
    %v1524 = vunpack.c.l.b16 %v1319
    %v1525 = vunpack.c.h.b16 %v1319
    %v1526 = vunpack.c.l.b16 %v1320
    %v1527 = vunpack.c.h.b16 %v1320
    %v1528 = vunpack.c.l.b16 %v1321
    %v1529 = vunpack.c.h.b16 %v1321
    %v1530 = vunpack.c.l.b16 %v1322
    %v1531 = vunpack.c.h.b16 %v1322
    %v1532 = vunpack.c.l.b16 %v1323
    %v1533 = vunpack.c.h.b16 %v1323
    %v1534 = vunpack.c.l.b16 %v1324
    %v1535 = vunpack.c.h.b16 %v1324
    %v1536 = vunpack.c.l.b16 %v1325
    %v1537 = vunpack.c.h.b16 %v1325
    %v1538 = vunpack.c.l.b16 %v1326
    %v1539 = vunpack.c.h.b16 %v1326
    %v1540 = vunpack.c.l.b16 %v1327
    %v1541 = vunpack.c.h.b16 %v1327
    %v1542 = vunpack.c.l.b16 %v1328
    %v1543 = vunpack.c.h.b16 %v1328
    %v1544 = vunpack.c.l.b16 %v1329
    %v1545 = vunpack.c.h.b16 %v1329
    %v1546 = vunpack.c.l.b16 %v1330
    %v1547 = vunpack.c.h.b16 %v1330
    %v1548 = vunpack.c.l.b16 %v1331
    %v1549 = vunpack.c.h.b16 %v1331
    %v1550 = vunpack.c.l.b16 %v1332
    %v1551 = vunpack.c.h.b16 %v1332
    %v1552 = vunpack.c.l.b16 %v1333
    %v1553 = vunpack.c.h.b16 %v1333
    %v1554 = vunpack.c.l.b16 %v1334
    %v1555 = vunpack.c.h.b16 %v1334
    %v1556 = vunpack.c.l.b16 %v1335
    %v1557 = vunpack.c.h.b16 %v1335
    %v1558 = vunpack.c.l.b16 %v1336
    %v1559 = vunpack.c.h.b16 %v1336
    %v1560 = vunpack.c.l.b16 %v1337
    %v1561 = vunpack.c.h.b16 %v1337
    %v1562 = vunpack.c.l.b16 %v1338
    %v1563 = vunpack.c.h.b16 %v1338
    %v1564 = vunpack.c.l.b16 %v1339
    %v1565 = vunpack.c.h.b16 %v1339
    %v1566 = vunpack.c.l.b16 %v1340
    %v1567 = vunpack.c.h.b16 %v1340
    %v1568 = vunpack.c.l.b16 %v1341
    %v1569 = vunpack.c.h.b16 %v1341
    %v1570 = vunpack.c.l.b16 %v1342
    %v1571 = vunpack.c.h.b16 %v1342
    %v1572 = vunpack.c.l.b16 %v1343
    %v1573 = vunpack.c.h.b16 %v1343
    %v1574 = vunpack.c.l.b16 %v1344
    %v1575 = vunpack.c.h.b16 %v1344
    %v1576 = vunpack.c.l.b16 %v1345
    %v1577 = vunpack.c.h.b16 %v1345
    %v1578 = vunpack.c.l.b16 %v1346
    %v1579 = vunpack.c.h.b16 %v1346
    %v1580 = vunpack.c.l.b16 %v1347
    %v1581 = vunpack.c.h.b16 %v1347
    %v1582 = vunpack.c.l.b16 %v1348
    %v1583 = vunpack.c.h.b16 %v1348
    %v1584 = vunpack.c.l.b16 %v1349
    %v1585 = vunpack.c.h.b16 %v1349
    %v1586 = vunpack.c.l.b16 %v1350
    %v1587 = vunpack.c.h.b16 %v1350
    %v1588 = vunpack.c.l.b16 %v1351
    %v1589 = vunpack.c.h.b16 %v1351
    %v1590 = vunpack.c.l.b16 %v1352
    %v1591 = vunpack.c.h.b16 %v1352
    %v1592 = vunpack.c.l.b16 %v1353
    %v1593 = vunpack.c.h.b16 %v1353
    %v1594 = vunpack.c.l.b16 %v1354
    %v1595 = vunpack.c.h.b16 %v1354
    %v1596 = vunpack.c.l.b16 %v1355
    %v1597 = vunpack.c.h.b16 %v1355
    %v1598 = vunpack.c.l.b16 %v1356
    %v1599 = vunpack.c.h.b16 %v1356
    %v1600 = vunpack.c.l.b16 %v1357
    %v1601 = vunpack.c.h.b16 %v1357
    %v1602 = vunpack.c.l.b16 %v1358
    %v1603 = vunpack.c.h.b16 %v1358
    %v1604 = vunpack.c.l.b16 %v1359
    %v1605 = vunpack.c.h.b16 %v1359
    %v1606 = vunpack.c.l.b16 %v1360
    %v1607 = vunpack.c.h.b16 %v1360
    %v1608 = vunpack.c.l.b16 %v1361
    %v1609 = vunpack.c.h.b16 %v1361
    %v1610 = vunpack.c.l.b16 %v1362
    %v1611 = vunpack.c.h.b16 %v1362
    %v1612 = vunpack.c.l.b16 %v1363
    %v1613 = vunpack.c.h.b16 %v1363
    %v1614 = vunpack.c.l.b16 %v1364
    %v1615 = vunpack.c.h.b16 %v1364
    %v1616 = vunpack.c.l.b16 %v1365
    %v1617 = vunpack.c.h.b16 %v1365
    %v1618 = vunpack.c.l.b16 %v1366
    %v1619 = vunpack.c.h.b16 %v1366
    %v1620 = vunpack.c.l.b16 %v1367
    %v1621 = vunpack.c.h.b16 %v1367
    %v1622 = vunpack.c.l.b16 %v1368
    %v1623 = vunpack.c.h.b16 %v1368
    %v1624 = vunpack.c.l.b16 %v1369
    %v1625 = vunpack.c.h.b16 %v1369
    %v1626 = vunpack.c.l.b16 %v1370
    %v1627 = vunpack.c.h.b16 %v1370
    %v1628 = vunpack.c.l.b16 %v1371
    %v1629 = vunpack.c.h.b16 %v1371
    %v1630 = vunpack.c.l.b16 %v1372
    %v1631 = vunpack.c.h.b16 %v1372
    %v1632 = vunpack.c.l.b16 %v1373
    %v1633 = vunpack.c.h.b16 %v1373
    %v1634 = vunpack.c.l.b16 %v1374
    %v1635 = vunpack.c.h.b16 %v1374
    %v1636 = vunpack.c.l.b16 %v1375
    %v1637 = vunpack.c.h.b16 %v1375
    %v1638 = vunpack.c.l.b16 %v1376
    %v1639 = vunpack.c.h.b16 %v1376
    %v1640 = vunpack.c.l.b16 %v1377
    %v1641 = vunpack.c.h.b16 %v1377
    %v1642 = vunpack.c.l.b16 %v1378
    %v1643 = vunpack.c.h.b16 %v1378
    %v1644 = vunpack.c.l.b16 %v1379
    %v1645 = vunpack.c.h.b16 %v1379
    %v1646 = vpack.c.b16 %v1506, %v1502
    %v1647 = vpack.c.b16 %v1507, %v1503
    %v1648 = vpack.c.b16 %v1508, %v1504
    %v1649 = vpack.c.b16 %v1509, %v1505
    %v1650 = vpack.c.b16 %v1514, %v1510
    %v1651 = vpack.c.b16 %v1515, %v1511
    %v1652 = vpack.c.b16 %v1516, %v1512
    %v1653 = vpack.c.b16 %v1517, %v1513
    %v1654 = vpack.c.b16 %v1522, %v1518
    %v1655 = vpack.c.b16 %v1523, %v1519
    %v1656 = vpack.c.b16 %v1524, %v1520
    %v1657 = vpack.c.b16 %v1525, %v1521
    %v1658 = vpack.c.b16 %v1530, %v1526
    %v1659 = vpack.c.b16 %v1531, %v1527
    %v1660 = vpack.c.b16 %v1532, %v1528
    %v1661 = vpack.c.b16 %v1533, %v1529
    %v1662 = vpack.c.b16 %v1538, %v1534
    %v1663 = vpack.c.b16 %v1539, %v1535
    %v1664 = vpack.c.b16 %v1540, %v1536
    %v1665 = vpack.c.b16 %v1541, %v1537
    %v1666 = vpack.c.b16 %v1546, %v1542
    %v1667 = vpack.c.b16 %v1547, %v1543
    %v1668 = vpack.c.b16 %v1548, %v1544
    %v1669 = vpack.c.b16 %v1549, %v1545
    %v1670 = vpack.c.b16 %v1554, %v1550
    %v1671 = vpack.c.b16 %v1555, %v1551
    %v1672 = vpack.c.b16 %v1556, %v1552
    %v1673 = vpack.c.b16 %v1557, %v1553
    %v1674 = vpack.c.b16 %v1562, %v1558
    %v1675 = vpack.c.b16 %v1563, %v1559
    %v1676 = vpack.c.b16 %v1564, %v1560
    %v1677 = vpack.c.b16 %v1565, %v1561
    %v1678 = vpack.c.b16 %v1570, %v1566
    %v1679 = vpack.c.b16 %v1571, %v1567
    %v1680 = vpack.c.b16 %v1572, %v1568
    %v1681 = vpack.c.b16 %v1573, %v1569
    %v1682 = vpack.c.b16 %v1578, %v1574
    %v1683 = vpack.c.b16 %v1579, %v1575
    %v1684 = vpack.c.b16 %v1580, %v1576
    %v1685 = vpack.c.b16 %v1581, %v1577
    %v1686 = vpack.c.b16 %v1586, %v1582
    %v1687 = vpack.c.b16 %v1587, %v1583
    %v1688 = vpack.c.b16 %v1588, %v1584
    %v1689 = vpack.c.b16 %v1589, %v1585
    %v1690 = vpack.c.b16 %v1594, %v1590
    %v1691 = vpack.c.b16 %v1595, %v1591
    %v1692 = vpack.c.b16 %v1596, %v1592
    %v1693 = vpack.c.b16 %v1597, %v1593
    %v1694 = vpack.c.b16 %v1602, %v1598
    %v1695 = vpack.c.b16 %v1603, %v1599
    %v1696 = vpack.c.b16 %v1604, %v1600
    %v1697 = vpack.c.b16 %v1605, %v1601
    %v1698 = vpack.c.b16 %v1610, %v1606
    %v1699 = vpack.c.b16 %v1611, %v1607
    %v1700 = vpack.c.b16 %v1612, %v1608
    %v1701 = vpack.c.b16 %v1613, %v1609
    %v1702 = vpack.c.b16 %v1618, %v1614
    %v1703 = vpack.c.b16 %v1619, %v1615
    %v1704 = vpack.c.b16 %v1620, %v1616
    %v1705 = vpack.c.b16 %v1621, %v1617
    %v1706 = vpack.c.b16 %v1626, %v1622
    %v1707 = vpack.c.b16 %v1627, %v1623
    %v1708 = vpack.c.b16 %v1628, %v1624
    %v1709 = vpack.c.b16 %v1629, %v1625
    %v1710 = vpack.c.b16 %v1634, %v1630
    %v1711 = vpack.c.b16 %v1635, %v1631
    %v1712 = vpack.c.b16 %v1636, %v1632
    %v1713 = vpack.c.b16 %v1637, %v1633
    %v1714 = vpack.c.b16 %v1642, %v1638
    %v1715 = vpack.c.b16 %v1643, %v1639
    %v1716 = vpack.c.b16 %v1644, %v1640
    %v1717 = vpack.c.b16 %v1645, %v1641
    %vm1790 = vcmask 261120
    %v1792 = vsel %vm1790, %v1422, 0
    %v1795 = vsel %vm1790, %v1425, 0
    %1797 = vmatprep.subr.bf16.mxu0 %v1675
    %1798 = vmatpush1.bf16.msra.mxu0 %v1674
    %1799 = vmatprep.subr.bf16.mxu0 %v1671
    %1800 = vmatpush1.bf16.msra.mxu0 %v1670
    %1801 = vmatprep.subr.bf16.mxu0 %v1667
    %1802 = vmatpush1.bf16.msra.mxu0 %v1666
    %1803 = vmatprep.subr.bf16.mxu0 %v1663
    %1804 = vmatpush1.bf16.msra.mxu0 %v1662
    %1805 = vmatprep.subr.bf16.mxu0 %v1659
    %1806 = vmatpush1.bf16.msra.mxu0 %v1658
    %1807 = vmatprep.subr.bf16.mxu0 %v1655
    %1808 = vmatpush1.bf16.msra.mxu0 %v1654
    %1809 = vmatprep.subr.bf16.mxu0 %v1651
    %1810 = vmatpush1.bf16.msra.mxu0 %v1650
    %1811 = vmatprep.subr.bf16.mxu0 %v1647
    %1812 = vmatpush1.bf16.msra.mxu0 %v1646
    %1813 = vmatprep.subr.bf16.mxu0 %v1707
    %1814 = vmatpush2.bf16.msra.mxu0 %v1706
    %1815 = vmatprep.subr.bf16.mxu0 %v1703
    %1816 = vmatpush2.bf16.msra.mxu0 %v1702
    %1817 = vmatprep.subr.bf16.mxu0 %v1699
    %1818 = vmatpush2.bf16.msra.mxu0 %v1698
    %1819 = vmatprep.subr.bf16.mxu0 %v1695
    %1820 = vmatpush2.bf16.msra.mxu0 %v1694
    %1821 = vmatprep.subr.bf16.mxu0 %v1691
    %1822 = vmatpush2.bf16.msra.mxu0 %v1690
    %1823 = vmatprep.subr.bf16.mxu0 %v1687
    %1824 = vmatpush2.bf16.msra.mxu0 %v1686
    %1825 = vmatprep.subr.bf16.mxu0 %v1683
    %1826 = vmatpush2.bf16.msra.mxu0 %v1682
    %1827 = vmatprep.subr.bf16.mxu0 %v1679
    %1828 = vmatpush2.bf16.msra.mxu0 %v1678
    %1829 = vmatprep.mubr.bf16.mxu0 %v1421
    %1830 = vmatmul.mubr.bf16.gmra.mxu0 %v1420
    %v1831 = vpop.f32.mrf.mxu0
    %v1832 = vadd.f32 %v1383, %v1831
    %v1833 = vpop.f32.mrf.mxu0
    %v1834 = vadd.f32 %v1383, %v1833
    %v1835 = vpop.f32.mrf.mxu0
    %v1836 = vadd.f32 %v1388, %v1835
    %v1837 = vpop.f32.mrf.mxu0
    %v1838 = vadd.f32 %v1388, %v1837
    %1839 = vmatprep.mubr.bf16.mxu0 %v1424
    %1840 = vmatmul.mubr.bf16.gmra.mxu0 %v1423
    %v1841 = vpop.f32.mrf.mxu0
    %v1842 = vadd.f32 %v1393, %v1841
    %v1843 = vpop.f32.mrf.mxu0
    %v1844 = vadd.f32 %v1393, %v1843
    %v1845 = vpop.f32.mrf.mxu0
    %v1846 = vadd.f32 %v1398, %v1845
    %v1847 = vpop.f32.mrf.mxu0
    %v1848 = vadd.f32 %v1398, %v1847
    %1849 = vdwg.mxu0
    %1850 = vmatprep.subr.bf16.mxu0 0
    %1851 = vmatpush1.bf16.msra.mxu0 0
    %1852 = vmatprep.subr.bf16.mxu0 0
    %1853 = vmatpush1.bf16.msra.mxu0 0
    %1854 = vmatprep.subr.bf16.mxu0 0
    %1855 = vmatpush1.bf16.msra.mxu0 0
    %1856 = vmatprep.subr.bf16.mxu0 0
    %1857 = vmatpush1.bf16.msra.mxu0 0
    %1858 = vmatprep.subr.bf16.mxu0 0
    %1859 = vmatpush1.bf16.msra.mxu0 0
    %1860 = vmatprep.subr.bf16.mxu0 0
    %1861 = vmatpush1.bf16.msra.mxu0 0
    %1862 = vmatprep.subr.bf16.mxu0 %v1715
    %1863 = vmatpush1.bf16.msra.mxu0 %v1714
    %1864 = vmatprep.subr.bf16.mxu0 %v1711
    %1865 = vmatpush1.bf16.msra.mxu0 %v1710
    %1866 = vmatprep.subr.bf16.mxu0 0
    %1867 = vmatpush2.bf16.msra.mxu0 0
    %1868 = vmatprep.subr.bf16.mxu0 0
    %1869 = vmatpush2.bf16.msra.mxu0 0
    %1870 = vmatprep.subr.bf16.mxu0 0
    %1871 = vmatpush2.bf16.msra.mxu0 0
    %1872 = vmatprep.subr.bf16.mxu0 0
    %1873 = vmatpush2.bf16.msra.mxu0 0
    %1874 = vmatprep.subr.bf16.mxu0 0
    %1875 = vmatpush2.bf16.msra.mxu0 0
    %1876 = vmatprep.subr.bf16.mxu0 0
    %1877 = vmatpush2.bf16.msra.mxu0 0
    %1878 = vmatprep.subr.bf16.mxu0 0
    %1879 = vmatpush2.bf16.msra.mxu0 0
    %1880 = vmatprep.subr.bf16.mxu0 0
    %1881 = vmatpush2.bf16.msra.mxu0 0
    %1882 = vmatprep.mubr.bf16.mxu0 0
    %1883 = vmatmul.mubr.bf16.gmra.mxu0 %v1792
    %v1884 = vpop.f32.mrf.mxu0
    %v1885 = vadd.f32 %v1832, %v1884
    %v1886 = vpop.f32.mrf.mxu0
    %v1887 = vadd.f32 %v1834, %v1886
    %v1888 = vpop.f32.mrf.mxu0
    %v1889 = vadd.f32 %v1836, %v1888
    %v1890 = vpop.f32.mrf.mxu0
    %v1891 = vadd.f32 %v1838, %v1890
    %1892 = vmatprep.mubr.bf16.mxu0 0
    %1893 = vmatmul.mubr.bf16.gmra.mxu0 %v1795
    %v1894 = vpop.f32.mrf.mxu0
    %v1895 = vadd.f32 %v1842, %v1894
    %v1896 = vpop.f32.mrf.mxu0
    %v1897 = vadd.f32 %v1844, %v1896
    %v1898 = vpop.f32.mrf.mxu0
    %v1899 = vadd.f32 %v1846, %v1898
    %v1900 = vpop.f32.mrf.mxu0
    %v1901 = vadd.f32 %v1848, %v1900
    %1902 = vdwg.mxu0
    %1903 = vmatprep.subr.bf16.mxu0 %v1677
    %1904 = vmatpush1.bf16.msra.mxu0 %v1676
    %1905 = vmatprep.subr.bf16.mxu0 %v1673
    %1906 = vmatpush1.bf16.msra.mxu0 %v1672
    %1907 = vmatprep.subr.bf16.mxu0 %v1669
    %1908 = vmatpush1.bf16.msra.mxu0 %v1668
    %1909 = vmatprep.subr.bf16.mxu0 %v1665
    %1910 = vmatpush1.bf16.msra.mxu0 %v1664
    %1911 = vmatprep.subr.bf16.mxu0 %v1661
    %1912 = vmatpush1.bf16.msra.mxu0 %v1660
    %1913 = vmatprep.subr.bf16.mxu0 %v1657
    %1914 = vmatpush1.bf16.msra.mxu0 %v1656
    %1915 = vmatprep.subr.bf16.mxu0 %v1653
    %1916 = vmatpush1.bf16.msra.mxu0 %v1652
    %1917 = vmatprep.subr.bf16.mxu0 %v1649
    %1918 = vmatpush1.bf16.msra.mxu0 %v1648
    %1919 = vmatprep.subr.bf16.mxu0 %v1709
    %1920 = vmatpush2.bf16.msra.mxu0 %v1708
    %1921 = vmatprep.subr.bf16.mxu0 %v1705
    %1922 = vmatpush2.bf16.msra.mxu0 %v1704
    %1923 = vmatprep.subr.bf16.mxu0 %v1701
    %1924 = vmatpush2.bf16.msra.mxu0 %v1700
    %1925 = vmatprep.subr.bf16.mxu0 %v1697
    %1926 = vmatpush2.bf16.msra.mxu0 %v1696
    %1927 = vmatprep.subr.bf16.mxu0 %v1693
    %1928 = vmatpush2.bf16.msra.mxu0 %v1692
    %1929 = vmatprep.subr.bf16.mxu0 %v1689
    %1930 = vmatpush2.bf16.msra.mxu0 %v1688
    %1931 = vmatprep.subr.bf16.mxu0 %v1685
    %1932 = vmatpush2.bf16.msra.mxu0 %v1684
    %1933 = vmatprep.subr.bf16.mxu0 %v1681
    %1934 = vmatpush2.bf16.msra.mxu0 %v1680
    %1935 = vmatprep.mubr.bf16.mxu0 %v1421
    %1936 = vmatmul.mubr.bf16.gmra.mxu0 %v1420
    %v1937 = vpop.f32.mrf.mxu0
    %v1938 = vadd.f32 %v1383, %v1937
    %v1939 = vpop.f32.mrf.mxu0
    %v1940 = vadd.f32 %v1383, %v1939
    %v1941 = vpop.f32.mrf.mxu0
    %v1942 = vadd.f32 %v1388, %v1941
    %v1943 = vpop.f32.mrf.mxu0
    %v1944 = vadd.f32 %v1388, %v1943
    %1945 = vmatprep.mubr.bf16.mxu0 %v1424
    %1946 = vmatmul.mubr.bf16.gmra.mxu0 %v1423
    %v1947 = vpop.f32.mrf.mxu0
    %v1948 = vadd.f32 %v1393, %v1947
    %v1949 = vpop.f32.mrf.mxu0
    %v1950 = vadd.f32 %v1393, %v1949
    %v1951 = vpop.f32.mrf.mxu0
    %v1952 = vadd.f32 %v1398, %v1951
    %v1953 = vpop.f32.mrf.mxu0
    %v1954 = vadd.f32 %v1398, %v1953
    %1955 = vdwg.mxu0
    %1956 = vmatprep.subr.bf16.mxu0 0
    %1957 = vmatpush1.bf16.msra.mxu0 0
    %1958 = vmatprep.subr.bf16.mxu0 0
    %1959 = vmatpush1.bf16.msra.mxu0 0
    %1960 = vmatprep.subr.bf16.mxu0 0
    %1961 = vmatpush1.bf16.msra.mxu0 0
    %1962 = vmatprep.subr.bf16.mxu0 0
    %1963 = vmatpush1.bf16.msra.mxu0 0
    %1964 = vmatprep.subr.bf16.mxu0 0
    %1965 = vmatpush1.bf16.msra.mxu0 0
    %1966 = vmatprep.subr.bf16.mxu0 0
    %1967 = vmatpush1.bf16.msra.mxu0 0
    %1968 = vmatprep.subr.bf16.mxu0 %v1717
    %1969 = vmatpush1.bf16.msra.mxu0 %v1716
    %1970 = vmatprep.subr.bf16.mxu0 %v1713
    %1971 = vmatpush1.bf16.msra.mxu0 %v1712
    %1972 = vmatprep.subr.bf16.mxu0 0
    %1973 = vmatpush2.bf16.msra.mxu0 0
    %1974 = vmatprep.subr.bf16.mxu0 0
    %1975 = vmatpush2.bf16.msra.mxu0 0
    %1976 = vmatprep.subr.bf16.mxu0 0
    %1977 = vmatpush2.bf16.msra.mxu0 0
    %1978 = vmatprep.subr.bf16.mxu0 0
    %1979 = vmatpush2.bf16.msra.mxu0 0
    %1980 = vmatprep.subr.bf16.mxu0 0
    %1981 = vmatpush2.bf16.msra.mxu0 0
    %1982 = vmatprep.subr.bf16.mxu0 0
    %1983 = vmatpush2.bf16.msra.mxu0 0
    %1984 = vmatprep.subr.bf16.mxu0 0
    %1985 = vmatpush2.bf16.msra.mxu0 0
    %1986 = vmatprep.subr.bf16.mxu0 0
    %1987 = vmatpush2.bf16.msra.mxu0 0
    %1988 = vmatprep.mubr.bf16.mxu0 0
    %1989 = vmatmul.mubr.bf16.gmra.mxu0 %v1792
    %v1990 = vpop.f32.mrf.mxu0
    %v1991 = vadd.f32 %v1938, %v1990
    %v1992 = vpop.f32.mrf.mxu0
    %v1993 = vadd.f32 %v1940, %v1992
    %v1994 = vpop.f32.mrf.mxu0
    %v1995 = vadd.f32 %v1942, %v1994
    %v1996 = vpop.f32.mrf.mxu0
    %v1997 = vadd.f32 %v1944, %v1996
    %1998 = vmatprep.mubr.bf16.mxu0 0
    %1999 = vmatmul.mubr.bf16.gmra.mxu0 %v1795
    %v2000 = vpop.f32.mrf.mxu0
    %v2001 = vadd.f32 %v1948, %v2000
    %v2002 = vpop.f32.mrf.mxu0
    %v2003 = vadd.f32 %v1950, %v2002
    %v2004 = vpop.f32.mrf.mxu0
    %v2005 = vadd.f32 %v1952, %v2004
    %v2006 = vpop.f32.mrf.mxu0
    %v2007 = vadd.f32 %v1954, %v2006
    %2008 = vdwg.mxu0
    %v2009 = vmax.f32 %v1885, 0.0
    %v2010 = vmax.f32 %v1887, 0.0
    %v2011 = vmax.f32 %v1991, 0.0
    %v2012 = vmax.f32 %v1993, 0.0
    %v2013 = vmax.f32 %v1889, 0.0
    %v2014 = vmax.f32 %v1891, 0.0
    %v2015 = vmax.f32 %v1995, 0.0
    %v2016 = vmax.f32 %v1997, 0.0
    %v2017 = vmax.f32 %v1895, 0.0
    %v2018 = vmax.f32 %v1897, 0.0
    %v2019 = vmax.f32 %v2001, 0.0
    %v2020 = vmax.f32 %v2003, 0.0
    %v2021 = vmax.f32 %v1899, 0.0
    %v2022 = vmax.f32 %v1901, 0.0
    %v2023 = vmax.f32 %v2005, 0.0
    %v2024 = vmax.f32 %v2007, 0.0
    %v2025 = vld [vmem:[%s6] sm:$0xff]
    %v2026 = vld [vmem:[%s6 + $0x8] sm:$0xff]
    %v2027 = vld [vmem:[%s6 + $0x10] sm:$0xff]
    %v2028 = vld [vmem:[%s6 + $0x18] sm:$0xff]
    %2029 = vrot.lane.b32.xlu0 %v2009, 17
    %v2030 = vpop.permute.xlu0 %2029
    %2031 = vrot.lane.b32.xlu0 %v2013, 17
    %v2032 = vpop.permute.xlu0 %2031
    %2033 = vrot.lane.b32.xlu0 %v2017, 17
    %v2034 = vpop.permute.xlu0 %2033
    %2035 = vrot.lane.b32.xlu0 %v2021, 17
    %v2036 = vpop.permute.xlu0 %2035
    %2037 = vrot.lane.b32.xlu0 %v2010, 17
    %v2038 = vpop.permute.xlu0 %2037
    %2039 = vrot.lane.b32.xlu0 %v2014, 17
    %v2040 = vpop.permute.xlu0 %2039
    %2041 = vrot.lane.b32.xlu0 %v2018, 17
    %v2042 = vpop.permute.xlu0 %2041
    %2043 = vrot.lane.b32.xlu0 %v2022, 17
    %v2044 = vpop.permute.xlu0 %2043
    %2045 = vrot.lane.b32.xlu0 %v2011, 17
    %v2046 = vpop.permute.xlu0 %2045
    %2047 = vrot.lane.b32.xlu0 %v2015, 17
    %v2048 = vpop.permute.xlu0 %2047
    %2049 = vrot.lane.b32.xlu0 %v2019, 17
    %v2050 = vpop.permute.xlu0 %2049
    %2051 = vrot.lane.b32.xlu0 %v2023, 17
    %v2052 = vpop.permute.xlu0 %2051
    %2053 = vrot.lane.b32.xlu0 %v2012, 17
    %v2054 = vpop.permute.xlu0 %2053
    %2055 = vrot.lane.b32.xlu0 %v2016, 17
    %v2056 = vpop.permute.xlu0 %2055
    %2057 = vrot.lane.b32.xlu0 %v2020, 17
    %v2058 = vpop.permute.xlu0 %2057
    %2059 = vrot.lane.b32.xlu0 %v2024, 17
    %v2060 = vpop.permute.xlu0 %2059
    %v2061 = vsel %vm180, %v2046, %v2054
    %v2062 = vsel %vm180, %v2048, %v2056
    %v2063 = vsel %vm180, %v2050, %v2058
    %v2064 = vsel %vm180, %v2052, %v2060
    %v2065 = vsel %vm180, %v2038, %v2046
    %v2066 = vsel %vm180, %v2040, %v2048
    %v2067 = vsel %vm180, %v2042, %v2050
    %v2068 = vsel %vm180, %v2044, %v2052
    %v2069 = vsel %vm180, %v2030, %v2038
    %v2070 = vsel %vm180, %v2032, %v2040
    %v2071 = vsel %vm180, %v2034, %v2042
    %v2072 = vsel %vm180, %v2036, %v2044
    %v2073 = vsel %vm180, %v2054, %v2030
    %v2074 = vsel %vm180, %v2056, %v2032
    %v2075 = vsel %vm180, %v2058, %v2034
    %v2076 = vsel %vm180, %v2060, %v2036
    %v2077 = vmul.f32 %v2073, %v200
    %v2078 = vmul.f32 %v2069, %v204
    %v2079 = vmul.f32 %v2065, %v208
    %v2080 = vmul.f32 %v2061, %v212
    %v2081 = vmul.f32 %v2074, %v200
    %v2082 = vmul.f32 %v2070, %v204
    %v2083 = vmul.f32 %v2066, %v208
    %v2084 = vmul.f32 %v2062, %v212
    %v2085 = vmul.f32 %v2075, %v200
    %v2086 = vmul.f32 %v2071, %v204
    %v2087 = vmul.f32 %v2067, %v208
    %v2088 = vmul.f32 %v2063, %v212
    %v2089 = vmul.f32 %v2076, %v200
    %v2090 = vmul.f32 %v2072, %v204
    %v2091 = vmul.f32 %v2068, %v208
    %v2092 = vmul.f32 %v2064, %v212
    %v2093 = vpack.c.bf16 %v2081, %v2077
    %v2094 = vpack.c.bf16 %v2082, %v2078
    %v2095 = vpack.c.bf16 %v2083, %v2079
    %v2096 = vpack.c.bf16 %v2084, %v2080
    %v2097 = vpack.c.bf16 %v2089, %v2085
    %v2098 = vpack.c.bf16 %v2090, %v2086
    %v2099 = vpack.c.bf16 %v2091, %v2087
    %v2100 = vpack.c.bf16 %v2092, %v2088
    %v2109 = vunpack.c.l.b16 %v2093
    %v2110 = vunpack.c.l.b16 %v2094
    %v2111 = vunpack.c.l.b16 %v2095
    %v2112 = vunpack.c.l.b16 %v2096
    %v2113 = vunpack.c.h.b16 %v2093
    %v2114 = vunpack.c.h.b16 %v2094
    %v2115 = vunpack.c.h.b16 %v2095
    %v2116 = vunpack.c.h.b16 %v2096
    %v2117 = vunpack.c.l.b16 %v2097
    %v2118 = vunpack.c.l.b16 %v2098
    %v2119 = vunpack.c.l.b16 %v2099
    %v2120 = vunpack.c.l.b16 %v2100
    %v2121 = vunpack.c.h.b16 %v2097
    %v2122 = vunpack.c.h.b16 %v2098
    %v2123 = vunpack.c.h.b16 %v2099
    %v2124 = vunpack.c.h.b16 %v2100
    %v2125 = vpack.c.b16 %v2110, %v2109
    %v2126 = vpack.c.b16 %v2112, %v2111
    %v2127 = vpack.c.b16 %v2114, %v2113
    %v2128 = vpack.c.b16 %v2116, %v2115
    %v2129 = vpack.c.b16 %v2118, %v2117
    %v2130 = vpack.c.b16 %v2120, %v2119
    %v2131 = vpack.c.b16 %v2122, %v2121
    %v2132 = vpack.c.b16 %v2124, %v2123
    %2141 = vst [vmem:[#allocation2] sm:$0xff] %v2125
    %2142 = vst [vmem:[#allocation2 + $0x8] sm:$0xff] %v2126
    %2143 = vst [vmem:[#allocation2 + $0x10] sm:$0xff] %v2127
    %2144 = vst [vmem:[#allocation2 + $0x18] sm:$0xff] %v2128
    %2145 = vst [vmem:[#allocation2 + $0x20] sm:$0xff] %v2129
    %2146 = vst [vmem:[#allocation2 + $0x28] sm:$0xff] %v2130
    %2147 = vst [vmem:[#allocation2 + $0x30] sm:$0xff] %v2131
    %2148 = vst [vmem:[#allocation2 + $0x38] sm:$0xff] %v2132
    %2149 = vrot.lane.b32.xlu0 %v2009, 16
    %v2150 = vpop.permute.xlu0 %2149
    %2151 = vrot.lane.b32.xlu0 %v2013, 16
    %v2152 = vpop.permute.xlu0 %2151
    %2153 = vrot.lane.b32.xlu0 %v2017, 16
    %v2154 = vpop.permute.xlu0 %2153
    %2155 = vrot.lane.b32.xlu0 %v2021, 16
    %v2156 = vpop.permute.xlu0 %2155
    %2157 = vrot.lane.b32.xlu0 %v2010, 16
    %v2158 = vpop.permute.xlu0 %2157
    %2159 = vrot.lane.b32.xlu0 %v2014, 16
    %v2160 = vpop.permute.xlu0 %2159
    %2161 = vrot.lane.b32.xlu0 %v2018, 16
    %v2162 = vpop.permute.xlu0 %2161
    %2163 = vrot.lane.b32.xlu0 %v2022, 16
    %v2164 = vpop.permute.xlu0 %2163
    %2165 = vrot.lane.b32.xlu0 %v2011, 16
    %v2166 = vpop.permute.xlu0 %2165
    %2167 = vrot.lane.b32.xlu0 %v2015, 16
    %v2168 = vpop.permute.xlu0 %2167
    %2169 = vrot.lane.b32.xlu0 %v2019, 16
    %v2170 = vpop.permute.xlu0 %2169
    %2171 = vrot.lane.b32.xlu0 %v2023, 16
    %v2172 = vpop.permute.xlu0 %2171
    %2173 = vrot.lane.b32.xlu0 %v2012, 16
    %v2174 = vpop.permute.xlu0 %2173
    %2175 = vrot.lane.b32.xlu0 %v2016, 16
    %v2176 = vpop.permute.xlu0 %2175
    %2177 = vrot.lane.b32.xlu0 %v2020, 16
    %v2178 = vpop.permute.xlu0 %2177
    %2179 = vrot.lane.b32.xlu0 %v2024, 16
    %v2180 = vpop.permute.xlu0 %2179
    %v2181 = vsel %vm317, %v2166, %v2174
    %v2182 = vsel %vm317, %v2168, %v2176
    %v2183 = vsel %vm317, %v2170, %v2178
    %v2184 = vsel %vm317, %v2172, %v2180
    %v2185 = vsel %vm317, %v2158, %v2166
    %v2186 = vsel %vm317, %v2160, %v2168
    %v2187 = vsel %vm317, %v2162, %v2170
    %v2188 = vsel %vm317, %v2164, %v2172
    %v2189 = vsel %vm317, %v2150, %v2158
    %v2190 = vsel %vm317, %v2152, %v2160
    %v2191 = vsel %vm317, %v2154, %v2162
    %v2192 = vsel %vm317, %v2156, %v2164
    %v2193 = vsel %vm317, %v2174, %v2150
    %v2194 = vsel %vm317, %v2176, %v2152
    %v2195 = vsel %vm317, %v2178, %v2154
    %v2196 = vsel %vm317, %v2180, %v2156
    %v2197 = vmul.f32 %v2193, %v337
    %v2198 = vmul.f32 %v2189, %v341
    %v2199 = vmul.f32 %v2185, %v345
    %v2200 = vmul.f32 %v2181, %v349
    %v2201 = vmul.f32 %v2194, %v337
    %v2202 = vmul.f32 %v2190, %v341
    %v2203 = vmul.f32 %v2186, %v345
    %v2204 = vmul.f32 %v2182, %v349
    %v2205 = vmul.f32 %v2195, %v337
    %v2206 = vmul.f32 %v2191, %v341
    %v2207 = vmul.f32 %v2187, %v345
    %v2208 = vmul.f32 %v2183, %v349
    %v2209 = vmul.f32 %v2196, %v337
    %v2210 = vmul.f32 %v2192, %v341
    %v2211 = vmul.f32 %v2188, %v345
    %v2212 = vmul.f32 %v2184, %v349
    %v2213 = vpack.c.bf16 %v2201, %v2197
    %v2214 = vpack.c.bf16 %v2202, %v2198
    %v2215 = vpack.c.bf16 %v2203, %v2199
    %v2216 = vpack.c.bf16 %v2204, %v2200
    %v2217 = vpack.c.bf16 %v2209, %v2205
    %v2218 = vpack.c.bf16 %v2210, %v2206
    %v2219 = vpack.c.bf16 %v2211, %v2207
    %v2220 = vpack.c.bf16 %v2212, %v2208
    %v2229 = vunpack.c.l.b16 %v2213
    %v2230 = vunpack.c.l.b16 %v2214
    %v2231 = vunpack.c.l.b16 %v2215
    %v2232 = vunpack.c.l.b16 %v2216
    %v2233 = vunpack.c.h.b16 %v2213
    %v2234 = vunpack.c.h.b16 %v2214
    %v2235 = vunpack.c.h.b16 %v2215
    %v2236 = vunpack.c.h.b16 %v2216
    %v2237 = vunpack.c.l.b16 %v2217
    %v2238 = vunpack.c.l.b16 %v2218
    %v2239 = vunpack.c.l.b16 %v2219
    %v2240 = vunpack.c.l.b16 %v2220
    %v2241 = vunpack.c.h.b16 %v2217
    %v2242 = vunpack.c.h.b16 %v2218
    %v2243 = vunpack.c.h.b16 %v2219
    %v2244 = vunpack.c.h.b16 %v2220
    %v2245 = vpack.c.b16 %v2230, %v2229
    %v2246 = vpack.c.b16 %v2232, %v2231
    %v2247 = vpack.c.b16 %v2234, %v2233
    %v2248 = vpack.c.b16 %v2236, %v2235
    %v2249 = vpack.c.b16 %v2238, %v2237
    %v2250 = vpack.c.b16 %v2240, %v2239
    %v2251 = vpack.c.b16 %v2242, %v2241
    %v2252 = vpack.c.b16 %v2244, %v2243
    %2261 = vst [vmem:[#allocation2 + $0x40] sm:$0xff] %v2245
    %2262 = vst [vmem:[#allocation2 + $0x48] sm:$0xff] %v2246
    %2263 = vst [vmem:[#allocation2 + $0x50] sm:$0xff] %v2247
    %2264 = vst [vmem:[#allocation2 + $0x58] sm:$0xff] %v2248
    %2265 = vst [vmem:[#allocation2 + $0x60] sm:$0xff] %v2249
    %2266 = vst [vmem:[#allocation2 + $0x68] sm:$0xff] %v2250
    %2267 = vst [vmem:[#allocation2 + $0x70] sm:$0xff] %v2251
    %2268 = vst [vmem:[#allocation2 + $0x78] sm:$0xff] %v2252
    %2269 = vrot.lane.b32.xlu0 %v2009, 15
    %v2270 = vpop.permute.xlu0 %2269
    %2271 = vrot.lane.b32.xlu0 %v2013, 15
    %v2272 = vpop.permute.xlu0 %2271
    %2273 = vrot.lane.b32.xlu0 %v2017, 15
    %v2274 = vpop.permute.xlu0 %2273
    %2275 = vrot.lane.b32.xlu0 %v2021, 15
    %v2276 = vpop.permute.xlu0 %2275
    %2277 = vrot.lane.b32.xlu0 %v2010, 15
    %v2278 = vpop.permute.xlu0 %2277
    %2279 = vrot.lane.b32.xlu0 %v2014, 15
    %v2280 = vpop.permute.xlu0 %2279
    %2281 = vrot.lane.b32.xlu0 %v2018, 15
    %v2282 = vpop.permute.xlu0 %2281
    %2283 = vrot.lane.b32.xlu0 %v2022, 15
    %v2284 = vpop.permute.xlu0 %2283
    %2285 = vrot.lane.b32.xlu0 %v2011, 15
    %v2286 = vpop.permute.xlu0 %2285
    %2287 = vrot.lane.b32.xlu0 %v2015, 15
    %v2288 = vpop.permute.xlu0 %2287
    %2289 = vrot.lane.b32.xlu0 %v2019, 15
    %v2290 = vpop.permute.xlu0 %2289
    %2291 = vrot.lane.b32.xlu0 %v2023, 15
    %v2292 = vpop.permute.xlu0 %2291
    %2293 = vrot.lane.b32.xlu0 %v2012, 15
    %v2294 = vpop.permute.xlu0 %2293
    %2295 = vrot.lane.b32.xlu0 %v2016, 15
    %v2296 = vpop.permute.xlu0 %2295
    %2297 = vrot.lane.b32.xlu0 %v2020, 15
    %v2298 = vpop.permute.xlu0 %2297
    %2299 = vrot.lane.b32.xlu0 %v2024, 15
    %v2300 = vpop.permute.xlu0 %2299
    %v2301 = vsel %vm454, %v2286, %v2294
    %v2302 = vsel %vm454, %v2288, %v2296
    %v2303 = vsel %vm454, %v2290, %v2298
    %v2304 = vsel %vm454, %v2292, %v2300
    %v2305 = vsel %vm454, %v2278, %v2286
    %v2306 = vsel %vm454, %v2280, %v2288
    %v2307 = vsel %vm454, %v2282, %v2290
    %v2308 = vsel %vm454, %v2284, %v2292
    %v2309 = vsel %vm454, %v2270, %v2278
    %v2310 = vsel %vm454, %v2272, %v2280
    %v2311 = vsel %vm454, %v2274, %v2282
    %v2312 = vsel %vm454, %v2276, %v2284
    %v2313 = vsel %vm454, %v2294, %v2270
    %v2314 = vsel %vm454, %v2296, %v2272
    %v2315 = vsel %vm454, %v2298, %v2274
    %v2316 = vsel %vm454, %v2300, %v2276
    %v2317 = vmul.f32 %v2313, %v474
    %v2318 = vmul.f32 %v2309, %v478
    %v2319 = vmul.f32 %v2305, %v482
    %v2320 = vmul.f32 %v2301, %v486
    %v2321 = vmul.f32 %v2314, %v474
    %v2322 = vmul.f32 %v2310, %v478
    %v2323 = vmul.f32 %v2306, %v482
    %v2324 = vmul.f32 %v2302, %v486
    %v2325 = vmul.f32 %v2315, %v474
    %v2326 = vmul.f32 %v2311, %v478
    %v2327 = vmul.f32 %v2307, %v482
    %v2328 = vmul.f32 %v2303, %v486
    %v2329 = vmul.f32 %v2316, %v474
    %v2330 = vmul.f32 %v2312, %v478
    %v2331 = vmul.f32 %v2308, %v482
    %v2332 = vmul.f32 %v2304, %v486
    %v2333 = vpack.c.bf16 %v2321, %v2317
    %v2334 = vpack.c.bf16 %v2322, %v2318
    %v2335 = vpack.c.bf16 %v2323, %v2319
    %v2336 = vpack.c.bf16 %v2324, %v2320
    %v2337 = vpack.c.bf16 %v2329, %v2325
    %v2338 = vpack.c.bf16 %v2330, %v2326
    %v2339 = vpack.c.bf16 %v2331, %v2327
    %v2340 = vpack.c.bf16 %v2332, %v2328
    %v2349 = vunpack.c.l.b16 %v2333
    %v2350 = vunpack.c.l.b16 %v2334
    %v2351 = vunpack.c.l.b16 %v2335
    %v2352 = vunpack.c.l.b16 %v2336
    %v2353 = vunpack.c.h.b16 %v2333
    %v2354 = vunpack.c.h.b16 %v2334
    %v2355 = vunpack.c.h.b16 %v2335
    %v2356 = vunpack.c.h.b16 %v2336
    %v2357 = vunpack.c.l.b16 %v2337
    %v2358 = vunpack.c.l.b16 %v2338
    %v2359 = vunpack.c.l.b16 %v2339
    %v2360 = vunpack.c.l.b16 %v2340
    %v2361 = vunpack.c.h.b16 %v2337
    %v2362 = vunpack.c.h.b16 %v2338
    %v2363 = vunpack.c.h.b16 %v2339
    %v2364 = vunpack.c.h.b16 %v2340
    %v2365 = vpack.c.b16 %v2350, %v2349
    %v2366 = vpack.c.b16 %v2352, %v2351
    %v2367 = vpack.c.b16 %v2354, %v2353
    %v2368 = vpack.c.b16 %v2356, %v2355
    %v2369 = vpack.c.b16 %v2358, %v2357
    %v2370 = vpack.c.b16 %v2360, %v2359
    %v2371 = vpack.c.b16 %v2362, %v2361
    %v2372 = vpack.c.b16 %v2364, %v2363
    %2381 = vst [vmem:[#allocation2 + $0x80] sm:$0xff] %v2365
    %2382 = vst [vmem:[#allocation2 + $0x88] sm:$0xff] %v2366
    %2383 = vst [vmem:[#allocation2 + $0x90] sm:$0xff] %v2367
    %2384 = vst [vmem:[#allocation2 + $0x98] sm:$0xff] %v2368
    %2385 = vst [vmem:[#allocation2 + $0xa0] sm:$0xff] %v2369
    %2386 = vst [vmem:[#allocation2 + $0xa8] sm:$0xff] %v2370
    %2387 = vst [vmem:[#allocation2 + $0xb0] sm:$0xff] %v2371
    %2388 = vst [vmem:[#allocation2 + $0xb8] sm:$0xff] %v2372
    %2389 = vrot.lane.b32.xlu0 %v2009, 1
    %v2390 = vpop.permute.xlu0 %2389
    %2391 = vrot.lane.b32.xlu0 %v2013, 1
    %v2392 = vpop.permute.xlu0 %2391
    %2393 = vrot.lane.b32.xlu0 %v2017, 1
    %v2394 = vpop.permute.xlu0 %2393
    %2395 = vrot.lane.b32.xlu0 %v2021, 1
    %v2396 = vpop.permute.xlu0 %2395
    %2397 = vrot.lane.b32.xlu0 %v2010, 1
    %v2398 = vpop.permute.xlu0 %2397
    %2399 = vrot.lane.b32.xlu0 %v2014, 1
    %v2400 = vpop.permute.xlu0 %2399
    %2401 = vrot.lane.b32.xlu0 %v2018, 1
    %v2402 = vpop.permute.xlu0 %2401
    %2403 = vrot.lane.b32.xlu0 %v2022, 1
    %v2404 = vpop.permute.xlu0 %2403
    %2405 = vrot.lane.b32.xlu0 %v2011, 1
    %v2406 = vpop.permute.xlu0 %2405
    %2407 = vrot.lane.b32.xlu0 %v2015, 1
    %v2408 = vpop.permute.xlu0 %2407
    %2409 = vrot.lane.b32.xlu0 %v2019, 1
    %v2410 = vpop.permute.xlu0 %2409
    %2411 = vrot.lane.b32.xlu0 %v2023, 1
    %v2412 = vpop.permute.xlu0 %2411
    %2413 = vrot.lane.b32.xlu0 %v2012, 1
    %v2414 = vpop.permute.xlu0 %2413
    %2415 = vrot.lane.b32.xlu0 %v2016, 1
    %v2416 = vpop.permute.xlu0 %2415
    %2417 = vrot.lane.b32.xlu0 %v2020, 1
    %v2418 = vpop.permute.xlu0 %2417
    %2419 = vrot.lane.b32.xlu0 %v2024, 1
    %v2420 = vpop.permute.xlu0 %2419
    %v2421 = vsel %vm591, %v2406, %v2414
    %v2422 = vsel %vm591, %v2408, %v2416
    %v2423 = vsel %vm591, %v2410, %v2418
    %v2424 = vsel %vm591, %v2412, %v2420
    %v2425 = vsel %vm591, %v2398, %v2406
    %v2426 = vsel %vm591, %v2400, %v2408
    %v2427 = vsel %vm591, %v2402, %v2410
    %v2428 = vsel %vm591, %v2404, %v2412
    %v2429 = vsel %vm591, %v2390, %v2398
    %v2430 = vsel %vm591, %v2392, %v2400
    %v2431 = vsel %vm591, %v2394, %v2402
    %v2432 = vsel %vm591, %v2396, %v2404
    %v2433 = vsel %vm591, %v2414, %v2390
    %v2434 = vsel %vm591, %v2416, %v2392
    %v2435 = vsel %vm591, %v2418, %v2394
    %v2436 = vsel %vm591, %v2420, %v2396
    %v2437 = vmul.f32 %v2433, %v611
    %v2438 = vmul.f32 %v2429, %v615
    %v2439 = vmul.f32 %v2425, %v619
    %v2440 = vmul.f32 %v2421, %v623
    %v2441 = vmul.f32 %v2434, %v611
    %v2442 = vmul.f32 %v2430, %v615
    %v2443 = vmul.f32 %v2426, %v619
    %v2444 = vmul.f32 %v2422, %v623
    %v2445 = vmul.f32 %v2435, %v611
    %v2446 = vmul.f32 %v2431, %v615
    %v2447 = vmul.f32 %v2427, %v619
    %v2448 = vmul.f32 %v2423, %v623
    %v2449 = vmul.f32 %v2436, %v611
    %v2450 = vmul.f32 %v2432, %v615
    %v2451 = vmul.f32 %v2428, %v619
    %v2452 = vmul.f32 %v2424, %v623
    %v2453 = vpack.c.bf16 %v2441, %v2437
    %v2454 = vpack.c.bf16 %v2442, %v2438
    %v2455 = vpack.c.bf16 %v2443, %v2439
    %v2456 = vpack.c.bf16 %v2444, %v2440
    %v2457 = vpack.c.bf16 %v2449, %v2445
    %v2458 = vpack.c.bf16 %v2450, %v2446
    %v2459 = vpack.c.bf16 %v2451, %v2447
    %v2460 = vpack.c.bf16 %v2452, %v2448
    %v2469 = vunpack.c.l.b16 %v2453
    %v2470 = vunpack.c.l.b16 %v2454
    %v2471 = vunpack.c.l.b16 %v2455
    %v2472 = vunpack.c.l.b16 %v2456
    %v2473 = vunpack.c.h.b16 %v2453
    %v2474 = vunpack.c.h.b16 %v2454
    %v2475 = vunpack.c.h.b16 %v2455
    %v2476 = vunpack.c.h.b16 %v2456
    %v2477 = vunpack.c.l.b16 %v2457
    %v2478 = vunpack.c.l.b16 %v2458
    %v2479 = vunpack.c.l.b16 %v2459
    %v2480 = vunpack.c.l.b16 %v2460
    %v2481 = vunpack.c.h.b16 %v2457
    %v2482 = vunpack.c.h.b16 %v2458
    %v2483 = vunpack.c.h.b16 %v2459
    %v2484 = vunpack.c.h.b16 %v2460
    %v2485 = vpack.c.b16 %v2470, %v2469
    %v2486 = vpack.c.b16 %v2472, %v2471
    %v2487 = vpack.c.b16 %v2474, %v2473
    %v2488 = vpack.c.b16 %v2476, %v2475
    %v2489 = vpack.c.b16 %v2478, %v2477
    %v2490 = vpack.c.b16 %v2480, %v2479
    %v2491 = vpack.c.b16 %v2482, %v2481
    %v2492 = vpack.c.b16 %v2484, %v2483
    %2501 = vst [vmem:[#allocation2 + $0xc0] sm:$0xff] %v2485
    %2502 = vst [vmem:[#allocation2 + $0xc8] sm:$0xff] %v2486
    %2503 = vst [vmem:[#allocation2 + $0xd0] sm:$0xff] %v2487
    %2504 = vst [vmem:[#allocation2 + $0xd8] sm:$0xff] %v2488
    %2505 = vst [vmem:[#allocation2 + $0xe0] sm:$0xff] %v2489
    %2506 = vst [vmem:[#allocation2 + $0xe8] sm:$0xff] %v2490
    %2507 = vst [vmem:[#allocation2 + $0xf0] sm:$0xff] %v2491
    %2508 = vst [vmem:[#allocation2 + $0xf8] sm:$0xff] %v2492
    %v2509 = vpack.c.bf16 %v2013, %v2009
    %v2510 = vpack.c.bf16 %v2014, %v2010
    %v2511 = vpack.c.bf16 %v2015, %v2011
    %v2512 = vpack.c.bf16 %v2016, %v2012
    %v2513 = vpack.c.bf16 %v2021, %v2017
    %v2514 = vpack.c.bf16 %v2022, %v2018
    %v2515 = vpack.c.bf16 %v2023, %v2019
    %v2516 = vpack.c.bf16 %v2024, %v2020
    %v2525 = vunpack.c.l.b16 %v2509
    %v2526 = vunpack.c.l.b16 %v2510
    %v2527 = vunpack.c.l.b16 %v2511
    %v2528 = vunpack.c.l.b16 %v2512
    %v2529 = vunpack.c.h.b16 %v2509
    %v2530 = vunpack.c.h.b16 %v2510
    %v2531 = vunpack.c.h.b16 %v2511
    %v2532 = vunpack.c.h.b16 %v2512
    %v2533 = vunpack.c.l.b16 %v2513
    %v2534 = vunpack.c.l.b16 %v2514
    %v2535 = vunpack.c.l.b16 %v2515
    %v2536 = vunpack.c.l.b16 %v2516
    %v2537 = vunpack.c.h.b16 %v2513
    %v2538 = vunpack.c.h.b16 %v2514
    %v2539 = vunpack.c.h.b16 %v2515
    %v2540 = vunpack.c.h.b16 %v2516
    %v2541 = vpack.c.b16 %v2526, %v2525
    %v2542 = vpack.c.b16 %v2528, %v2527
    %v2543 = vpack.c.b16 %v2530, %v2529
    %v2544 = vpack.c.b16 %v2532, %v2531
    %v2545 = vpack.c.b16 %v2534, %v2533
    %v2546 = vpack.c.b16 %v2536, %v2535
    %v2547 = vpack.c.b16 %v2538, %v2537
    %v2548 = vpack.c.b16 %v2540, %v2539
    %2557 = vst [vmem:[#allocation2 + $0x100] sm:$0xff] %v2541
    %2558 = vst [vmem:[#allocation2 + $0x108] sm:$0xff] %v2542
    %2559 = vst [vmem:[#allocation2 + $0x110] sm:$0xff] %v2543
    %2560 = vst [vmem:[#allocation2 + $0x118] sm:$0xff] %v2544
    %2561 = vst [vmem:[#allocation2 + $0x120] sm:$0xff] %v2545
    %2562 = vst [vmem:[#allocation2 + $0x128] sm:$0xff] %v2546
    %2563 = vst [vmem:[#allocation2 + $0x130] sm:$0xff] %v2547
    %2564 = vst [vmem:[#allocation2 + $0x138] sm:$0xff] %v2548
    %2565 = vrot.lane.b32.xlu0 %v2009, 127
    %v2566 = vpop.permute.xlu0 %2565
    %2567 = vrot.lane.b32.xlu0 %v2013, 127
    %v2568 = vpop.permute.xlu0 %2567
    %2569 = vrot.lane.b32.xlu0 %v2017, 127
    %v2570 = vpop.permute.xlu0 %2569
    %2571 = vrot.lane.b32.xlu0 %v2021, 127
    %v2572 = vpop.permute.xlu0 %2571
    %2573 = vrot.lane.b32.xlu0 %v2010, 127
    %v2574 = vpop.permute.xlu0 %2573
    %2575 = vrot.lane.b32.xlu0 %v2014, 127
    %v2576 = vpop.permute.xlu0 %2575
    %2577 = vrot.lane.b32.xlu0 %v2018, 127
    %v2578 = vpop.permute.xlu0 %2577
    %2579 = vrot.lane.b32.xlu0 %v2022, 127
    %v2580 = vpop.permute.xlu0 %2579
    %2581 = vrot.lane.b32.xlu0 %v2011, 127
    %v2582 = vpop.permute.xlu0 %2581
    %2583 = vrot.lane.b32.xlu0 %v2015, 127
    %v2584 = vpop.permute.xlu0 %2583
    %2585 = vrot.lane.b32.xlu0 %v2019, 127
    %v2586 = vpop.permute.xlu0 %2585
    %2587 = vrot.lane.b32.xlu0 %v2023, 127
    %v2588 = vpop.permute.xlu0 %2587
    %2589 = vrot.lane.b32.xlu0 %v2012, 127
    %v2590 = vpop.permute.xlu0 %2589
    %2591 = vrot.lane.b32.xlu0 %v2016, 127
    %v2592 = vpop.permute.xlu0 %2591
    %2593 = vrot.lane.b32.xlu0 %v2020, 127
    %v2594 = vpop.permute.xlu0 %2593
    %2595 = vrot.lane.b32.xlu0 %v2024, 127
    %v2596 = vpop.permute.xlu0 %2595
    %v2597 = vsel %vm784, %v2582, %v2590
    %v2598 = vsel %vm784, %v2584, %v2592
    %v2599 = vsel %vm784, %v2586, %v2594
    %v2600 = vsel %vm784, %v2588, %v2596
    %v2601 = vsel %vm784, %v2574, %v2582
    %v2602 = vsel %vm784, %v2576, %v2584
    %v2603 = vsel %vm784, %v2578, %v2586
    %v2604 = vsel %vm784, %v2580, %v2588
    %v2605 = vsel %vm784, %v2566, %v2574
    %v2606 = vsel %vm784, %v2568, %v2576
    %v2607 = vsel %vm784, %v2570, %v2578
    %v2608 = vsel %vm784, %v2572, %v2580
    %v2609 = vsel %vm784, %v2590, %v2566
    %v2610 = vsel %vm784, %v2592, %v2568
    %v2611 = vsel %vm784, %v2594, %v2570
    %v2612 = vsel %vm784, %v2596, %v2572
    %v2613 = vmul.f32 %v2605, %v804
    %v2614 = vmul.f32 %v2601, %v808
    %v2615 = vmul.f32 %v2597, %v812
    %v2616 = vmul.f32 %v2609, %v816
    %v2617 = vmul.f32 %v2606, %v804
    %v2618 = vmul.f32 %v2602, %v808
    %v2619 = vmul.f32 %v2598, %v812
    %v2620 = vmul.f32 %v2610, %v816
    %v2621 = vmul.f32 %v2607, %v804
    %v2622 = vmul.f32 %v2603, %v808
    %v2623 = vmul.f32 %v2599, %v812
    %v2624 = vmul.f32 %v2611, %v816
    %v2625 = vmul.f32 %v2608, %v804
    %v2626 = vmul.f32 %v2604, %v808
    %v2627 = vmul.f32 %v2600, %v812
    %v2628 = vmul.f32 %v2612, %v816
    %v2629 = vpack.c.bf16 %v2617, %v2613
    %v2630 = vpack.c.bf16 %v2618, %v2614
    %v2631 = vpack.c.bf16 %v2619, %v2615
    %v2632 = vpack.c.bf16 %v2620, %v2616
    %v2633 = vpack.c.bf16 %v2625, %v2621
    %v2634 = vpack.c.bf16 %v2626, %v2622
    %v2635 = vpack.c.bf16 %v2627, %v2623
    %v2636 = vpack.c.bf16 %v2628, %v2624
    %v2645 = vunpack.c.l.b16 %v2629
    %v2646 = vunpack.c.l.b16 %v2630
    %v2647 = vunpack.c.l.b16 %v2631
    %v2648 = vunpack.c.l.b16 %v2632
    %v2649 = vunpack.c.h.b16 %v2629
    %v2650 = vunpack.c.h.b16 %v2630
    %v2651 = vunpack.c.h.b16 %v2631
    %v2652 = vunpack.c.h.b16 %v2632
    %v2653 = vunpack.c.l.b16 %v2633
    %v2654 = vunpack.c.l.b16 %v2634
    %v2655 = vunpack.c.l.b16 %v2635
    %v2656 = vunpack.c.l.b16 %v2636
    %v2657 = vunpack.c.h.b16 %v2633
    %v2658 = vunpack.c.h.b16 %v2634
    %v2659 = vunpack.c.h.b16 %v2635
    %v2660 = vunpack.c.h.b16 %v2636
    %v2661 = vpack.c.b16 %v2646, %v2645
    %v2662 = vpack.c.b16 %v2648, %v2647
    %v2663 = vpack.c.b16 %v2650, %v2649
    %v2664 = vpack.c.b16 %v2652, %v2651
    %v2665 = vpack.c.b16 %v2654, %v2653
    %v2666 = vpack.c.b16 %v2656, %v2655
    %v2667 = vpack.c.b16 %v2658, %v2657
    %v2668 = vpack.c.b16 %v2660, %v2659
    %2677 = vst [vmem:[#allocation2 + $0x140] sm:$0xff] %v2661
    %2678 = vst [vmem:[#allocation2 + $0x148] sm:$0xff] %v2662
    %2679 = vst [vmem:[#allocation2 + $0x150] sm:$0xff] %v2663
    %2680 = vst [vmem:[#allocation2 + $0x158] sm:$0xff] %v2664
    %2681 = vst [vmem:[#allocation2 + $0x160] sm:$0xff] %v2665
    %2682 = vst [vmem:[#allocation2 + $0x168] sm:$0xff] %v2666
    %2683 = vst [vmem:[#allocation2 + $0x170] sm:$0xff] %v2667
    %2684 = vst [vmem:[#allocation2 + $0x178] sm:$0xff] %v2668
    %2685 = vrot.lane.b32.xlu0 %v2009, 113
    %v2686 = vpop.permute.xlu0 %2685
    %2687 = vrot.lane.b32.xlu0 %v2013, 113
    %v2688 = vpop.permute.xlu0 %2687
    %2689 = vrot.lane.b32.xlu0 %v2017, 113
    %v2690 = vpop.permute.xlu0 %2689
    %2691 = vrot.lane.b32.xlu0 %v2021, 113
    %v2692 = vpop.permute.xlu0 %2691
    %2693 = vrot.lane.b32.xlu0 %v2010, 113
    %v2694 = vpop.permute.xlu0 %2693
    %2695 = vrot.lane.b32.xlu0 %v2014, 113
    %v2696 = vpop.permute.xlu0 %2695
    %2697 = vrot.lane.b32.xlu0 %v2018, 113
    %v2698 = vpop.permute.xlu0 %2697
    %2699 = vrot.lane.b32.xlu0 %v2022, 113
    %v2700 = vpop.permute.xlu0 %2699
    %2701 = vrot.lane.b32.xlu0 %v2011, 113
    %v2702 = vpop.permute.xlu0 %2701
    %2703 = vrot.lane.b32.xlu0 %v2015, 113
    %v2704 = vpop.permute.xlu0 %2703
    %2705 = vrot.lane.b32.xlu0 %v2019, 113
    %v2706 = vpop.permute.xlu0 %2705
    %2707 = vrot.lane.b32.xlu0 %v2023, 113
    %v2708 = vpop.permute.xlu0 %2707
    %2709 = vrot.lane.b32.xlu0 %v2012, 113
    %v2710 = vpop.permute.xlu0 %2709
    %2711 = vrot.lane.b32.xlu0 %v2016, 113
    %v2712 = vpop.permute.xlu0 %2711
    %2713 = vrot.lane.b32.xlu0 %v2020, 113
    %v2714 = vpop.permute.xlu0 %2713
    %2715 = vrot.lane.b32.xlu0 %v2024, 113
    %v2716 = vpop.permute.xlu0 %2715
    %v2717 = vsel %vm921, %v2702, %v2710
    %v2718 = vsel %vm921, %v2704, %v2712
    %v2719 = vsel %vm921, %v2706, %v2714
    %v2720 = vsel %vm921, %v2708, %v2716
    %v2721 = vsel %vm921, %v2694, %v2702
    %v2722 = vsel %vm921, %v2696, %v2704
    %v2723 = vsel %vm921, %v2698, %v2706
    %v2724 = vsel %vm921, %v2700, %v2708
    %v2725 = vsel %vm921, %v2686, %v2694
    %v2726 = vsel %vm921, %v2688, %v2696
    %v2727 = vsel %vm921, %v2690, %v2698
    %v2728 = vsel %vm921, %v2692, %v2700
    %v2729 = vsel %vm921, %v2710, %v2686
    %v2730 = vsel %vm921, %v2712, %v2688
    %v2731 = vsel %vm921, %v2714, %v2690
    %v2732 = vsel %vm921, %v2716, %v2692
    %v2733 = vmul.f32 %v2725, %v941
    %v2734 = vmul.f32 %v2721, %v945
    %v2735 = vmul.f32 %v2717, %v949
    %v2736 = vmul.f32 %v2729, %v953
    %v2737 = vmul.f32 %v2726, %v941
    %v2738 = vmul.f32 %v2722, %v945
    %v2739 = vmul.f32 %v2718, %v949
    %v2740 = vmul.f32 %v2730, %v953
    %v2741 = vmul.f32 %v2727, %v941
    %v2742 = vmul.f32 %v2723, %v945
    %v2743 = vmul.f32 %v2719, %v949
    %v2744 = vmul.f32 %v2731, %v953
    %v2745 = vmul.f32 %v2728, %v941
    %v2746 = vmul.f32 %v2724, %v945
    %v2747 = vmul.f32 %v2720, %v949
    %v2748 = vmul.f32 %v2732, %v953
    %v2749 = vpack.c.bf16 %v2737, %v2733
    %v2750 = vpack.c.bf16 %v2738, %v2734
    %v2751 = vpack.c.bf16 %v2739, %v2735
    %v2752 = vpack.c.bf16 %v2740, %v2736
    %v2753 = vpack.c.bf16 %v2745, %v2741
    %v2754 = vpack.c.bf16 %v2746, %v2742
    %v2755 = vpack.c.bf16 %v2747, %v2743
    %v2756 = vpack.c.bf16 %v2748, %v2744
    %v2765 = vunpack.c.l.b16 %v2749
    %v2766 = vunpack.c.l.b16 %v2750
    %v2767 = vunpack.c.l.b16 %v2751
    %v2768 = vunpack.c.l.b16 %v2752
    %v2769 = vunpack.c.h.b16 %v2749
    %v2770 = vunpack.c.h.b16 %v2750
    %v2771 = vunpack.c.h.b16 %v2751
    %v2772 = vunpack.c.h.b16 %v2752
    %v2773 = vunpack.c.l.b16 %v2753
    %v2774 = vunpack.c.l.b16 %v2754
    %v2775 = vunpack.c.l.b16 %v2755
    %v2776 = vunpack.c.l.b16 %v2756
    %v2777 = vunpack.c.h.b16 %v2753
    %v2778 = vunpack.c.h.b16 %v2754
    %v2779 = vunpack.c.h.b16 %v2755
    %v2780 = vunpack.c.h.b16 %v2756
    %v2781 = vpack.c.b16 %v2766, %v2765
    %v2782 = vpack.c.b16 %v2768, %v2767
    %v2783 = vpack.c.b16 %v2770, %v2769
    %v2784 = vpack.c.b16 %v2772, %v2771
    %v2785 = vpack.c.b16 %v2774, %v2773
    %v2786 = vpack.c.b16 %v2776, %v2775
    %v2787 = vpack.c.b16 %v2778, %v2777
    %v2788 = vpack.c.b16 %v2780, %v2779
    %2797 = vst [vmem:[#allocation2 + $0x180] sm:$0xff] %v2781
    %2798 = vst [vmem:[#allocation2 + $0x188] sm:$0xff] %v2782
    %2799 = vst [vmem:[#allocation2 + $0x190] sm:$0xff] %v2783
    %2800 = vst [vmem:[#allocation2 + $0x198] sm:$0xff] %v2784
    %2801 = vst [vmem:[#allocation2 + $0x1a0] sm:$0xff] %v2785
    %2802 = vst [vmem:[#allocation2 + $0x1a8] sm:$0xff] %v2786
    %2803 = vst [vmem:[#allocation2 + $0x1b0] sm:$0xff] %v2787
    %2804 = vst [vmem:[#allocation2 + $0x1b8] sm:$0xff] %v2788
    %2805 = vrot.lane.b32.xlu0 %v2009, 112
    %v2806 = vpop.permute.xlu0 %2805
    %2807 = vrot.lane.b32.xlu0 %v2013, 112
    %v2808 = vpop.permute.xlu0 %2807
    %2809 = vrot.lane.b32.xlu0 %v2017, 112
    %v2810 = vpop.permute.xlu0 %2809
    %2811 = vrot.lane.b32.xlu0 %v2021, 112
    %v2812 = vpop.permute.xlu0 %2811
    %2813 = vrot.lane.b32.xlu0 %v2010, 112
    %v2814 = vpop.permute.xlu0 %2813
    %2815 = vrot.lane.b32.xlu0 %v2014, 112
    %v2816 = vpop.permute.xlu0 %2815
    %2817 = vrot.lane.b32.xlu0 %v2018, 112
    %v2818 = vpop.permute.xlu0 %2817
    %2819 = vrot.lane.b32.xlu0 %v2022, 112
    %v2820 = vpop.permute.xlu0 %2819
    %2821 = vrot.lane.b32.xlu0 %v2011, 112
    %v2822 = vpop.permute.xlu0 %2821
    %2823 = vrot.lane.b32.xlu0 %v2015, 112
    %v2824 = vpop.permute.xlu0 %2823
    %2825 = vrot.lane.b32.xlu0 %v2019, 112
    %v2826 = vpop.permute.xlu0 %2825
    %2827 = vrot.lane.b32.xlu0 %v2023, 112
    %v2828 = vpop.permute.xlu0 %2827
    %2829 = vrot.lane.b32.xlu0 %v2012, 112
    %v2830 = vpop.permute.xlu0 %2829
    %2831 = vrot.lane.b32.xlu0 %v2016, 112
    %v2832 = vpop.permute.xlu0 %2831
    %2833 = vrot.lane.b32.xlu0 %v2020, 112
    %v2834 = vpop.permute.xlu0 %2833
    %2835 = vrot.lane.b32.xlu0 %v2024, 112
    %v2836 = vpop.permute.xlu0 %2835
    %v2837 = vsel %vm1058, %v2822, %v2830
    %v2838 = vsel %vm1058, %v2824, %v2832
    %v2839 = vsel %vm1058, %v2826, %v2834
    %v2840 = vsel %vm1058, %v2828, %v2836
    %v2841 = vsel %vm1058, %v2814, %v2822
    %v2842 = vsel %vm1058, %v2816, %v2824
    %v2843 = vsel %vm1058, %v2818, %v2826
    %v2844 = vsel %vm1058, %v2820, %v2828
    %v2845 = vsel %vm1058, %v2806, %v2814
    %v2846 = vsel %vm1058, %v2808, %v2816
    %v2847 = vsel %vm1058, %v2810, %v2818
    %v2848 = vsel %vm1058, %v2812, %v2820
    %v2849 = vsel %vm1058, %v2830, %v2806
    %v2850 = vsel %vm1058, %v2832, %v2808
    %v2851 = vsel %vm1058, %v2834, %v2810
    %v2852 = vsel %vm1058, %v2836, %v2812
    %v2853 = vmul.f32 %v2845, %v1078
    %v2854 = vmul.f32 %v2841, %v1082
    %v2855 = vmul.f32 %v2837, %v1086
    %v2856 = vmul.f32 %v2849, %v1090
    %v2857 = vmul.f32 %v2846, %v1078
    %v2858 = vmul.f32 %v2842, %v1082
    %v2859 = vmul.f32 %v2838, %v1086
    %v2860 = vmul.f32 %v2850, %v1090
    %v2861 = vmul.f32 %v2847, %v1078
    %v2862 = vmul.f32 %v2843, %v1082
    %v2863 = vmul.f32 %v2839, %v1086
    %v2864 = vmul.f32 %v2851, %v1090
    %v2865 = vmul.f32 %v2848, %v1078
    %v2866 = vmul.f32 %v2844, %v1082
    %v2867 = vmul.f32 %v2840, %v1086
    %v2868 = vmul.f32 %v2852, %v1090
    %v2869 = vpack.c.bf16 %v2857, %v2853
    %v2870 = vpack.c.bf16 %v2858, %v2854
    %v2871 = vpack.c.bf16 %v2859, %v2855
    %v2872 = vpack.c.bf16 %v2860, %v2856
    %v2873 = vpack.c.bf16 %v2865, %v2861
    %v2874 = vpack.c.bf16 %v2866, %v2862
    %v2875 = vpack.c.bf16 %v2867, %v2863
    %v2876 = vpack.c.bf16 %v2868, %v2864
    %v2885 = vunpack.c.l.b16 %v2869
    %v2886 = vunpack.c.l.b16 %v2870
    %v2887 = vunpack.c.l.b16 %v2871
    %v2888 = vunpack.c.l.b16 %v2872
    %v2889 = vunpack.c.h.b16 %v2869
    %v2890 = vunpack.c.h.b16 %v2870
    %v2891 = vunpack.c.h.b16 %v2871
    %v2892 = vunpack.c.h.b16 %v2872
    %v2893 = vunpack.c.l.b16 %v2873
    %v2894 = vunpack.c.l.b16 %v2874
    %v2895 = vunpack.c.l.b16 %v2875
    %v2896 = vunpack.c.l.b16 %v2876
    %v2897 = vunpack.c.h.b16 %v2873
    %v2898 = vunpack.c.h.b16 %v2874
    %v2899 = vunpack.c.h.b16 %v2875
    %v2900 = vunpack.c.h.b16 %v2876
    %v2901 = vpack.c.b16 %v2886, %v2885
    %v2902 = vpack.c.b16 %v2888, %v2887
    %v2903 = vpack.c.b16 %v2890, %v2889
    %v2904 = vpack.c.b16 %v2892, %v2891
    %v2905 = vpack.c.b16 %v2894, %v2893
    %v2906 = vpack.c.b16 %v2896, %v2895
    %v2907 = vpack.c.b16 %v2898, %v2897
    %v2908 = vpack.c.b16 %v2900, %v2899
    %2917 = vst [vmem:[#allocation2 + $0x1c0] sm:$0xff] %v2901
    %2918 = vst [vmem:[#allocation2 + $0x1c8] sm:$0xff] %v2902
    %2919 = vst [vmem:[#allocation2 + $0x1d0] sm:$0xff] %v2903
    %2920 = vst [vmem:[#allocation2 + $0x1d8] sm:$0xff] %v2904
    %2921 = vst [vmem:[#allocation2 + $0x1e0] sm:$0xff] %v2905
    %2922 = vst [vmem:[#allocation2 + $0x1e8] sm:$0xff] %v2906
    %2923 = vst [vmem:[#allocation2 + $0x1f0] sm:$0xff] %v2907
    %2924 = vst [vmem:[#allocation2 + $0x1f8] sm:$0xff] %v2908
    %2925 = vrot.lane.b32.xlu0 %v2009, 111
    %v2926 = vpop.permute.xlu0 %2925
    %2927 = vrot.lane.b32.xlu0 %v2013, 111
    %v2928 = vpop.permute.xlu0 %2927
    %2929 = vrot.lane.b32.xlu0 %v2017, 111
    %v2930 = vpop.permute.xlu0 %2929
    %2931 = vrot.lane.b32.xlu0 %v2021, 111
    %v2932 = vpop.permute.xlu0 %2931
    %2933 = vrot.lane.b32.xlu0 %v2010, 111
    %v2934 = vpop.permute.xlu0 %2933
    %2935 = vrot.lane.b32.xlu0 %v2014, 111
    %v2936 = vpop.permute.xlu0 %2935
    %2937 = vrot.lane.b32.xlu0 %v2018, 111
    %v2938 = vpop.permute.xlu0 %2937
    %2939 = vrot.lane.b32.xlu0 %v2022, 111
    %v2940 = vpop.permute.xlu0 %2939
    %2941 = vrot.lane.b32.xlu0 %v2011, 111
    %v2942 = vpop.permute.xlu0 %2941
    %2943 = vrot.lane.b32.xlu0 %v2015, 111
    %v2944 = vpop.permute.xlu0 %2943
    %2945 = vrot.lane.b32.xlu0 %v2019, 111
    %v2946 = vpop.permute.xlu0 %2945
    %2947 = vrot.lane.b32.xlu0 %v2023, 111
    %v2948 = vpop.permute.xlu0 %2947
    %2949 = vrot.lane.b32.xlu0 %v2012, 111
    %v2950 = vpop.permute.xlu0 %2949
    %2951 = vrot.lane.b32.xlu0 %v2016, 111
    %v2952 = vpop.permute.xlu0 %2951
    %2953 = vrot.lane.b32.xlu0 %v2020, 111
    %v2954 = vpop.permute.xlu0 %2953
    %2955 = vrot.lane.b32.xlu0 %v2024, 111
    %v2956 = vpop.permute.xlu0 %2955
    %v2957 = vsel %vm1195, %v2942, %v2950
    %v2958 = vsel %vm1195, %v2944, %v2952
    %v2959 = vsel %vm1195, %v2946, %v2954
    %v2960 = vsel %vm1195, %v2948, %v2956
    %v2961 = vsel %vm1195, %v2934, %v2942
    %v2962 = vsel %vm1195, %v2936, %v2944
    %v2963 = vsel %vm1195, %v2938, %v2946
    %v2964 = vsel %vm1195, %v2940, %v2948
    %v2965 = vsel %vm1195, %v2926, %v2934
    %v2966 = vsel %vm1195, %v2928, %v2936
    %v2967 = vsel %vm1195, %v2930, %v2938
    %v2968 = vsel %vm1195, %v2932, %v2940
    %v2969 = vsel %vm1195, %v2950, %v2926
    %v2970 = vsel %vm1195, %v2952, %v2928
    %v2971 = vsel %vm1195, %v2954, %v2930
    %v2972 = vsel %vm1195, %v2956, %v2932
    %v2973 = vmul.f32 %v2965, %v1215
    %v2974 = vmul.f32 %v2961, %v1219
    %v2975 = vmul.f32 %v2957, %v1223
    %v2976 = vmul.f32 %v2969, %v1227
    %v2977 = vmul.f32 %v2966, %v1215
    %v2978 = vmul.f32 %v2962, %v1219
    %v2979 = vmul.f32 %v2958, %v1223
    %v2980 = vmul.f32 %v2970, %v1227
    %v2981 = vmul.f32 %v2967, %v1215
    %v2982 = vmul.f32 %v2963, %v1219
    %v2983 = vmul.f32 %v2959, %v1223
    %v2984 = vmul.f32 %v2971, %v1227
    %v2985 = vmul.f32 %v2968, %v1215
    %v2986 = vmul.f32 %v2964, %v1219
    %v2987 = vmul.f32 %v2960, %v1223
    %v2988 = vmul.f32 %v2972, %v1227
    %v2989 = vpack.c.bf16 %v2977, %v2973
    %v2990 = vpack.c.bf16 %v2978, %v2974
    %v2991 = vpack.c.bf16 %v2979, %v2975
    %v2992 = vpack.c.bf16 %v2980, %v2976
    %v2993 = vpack.c.bf16 %v2985, %v2981
    %v2994 = vpack.c.bf16 %v2986, %v2982
    %v2995 = vpack.c.bf16 %v2987, %v2983
    %v2996 = vpack.c.bf16 %v2988, %v2984
    %v3005 = vunpack.c.l.b16 %v2989
    %v3006 = vunpack.c.l.b16 %v2990
    %v3007 = vunpack.c.l.b16 %v2991
    %v3008 = vunpack.c.l.b16 %v2992
    %v3009 = vunpack.c.h.b16 %v2989
    %v3010 = vunpack.c.h.b16 %v2990
    %v3011 = vunpack.c.h.b16 %v2991
    %v3012 = vunpack.c.h.b16 %v2992
    %v3013 = vunpack.c.l.b16 %v2993
    %v3014 = vunpack.c.l.b16 %v2994
    %v3015 = vunpack.c.l.b16 %v2995
    %v3016 = vunpack.c.l.b16 %v2996
    %v3017 = vunpack.c.h.b16 %v2993
    %v3018 = vunpack.c.h.b16 %v2994
    %v3019 = vunpack.c.h.b16 %v2995
    %v3020 = vunpack.c.h.b16 %v2996
    %v3021 = vpack.c.b16 %v3006, %v3005
    %v3022 = vpack.c.b16 %v3008, %v3007
    %v3023 = vpack.c.b16 %v3010, %v3009
    %v3024 = vpack.c.b16 %v3012, %v3011
    %v3025 = vpack.c.b16 %v3014, %v3013
    %v3026 = vpack.c.b16 %v3016, %v3015
    %v3027 = vpack.c.b16 %v3018, %v3017
    %v3028 = vpack.c.b16 %v3020, %v3019
    %3037 = vst [vmem:[#allocation2 + $0x200] sm:$0xff] %v3021
    %3038 = vst [vmem:[#allocation2 + $0x208] sm:$0xff] %v3022
    %3039 = vst [vmem:[#allocation2 + $0x210] sm:$0xff] %v3023
    %3040 = vst [vmem:[#allocation2 + $0x218] sm:$0xff] %v3024
    %3041 = vst [vmem:[#allocation2 + $0x220] sm:$0xff] %v3025
    %3042 = vst [vmem:[#allocation2 + $0x228] sm:$0xff] %v3026
    %3043 = vst [vmem:[#allocation2 + $0x230] sm:$0xff] %v3027
    %3044 = vst [vmem:[#allocation2 + $0x238] sm:$0xff] %v3028
    %v3045 = vld [vmem:[#allocation10] sm:$0xff]
    %v3046 = vld [vmem:[#allocation10 + $0x8] sm:$0xf]
    %v3047 = vld [vmem:[#allocation10 + $0xc] sm:$0xff]
    %v3048 = vld [vmem:[#allocation10 + $0x14] sm:$0xf]
    %v3049 = vld [vmem:[#allocation10 + $0x18] sm:$0xff]
    %v3050 = vld [vmem:[#allocation10 + $0x20] sm:$0xf]
    %v3051 = vld [vmem:[#allocation10 + $0x24] sm:$0xff]
    %v3052 = vld [vmem:[#allocation10 + $0x2c] sm:$0xf]
    %v3053 = vld [vmem:[#allocation2] sm:$0xff]
    %v3054 = vld [vmem:[#allocation2 + $0x8] sm:$0xff]
    %v3055 = vld [vmem:[#allocation2 + $0x10] sm:$0xff]
    %v3056 = vld [vmem:[#allocation2 + $0x18] sm:$0xff]
    %v3057 = vld [vmem:[#allocation2 + $0x20] sm:$0xff]
    %v3058 = vld [vmem:[#allocation2 + $0x28] sm:$0xff]
    %v3059 = vld [vmem:[#allocation2 + $0x30] sm:$0xff]
    %v3060 = vld [vmem:[#allocation2 + $0x38] sm:$0xff]
    %v3061 = vld [vmem:[#allocation2 + $0x40] sm:$0xff]
    %v3062 = vld [vmem:[#allocation2 + $0x48] sm:$0xff]
    %v3063 = vld [vmem:[#allocation2 + $0x50] sm:$0xff]
    %v3064 = vld [vmem:[#allocation2 + $0x58] sm:$0xff]
    %v3065 = vld [vmem:[#allocation2 + $0x60] sm:$0xff]
    %v3066 = vld [vmem:[#allocation2 + $0x68] sm:$0xff]
    %v3067 = vld [vmem:[#allocation2 + $0x70] sm:$0xff]
    %v3068 = vld [vmem:[#allocation2 + $0x78] sm:$0xff]
    %v3069 = vld [vmem:[#allocation2 + $0x80] sm:$0xff]
    %v3070 = vld [vmem:[#allocation2 + $0x88] sm:$0xff]
    %v3071 = vld [vmem:[#allocation2 + $0x90] sm:$0xff]
    %v3072 = vld [vmem:[#allocation2 + $0x98] sm:$0xff]
    %v3073 = vld [vmem:[#allocation2 + $0xa0] sm:$0xff]
    %v3074 = vld [vmem:[#allocation2 + $0xa8] sm:$0xff]
    %v3075 = vld [vmem:[#allocation2 + $0xb0] sm:$0xff]
    %v3076 = vld [vmem:[#allocation2 + $0xb8] sm:$0xff]
    %v3077 = vld [vmem:[#allocation2 + $0xc0] sm:$0xff]
    %v3078 = vld [vmem:[#allocation2 + $0xc8] sm:$0xff]
    %v3079 = vld [vmem:[#allocation2 + $0xd0] sm:$0xff]
    %v3080 = vld [vmem:[#allocation2 + $0xd8] sm:$0xff]
    %v3081 = vld [vmem:[#allocation2 + $0xe0] sm:$0xff]
    %v3082 = vld [vmem:[#allocation2 + $0xe8] sm:$0xff]
    %v3083 = vld [vmem:[#allocation2 + $0xf0] sm:$0xff]
    %v3084 = vld [vmem:[#allocation2 + $0xf8] sm:$0xff]
    %v3085 = vld [vmem:[#allocation2 + $0x100] sm:$0xff]
    %v3086 = vld [vmem:[#allocation2 + $0x108] sm:$0xff]
    %v3087 = vld [vmem:[#allocation2 + $0x110] sm:$0xff]
    %v3088 = vld [vmem:[#allocation2 + $0x118] sm:$0xff]
    %v3089 = vld [vmem:[#allocation2 + $0x120] sm:$0xff]
    %v3090 = vld [vmem:[#allocation2 + $0x128] sm:$0xff]
    %v3091 = vld [vmem:[#allocation2 + $0x130] sm:$0xff]
    %v3092 = vld [vmem:[#allocation2 + $0x138] sm:$0xff]
    %v3093 = vld [vmem:[#allocation2 + $0x140] sm:$0xff]
    %v3094 = vld [vmem:[#allocation2 + $0x148] sm:$0xff]
    %v3095 = vld [vmem:[#allocation2 + $0x150] sm:$0xff]
    %v3096 = vld [vmem:[#allocation2 + $0x158] sm:$0xff]
    %v3097 = vld [vmem:[#allocation2 + $0x160] sm:$0xff]
    %v3098 = vld [vmem:[#allocation2 + $0x168] sm:$0xff]
    %v3099 = vld [vmem:[#allocation2 + $0x170] sm:$0xff]
    %v3100 = vld [vmem:[#allocation2 + $0x178] sm:$0xff]
    %v3101 = vld [vmem:[#allocation2 + $0x180] sm:$0xff]
    %v3102 = vld [vmem:[#allocation2 + $0x188] sm:$0xff]
    %v3103 = vld [vmem:[#allocation2 + $0x190] sm:$0xff]
    %v3104 = vld [vmem:[#allocation2 + $0x198] sm:$0xff]
    %v3105 = vld [vmem:[#allocation2 + $0x1a0] sm:$0xff]
    %v3106 = vld [vmem:[#allocation2 + $0x1a8] sm:$0xff]
    %v3107 = vld [vmem:[#allocation2 + $0x1b0] sm:$0xff]
    %v3108 = vld [vmem:[#allocation2 + $0x1b8] sm:$0xff]
    %v3109 = vld [vmem:[#allocation2 + $0x1c0] sm:$0xff]
    %v3110 = vld [vmem:[#allocation2 + $0x1c8] sm:$0xff]
    %v3111 = vld [vmem:[#allocation2 + $0x1d0] sm:$0xff]
    %v3112 = vld [vmem:[#allocation2 + $0x1d8] sm:$0xff]
    %v3113 = vld [vmem:[#allocation2 + $0x1e0] sm:$0xff]
    %v3114 = vld [vmem:[#allocation2 + $0x1e8] sm:$0xff]
    %v3115 = vld [vmem:[#allocation2 + $0x1f0] sm:$0xff]
    %v3116 = vld [vmem:[#allocation2 + $0x1f8] sm:$0xff]
    %v3117 = vld [vmem:[#allocation2 + $0x200] sm:$0xff]
    %v3118 = vld [vmem:[#allocation2 + $0x208] sm:$0xff]
    %v3119 = vld [vmem:[#allocation2 + $0x210] sm:$0xff]
    %v3120 = vld [vmem:[#allocation2 + $0x218] sm:$0xff]
    %v3121 = vld [vmem:[#allocation2 + $0x220] sm:$0xff]
    %v3122 = vld [vmem:[#allocation2 + $0x228] sm:$0xff]
    %v3123 = vld [vmem:[#allocation2 + $0x230] sm:$0xff]
    %v3124 = vld [vmem:[#allocation2 + $0x238] sm:$0xff]
    %3126 = vset.pattern.permute.xlu0 0
    %3127 = vperm.xlu0 %3126, %v2025
    %v3128 = vpop.permute.xlu0 %3127
    %3131 = vset.pattern.permute.xlu0 0
    %3132 = vperm.xlu0 %3131, %v2026
    %v3133 = vpop.permute.xlu0 %3132
    %3136 = vset.pattern.permute.xlu0 0
    %3137 = vperm.xlu0 %3136, %v2027
    %v3138 = vpop.permute.xlu0 %3137
    %3141 = vset.pattern.permute.xlu0 0
    %3142 = vperm.xlu0 %3141, %v2028
    %v3143 = vpop.permute.xlu0 %3142
    %v3153 = vunpack.c.l.b16 %v3045
    %v3154 = vunpack.c.h.b16 %v3045
    %v3155 = vunpack.c.l.b16 %v3046
    %v3156 = vunpack.c.l.b16 %v3047
    %v3157 = vunpack.c.h.b16 %v3047
    %v3158 = vunpack.c.l.b16 %v3048
    %v3159 = vunpack.c.l.b16 %v3049
    %v3160 = vunpack.c.h.b16 %v3049
    %v3161 = vunpack.c.l.b16 %v3050
    %v3162 = vunpack.c.l.b16 %v3051
    %v3163 = vunpack.c.h.b16 %v3051
    %v3164 = vunpack.c.l.b16 %v3052
    %v3165 = vpack.c.b16 %v3156, %v3153
    %v3166 = vpack.c.b16 %v3157, %v3154
    %v3167 = vpack.c.b16 %v3158, %v3155
    %v3168 = vpack.c.b16 %v3162, %v3159
    %v3169 = vpack.c.b16 %v3163, %v3160
    %v3170 = vpack.c.b16 %v3164, %v3161
    %v3247 = vunpack.c.l.b16 %v3053
    %v3248 = vunpack.c.h.b16 %v3053
    %v3249 = vunpack.c.l.b16 %v3054
    %v3250 = vunpack.c.h.b16 %v3054
    %v3251 = vunpack.c.l.b16 %v3055
    %v3252 = vunpack.c.h.b16 %v3055
    %v3253 = vunpack.c.l.b16 %v3056
    %v3254 = vunpack.c.h.b16 %v3056
    %v3255 = vunpack.c.l.b16 %v3057
    %v3256 = vunpack.c.h.b16 %v3057
    %v3257 = vunpack.c.l.b16 %v3058
    %v3258 = vunpack.c.h.b16 %v3058
    %v3259 = vunpack.c.l.b16 %v3059
    %v3260 = vunpack.c.h.b16 %v3059
    %v3261 = vunpack.c.l.b16 %v3060
    %v3262 = vunpack.c.h.b16 %v3060
    %v3263 = vunpack.c.l.b16 %v3061
    %v3264 = vunpack.c.h.b16 %v3061
    %v3265 = vunpack.c.l.b16 %v3062
    %v3266 = vunpack.c.h.b16 %v3062
    %v3267 = vunpack.c.l.b16 %v3063
    %v3268 = vunpack.c.h.b16 %v3063
    %v3269 = vunpack.c.l.b16 %v3064
    %v3270 = vunpack.c.h.b16 %v3064
    %v3271 = vunpack.c.l.b16 %v3065
    %v3272 = vunpack.c.h.b16 %v3065
    %v3273 = vunpack.c.l.b16 %v3066
    %v3274 = vunpack.c.h.b16 %v3066
    %v3275 = vunpack.c.l.b16 %v3067
    %v3276 = vunpack.c.h.b16 %v3067
    %v3277 = vunpack.c.l.b16 %v3068
    %v3278 = vunpack.c.h.b16 %v3068
    %v3279 = vunpack.c.l.b16 %v3069
    %v3280 = vunpack.c.h.b16 %v3069
    %v3281 = vunpack.c.l.b16 %v3070
    %v3282 = vunpack.c.h.b16 %v3070
    %v3283 = vunpack.c.l.b16 %v3071
    %v3284 = vunpack.c.h.b16 %v3071
    %v3285 = vunpack.c.l.b16 %v3072
    %v3286 = vunpack.c.h.b16 %v3072
    %v3287 = vunpack.c.l.b16 %v3073
    %v3288 = vunpack.c.h.b16 %v3073
    %v3289 = vunpack.c.l.b16 %v3074
    %v3290 = vunpack.c.h.b16 %v3074
    %v3291 = vunpack.c.l.b16 %v3075
    %v3292 = vunpack.c.h.b16 %v3075
    %v3293 = vunpack.c.l.b16 %v3076
    %v3294 = vunpack.c.h.b16 %v3076
    %v3295 = vunpack.c.l.b16 %v3077
    %v3296 = vunpack.c.h.b16 %v3077
    %v3297 = vunpack.c.l.b16 %v3078
    %v3298 = vunpack.c.h.b16 %v3078
    %v3299 = vunpack.c.l.b16 %v3079
    %v3300 = vunpack.c.h.b16 %v3079
    %v3301 = vunpack.c.l.b16 %v3080
    %v3302 = vunpack.c.h.b16 %v3080
    %v3303 = vunpack.c.l.b16 %v3081
    %v3304 = vunpack.c.h.b16 %v3081
    %v3305 = vunpack.c.l.b16 %v3082
    %v3306 = vunpack.c.h.b16 %v3082
    %v3307 = vunpack.c.l.b16 %v3083
    %v3308 = vunpack.c.h.b16 %v3083
    %v3309 = vunpack.c.l.b16 %v3084
    %v3310 = vunpack.c.h.b16 %v3084
    %v3311 = vunpack.c.l.b16 %v3085
    %v3312 = vunpack.c.h.b16 %v3085
    %v3313 = vunpack.c.l.b16 %v3086
    %v3314 = vunpack.c.h.b16 %v3086
    %v3315 = vunpack.c.l.b16 %v3087
    %v3316 = vunpack.c.h.b16 %v3087
    %v3317 = vunpack.c.l.b16 %v3088
    %v3318 = vunpack.c.h.b16 %v3088
    %v3319 = vunpack.c.l.b16 %v3089
    %v3320 = vunpack.c.h.b16 %v3089
    %v3321 = vunpack.c.l.b16 %v3090
    %v3322 = vunpack.c.h.b16 %v3090
    %v3323 = vunpack.c.l.b16 %v3091
    %v3324 = vunpack.c.h.b16 %v3091
    %v3325 = vunpack.c.l.b16 %v3092
    %v3326 = vunpack.c.h.b16 %v3092
    %v3327 = vunpack.c.l.b16 %v3093
    %v3328 = vunpack.c.h.b16 %v3093
    %v3329 = vunpack.c.l.b16 %v3094
    %v3330 = vunpack.c.h.b16 %v3094
    %v3331 = vunpack.c.l.b16 %v3095
    %v3332 = vunpack.c.h.b16 %v3095
    %v3333 = vunpack.c.l.b16 %v3096
    %v3334 = vunpack.c.h.b16 %v3096
    %v3335 = vunpack.c.l.b16 %v3097
    %v3336 = vunpack.c.h.b16 %v3097
    %v3337 = vunpack.c.l.b16 %v3098
    %v3338 = vunpack.c.h.b16 %v3098
    %v3339 = vunpack.c.l.b16 %v3099
    %v3340 = vunpack.c.h.b16 %v3099
    %v3341 = vunpack.c.l.b16 %v3100
    %v3342 = vunpack.c.h.b16 %v3100
    %v3343 = vunpack.c.l.b16 %v3101
    %v3344 = vunpack.c.h.b16 %v3101
    %v3345 = vunpack.c.l.b16 %v3102
    %v3346 = vunpack.c.h.b16 %v3102
    %v3347 = vunpack.c.l.b16 %v3103
    %v3348 = vunpack.c.h.b16 %v3103
    %v3349 = vunpack.c.l.b16 %v3104
    %v3350 = vunpack.c.h.b16 %v3104
    %v3351 = vunpack.c.l.b16 %v3105
    %v3352 = vunpack.c.h.b16 %v3105
    %v3353 = vunpack.c.l.b16 %v3106
    %v3354 = vunpack.c.h.b16 %v3106
    %v3355 = vunpack.c.l.b16 %v3107
    %v3356 = vunpack.c.h.b16 %v3107
    %v3357 = vunpack.c.l.b16 %v3108
    %v3358 = vunpack.c.h.b16 %v3108
    %v3359 = vunpack.c.l.b16 %v3109
    %v3360 = vunpack.c.h.b16 %v3109
    %v3361 = vunpack.c.l.b16 %v3110
    %v3362 = vunpack.c.h.b16 %v3110
    %v3363 = vunpack.c.l.b16 %v3111
    %v3364 = vunpack.c.h.b16 %v3111
    %v3365 = vunpack.c.l.b16 %v3112
    %v3366 = vunpack.c.h.b16 %v3112
    %v3367 = vunpack.c.l.b16 %v3113
    %v3368 = vunpack.c.h.b16 %v3113
    %v3369 = vunpack.c.l.b16 %v3114
    %v3370 = vunpack.c.h.b16 %v3114
    %v3371 = vunpack.c.l.b16 %v3115
    %v3372 = vunpack.c.h.b16 %v3115
    %v3373 = vunpack.c.l.b16 %v3116
    %v3374 = vunpack.c.h.b16 %v3116
    %v3375 = vunpack.c.l.b16 %v3117
    %v3376 = vunpack.c.h.b16 %v3117
    %v3377 = vunpack.c.l.b16 %v3118
    %v3378 = vunpack.c.h.b16 %v3118
    %v3379 = vunpack.c.l.b16 %v3119
    %v3380 = vunpack.c.h.b16 %v3119
    %v3381 = vunpack.c.l.b16 %v3120
    %v3382 = vunpack.c.h.b16 %v3120
    %v3383 = vunpack.c.l.b16 %v3121
    %v3384 = vunpack.c.h.b16 %v3121
    %v3385 = vunpack.c.l.b16 %v3122
    %v3386 = vunpack.c.h.b16 %v3122
    %v3387 = vunpack.c.l.b16 %v3123
    %v3388 = vunpack.c.h.b16 %v3123
    %v3389 = vunpack.c.l.b16 %v3124
    %v3390 = vunpack.c.h.b16 %v3124
    %v3391 = vpack.c.b16 %v3251, %v3247
    %v3392 = vpack.c.b16 %v3252, %v3248
    %v3393 = vpack.c.b16 %v3253, %v3249
    %v3394 = vpack.c.b16 %v3254, %v3250
    %v3395 = vpack.c.b16 %v3259, %v3255
    %v3396 = vpack.c.b16 %v3260, %v3256
    %v3397 = vpack.c.b16 %v3261, %v3257
    %v3398 = vpack.c.b16 %v3262, %v3258
    %v3399 = vpack.c.b16 %v3267, %v3263
    %v3400 = vpack.c.b16 %v3268, %v3264
    %v3401 = vpack.c.b16 %v3269, %v3265
    %v3402 = vpack.c.b16 %v3270, %v3266
    %v3403 = vpack.c.b16 %v3275, %v3271
    %v3404 = vpack.c.b16 %v3276, %v3272
    %v3405 = vpack.c.b16 %v3277, %v3273
    %v3406 = vpack.c.b16 %v3278, %v3274
    %v3407 = vpack.c.b16 %v3283, %v3279
    %v3408 = vpack.c.b16 %v3284, %v3280
    %v3409 = vpack.c.b16 %v3285, %v3281
    %v3410 = vpack.c.b16 %v3286, %v3282
    %v3411 = vpack.c.b16 %v3291, %v3287
    %v3412 = vpack.c.b16 %v3292, %v3288
    %v3413 = vpack.c.b16 %v3293, %v3289
    %v3414 = vpack.c.b16 %v3294, %v3290
    %v3415 = vpack.c.b16 %v3299, %v3295
    %v3416 = vpack.c.b16 %v3300, %v3296
    %v3417 = vpack.c.b16 %v3301, %v3297
    %v3418 = vpack.c.b16 %v3302, %v3298
    %v3419 = vpack.c.b16 %v3307, %v3303
    %v3420 = vpack.c.b16 %v3308, %v3304
    %v3421 = vpack.c.b16 %v3309, %v3305
    %v3422 = vpack.c.b16 %v3310, %v3306
    %v3423 = vpack.c.b16 %v3315, %v3311
    %v3424 = vpack.c.b16 %v3316, %v3312
    %v3425 = vpack.c.b16 %v3317, %v3313
    %v3426 = vpack.c.b16 %v3318, %v3314
    %v3427 = vpack.c.b16 %v3323, %v3319
    %v3428 = vpack.c.b16 %v3324, %v3320
    %v3429 = vpack.c.b16 %v3325, %v3321
    %v3430 = vpack.c.b16 %v3326, %v3322
    %v3431 = vpack.c.b16 %v3331, %v3327
    %v3432 = vpack.c.b16 %v3332, %v3328
    %v3433 = vpack.c.b16 %v3333, %v3329
    %v3434 = vpack.c.b16 %v3334, %v3330
    %v3435 = vpack.c.b16 %v3339, %v3335
    %v3436 = vpack.c.b16 %v3340, %v3336
    %v3437 = vpack.c.b16 %v3341, %v3337
    %v3438 = vpack.c.b16 %v3342, %v3338
    %v3439 = vpack.c.b16 %v3347, %v3343
    %v3440 = vpack.c.b16 %v3348, %v3344
    %v3441 = vpack.c.b16 %v3349, %v3345
    %v3442 = vpack.c.b16 %v3350, %v3346
    %v3443 = vpack.c.b16 %v3355, %v3351
    %v3444 = vpack.c.b16 %v3356, %v3352
    %v3445 = vpack.c.b16 %v3357, %v3353
    %v3446 = vpack.c.b16 %v3358, %v3354
    %v3447 = vpack.c.b16 %v3363, %v3359
    %v3448 = vpack.c.b16 %v3364, %v3360
    %v3449 = vpack.c.b16 %v3365, %v3361
    %v3450 = vpack.c.b16 %v3366, %v3362
    %v3451 = vpack.c.b16 %v3371, %v3367
    %v3452 = vpack.c.b16 %v3372, %v3368
    %v3453 = vpack.c.b16 %v3373, %v3369
    %v3454 = vpack.c.b16 %v3374, %v3370
    %v3455 = vpack.c.b16 %v3379, %v3375
    %v3456 = vpack.c.b16 %v3380, %v3376
    %v3457 = vpack.c.b16 %v3381, %v3377
    %v3458 = vpack.c.b16 %v3382, %v3378
    %v3459 = vpack.c.b16 %v3387, %v3383
    %v3460 = vpack.c.b16 %v3388, %v3384
    %v3461 = vpack.c.b16 %v3389, %v3385
    %v3462 = vpack.c.b16 %v3390, %v3386
    %v3536 = vsel %vm1790, %v3167, 0
    %v3539 = vsel %vm1790, %v3170, 0
    %3541 = vmatprep.subr.bf16.mxu0 %v3420
    %3542 = vmatpush1.bf16.msra.mxu0 %v3419
    %3543 = vmatprep.subr.bf16.mxu0 %v3416
    %3544 = vmatpush1.bf16.msra.mxu0 %v3415
    %3545 = vmatprep.subr.bf16.mxu0 %v3412
    %3546 = vmatpush1.bf16.msra.mxu0 %v3411
    %3547 = vmatprep.subr.bf16.mxu0 %v3408
    %3548 = vmatpush1.bf16.msra.mxu0 %v3407
    %3549 = vmatprep.subr.bf16.mxu0 %v3404
    %3550 = vmatpush1.bf16.msra.mxu0 %v3403
    %3551 = vmatprep.subr.bf16.mxu0 %v3400
    %3552 = vmatpush1.bf16.msra.mxu0 %v3399
    %3553 = vmatprep.subr.bf16.mxu0 %v3396
    %3554 = vmatpush1.bf16.msra.mxu0 %v3395
    %3555 = vmatprep.subr.bf16.mxu0 %v3392
    %3556 = vmatpush1.bf16.msra.mxu0 %v3391
    %3557 = vmatprep.subr.bf16.mxu0 %v3452
    %3558 = vmatpush2.bf16.msra.mxu0 %v3451
    %3559 = vmatprep.subr.bf16.mxu0 %v3448
    %3560 = vmatpush2.bf16.msra.mxu0 %v3447
    %3561 = vmatprep.subr.bf16.mxu0 %v3444
    %3562 = vmatpush2.bf16.msra.mxu0 %v3443
    %3563 = vmatprep.subr.bf16.mxu0 %v3440
    %3564 = vmatpush2.bf16.msra.mxu0 %v3439
    %3565 = vmatprep.subr.bf16.mxu0 %v3436
    %3566 = vmatpush2.bf16.msra.mxu0 %v3435
    %3567 = vmatprep.subr.bf16.mxu0 %v3432
    %3568 = vmatpush2.bf16.msra.mxu0 %v3431
    %3569 = vmatprep.subr.bf16.mxu0 %v3428
    %3570 = vmatpush2.bf16.msra.mxu0 %v3427
    %3571 = vmatprep.subr.bf16.mxu0 %v3424
    %3572 = vmatpush2.bf16.msra.mxu0 %v3423
    %3573 = vmatprep.mubr.bf16.mxu0 %v3166
    %3574 = vmatmul.mubr.bf16.gmra.mxu0 %v3165
    %v3575 = vpop.f32.mrf.mxu0
    %v3576 = vadd.f32 %v3128, %v3575
    %v3577 = vpop.f32.mrf.mxu0
    %v3578 = vadd.f32 %v3128, %v3577
    %v3579 = vpop.f32.mrf.mxu0
    %v3580 = vadd.f32 %v3133, %v3579
    %v3581 = vpop.f32.mrf.mxu0
    %v3582 = vadd.f32 %v3133, %v3581
    %3583 = vmatprep.mubr.bf16.mxu0 %v3169
    %3584 = vmatmul.mubr.bf16.gmra.mxu0 %v3168
    %v3585 = vpop.f32.mrf.mxu0
    %v3586 = vadd.f32 %v3138, %v3585
    %v3587 = vpop.f32.mrf.mxu0
    %v3588 = vadd.f32 %v3138, %v3587
    %v3589 = vpop.f32.mrf.mxu0
    %v3590 = vadd.f32 %v3143, %v3589
    %v3591 = vpop.f32.mrf.mxu0
    %v3592 = vadd.f32 %v3143, %v3591
    %3593 = vdwg.mxu0
    %3594 = vmatprep.subr.bf16.mxu0 0
    %3595 = vmatpush1.bf16.msra.mxu0 0
    %3596 = vmatprep.subr.bf16.mxu0 0
    %3597 = vmatpush1.bf16.msra.mxu0 0
    %3598 = vmatprep.subr.bf16.mxu0 0
    %3599 = vmatpush1.bf16.msra.mxu0 0
    %3600 = vmatprep.subr.bf16.mxu0 0
    %3601 = vmatpush1.bf16.msra.mxu0 0
    %3602 = vmatprep.subr.bf16.mxu0 0
    %3603 = vmatpush1.bf16.msra.mxu0 0
    %3604 = vmatprep.subr.bf16.mxu0 0
    %3605 = vmatpush1.bf16.msra.mxu0 0
    %3606 = vmatprep.subr.bf16.mxu0 %v3460
    %3607 = vmatpush1.bf16.msra.mxu0 %v3459
    %3608 = vmatprep.subr.bf16.mxu0 %v3456
    %3609 = vmatpush1.bf16.msra.mxu0 %v3455
    %3610 = vmatprep.subr.bf16.mxu0 0
    %3611 = vmatpush2.bf16.msra.mxu0 0
    %3612 = vmatprep.subr.bf16.mxu0 0
    %3613 = vmatpush2.bf16.msra.mxu0 0
    %3614 = vmatprep.subr.bf16.mxu0 0
    %3615 = vmatpush2.bf16.msra.mxu0 0
    %3616 = vmatprep.subr.bf16.mxu0 0
    %3617 = vmatpush2.bf16.msra.mxu0 0
    %3618 = vmatprep.subr.bf16.mxu0 0
    %3619 = vmatpush2.bf16.msra.mxu0 0
    %3620 = vmatprep.subr.bf16.mxu0 0
    %3621 = vmatpush2.bf16.msra.mxu0 0
    %3622 = vmatprep.subr.bf16.mxu0 0
    %3623 = vmatpush2.bf16.msra.mxu0 0
    %3624 = vmatprep.subr.bf16.mxu0 0
    %3625 = vmatpush2.bf16.msra.mxu0 0
    %3626 = vmatprep.mubr.bf16.mxu0 0
    %3627 = vmatmul.mubr.bf16.gmra.mxu0 %v3536
    %v3628 = vpop.f32.mrf.mxu0
    %v3629 = vadd.f32 %v3576, %v3628
    %v3630 = vpop.f32.mrf.mxu0
    %v3631 = vadd.f32 %v3578, %v3630
    %v3632 = vpop.f32.mrf.mxu0
    %v3633 = vadd.f32 %v3580, %v3632
    %v3634 = vpop.f32.mrf.mxu0
    %v3635 = vadd.f32 %v3582, %v3634
    %3636 = vmatprep.mubr.bf16.mxu0 0
    %3637 = vmatmul.mubr.bf16.gmra.mxu0 %v3539
    %v3638 = vpop.f32.mrf.mxu0
    %v3639 = vadd.f32 %v3586, %v3638
    %v3640 = vpop.f32.mrf.mxu0
    %v3641 = vadd.f32 %v3588, %v3640
    %v3642 = vpop.f32.mrf.mxu0
    %v3643 = vadd.f32 %v3590, %v3642
    %v3644 = vpop.f32.mrf.mxu0
    %v3645 = vadd.f32 %v3592, %v3644
    %3646 = vdwg.mxu0
    %3647 = vmatprep.subr.bf16.mxu0 %v3422
    %3648 = vmatpush1.bf16.msra.mxu0 %v3421
    %3649 = vmatprep.subr.bf16.mxu0 %v3418
    %3650 = vmatpush1.bf16.msra.mxu0 %v3417
    %3651 = vmatprep.subr.bf16.mxu0 %v3414
    %3652 = vmatpush1.bf16.msra.mxu0 %v3413
    %3653 = vmatprep.subr.bf16.mxu0 %v3410
    %3654 = vmatpush1.bf16.msra.mxu0 %v3409
    %3655 = vmatprep.subr.bf16.mxu0 %v3406
    %3656 = vmatpush1.bf16.msra.mxu0 %v3405
    %3657 = vmatprep.subr.bf16.mxu0 %v3402
    %3658 = vmatpush1.bf16.msra.mxu0 %v3401
    %3659 = vmatprep.subr.bf16.mxu0 %v3398
    %3660 = vmatpush1.bf16.msra.mxu0 %v3397
    %3661 = vmatprep.subr.bf16.mxu0 %v3394
    %3662 = vmatpush1.bf16.msra.mxu0 %v3393
    %3663 = vmatprep.subr.bf16.mxu0 %v3454
    %3664 = vmatpush2.bf16.msra.mxu0 %v3453
    %3665 = vmatprep.subr.bf16.mxu0 %v3450
    %3666 = vmatpush2.bf16.msra.mxu0 %v3449
    %3667 = vmatprep.subr.bf16.mxu0 %v3446
    %3668 = vmatpush2.bf16.msra.mxu0 %v3445
    %3669 = vmatprep.subr.bf16.mxu0 %v3442
    %3670 = vmatpush2.bf16.msra.mxu0 %v3441
    %3671 = vmatprep.subr.bf16.mxu0 %v3438
    %3672 = vmatpush2.bf16.msra.mxu0 %v3437
    %3673 = vmatprep.subr.bf16.mxu0 %v3434
    %3674 = vmatpush2.bf16.msra.mxu0 %v3433
    %3675 = vmatprep.subr.bf16.mxu0 %v3430
    %3676 = vmatpush2.bf16.msra.mxu0 %v3429
    %3677 = vmatprep.subr.bf16.mxu0 %v3426
    %3678 = vmatpush2.bf16.msra.mxu0 %v3425
    %3679 = vmatprep.mubr.bf16.mxu0 %v3166
    %3680 = vmatmul.mubr.bf16.gmra.mxu0 %v3165
    %v3681 = vpop.f32.mrf.mxu0
    %v3682 = vadd.f32 %v3128, %v3681
    %v3683 = vpop.f32.mrf.mxu0
    %v3684 = vadd.f32 %v3128, %v3683
    %v3685 = vpop.f32.mrf.mxu0
    %v3686 = vadd.f32 %v3133, %v3685
    %v3687 = vpop.f32.mrf.mxu0
    %v3688 = vadd.f32 %v3133, %v3687
    %3689 = vmatprep.mubr.bf16.mxu0 %v3169
    %3690 = vmatmul.mubr.bf16.gmra.mxu0 %v3168
    %v3691 = vpop.f32.mrf.mxu0
    %v3692 = vadd.f32 %v3138, %v3691
    %v3693 = vpop.f32.mrf.mxu0
    %v3694 = vadd.f32 %v3138, %v3693
    %v3695 = vpop.f32.mrf.mxu0
    %v3696 = vadd.f32 %v3143, %v3695
    %v3697 = vpop.f32.mrf.mxu0
    %v3698 = vadd.f32 %v3143, %v3697
    %3699 = vdwg.mxu0
    %3700 = vmatprep.subr.bf16.mxu0 0
    %3701 = vmatpush1.bf16.msra.mxu0 0
    %3702 = vmatprep.subr.bf16.mxu0 0
    %3703 = vmatpush1.bf16.msra.mxu0 0
    %3704 = vmatprep.subr.bf16.mxu0 0
    %3705 = vmatpush1.bf16.msra.mxu0 0
    %3706 = vmatprep.subr.bf16.mxu0 0
    %3707 = vmatpush1.bf16.msra.mxu0 0
    %3708 = vmatprep.subr.bf16.mxu0 0
    %3709 = vmatpush1.bf16.msra.mxu0 0
    %3710 = vmatprep.subr.bf16.mxu0 0
    %3711 = vmatpush1.bf16.msra.mxu0 0
    %3712 = vmatprep.subr.bf16.mxu0 %v3462
    %3713 = vmatpush1.bf16.msra.mxu0 %v3461
    %3714 = vmatprep.subr.bf16.mxu0 %v3458
    %3715 = vmatpush1.bf16.msra.mxu0 %v3457
    %3716 = vmatprep.subr.bf16.mxu0 0
    %3717 = vmatpush2.bf16.msra.mxu0 0
    %3718 = vmatprep.subr.bf16.mxu0 0
    %3719 = vmatpush2.bf16.msra.mxu0 0
    %3720 = vmatprep.subr.bf16.mxu0 0
    %3721 = vmatpush2.bf16.msra.mxu0 0
    %3722 = vmatprep.subr.bf16.mxu0 0
    %3723 = vmatpush2.bf16.msra.mxu0 0
    %3724 = vmatprep.subr.bf16.mxu0 0
    %3725 = vmatpush2.bf16.msra.mxu0 0
    %3726 = vmatprep.subr.bf16.mxu0 0
    %3727 = vmatpush2.bf16.msra.mxu0 0
    %3728 = vmatprep.subr.bf16.mxu0 0
    %3729 = vmatpush2.bf16.msra.mxu0 0
    %3730 = vmatprep.subr.bf16.mxu0 0
    %3731 = vmatpush2.bf16.msra.mxu0 0
    %3732 = vmatprep.mubr.bf16.mxu0 0
    %3733 = vmatmul.mubr.bf16.gmra.mxu0 %v3536
    %v3734 = vpop.f32.mrf.mxu0
    %v3735 = vadd.f32 %v3682, %v3734
    %v3736 = vpop.f32.mrf.mxu0
    %v3737 = vadd.f32 %v3684, %v3736
    %v3738 = vpop.f32.mrf.mxu0
    %v3739 = vadd.f32 %v3686, %v3738
    %v3740 = vpop.f32.mrf.mxu0
    %v3741 = vadd.f32 %v3688, %v3740
    %3742 = vmatprep.mubr.bf16.mxu0 0
    %3743 = vmatmul.mubr.bf16.gmra.mxu0 %v3539
    %v3744 = vpop.f32.mrf.mxu0
    %v3745 = vadd.f32 %v3692, %v3744
    %v3746 = vpop.f32.mrf.mxu0
    %v3747 = vadd.f32 %v3694, %v3746
    %v3748 = vpop.f32.mrf.mxu0
    %v3749 = vadd.f32 %v3696, %v3748
    %v3750 = vpop.f32.mrf.mxu0
    %v3751 = vadd.f32 %v3698, %v3750
    %3752 = vdwg.mxu0
    %v3753 = vpack.c.bf16 %v3633, %v3629
    %v3754 = vpack.c.bf16 %v3635, %v3631
    %v3755 = vpack.c.bf16 %v3739, %v3735
    %v3756 = vpack.c.bf16 %v3741, %v3737
    %v3757 = vpack.c.bf16 %v3643, %v3639
    %v3758 = vpack.c.bf16 %v3645, %v3641
    %v3759 = vpack.c.bf16 %v3749, %v3745
    %v3760 = vpack.c.bf16 %v3751, %v3747
    %v3761 = vld [vmem:[%s13] sm:$0xf]
    %v3762 = vld [vmem:[%s13 + $0x4] sm:$0xf]
    %v3763 = vld [vmem:[%s13 + $0x8] sm:$0xf]
    %v3764 = vld [vmem:[%s13 + $0xc] sm:$0xf]
    %v3769 = vunpack.c.l.b16 %v3761
    %v3770 = vunpack.c.l.b16 %v3762
    %v3771 = vunpack.c.l.b16 %v3763
    %v3772 = vunpack.c.l.b16 %v3764
    %v3773 = vpack.c.b16 %v3770, %v3769
    %v3774 = vpack.c.b16 %v3772, %v3771
    %v3776 = vsel %vm1790, %v3773, 0
    %v3779 = vsel %vm1790, %v3774, 0
    %3781 = vmatprep.subr.bf16.mxu0 0
    %3782 = vmatpush1.bf16.msra.mxu0 0
    %3783 = vmatprep.subr.bf16.mxu0 0
    %3784 = vmatpush1.bf16.msra.mxu0 0
    %3785 = vmatprep.subr.bf16.mxu0 0
    %3786 = vmatpush1.bf16.msra.mxu0 0
    %3787 = vmatprep.subr.bf16.mxu0 0
    %3788 = vmatpush1.bf16.msra.mxu0 0
    %3789 = vmatprep.subr.bf16.mxu0 0
    %3790 = vmatpush1.bf16.msra.mxu0 0
    %3791 = vmatprep.subr.bf16.mxu0 0
    %3792 = vmatpush1.bf16.msra.mxu0 0
    %3793 = vmatprep.subr.bf16.mxu0 %v3758
    %3794 = vmatpush1.bf16.msra.mxu0 %v3757
    %3795 = vmatprep.subr.bf16.mxu0 %v3754
    %3796 = vmatpush1.bf16.msra.mxu0 %v3753
    %3797 = vmatprep.subr.bf16.mxu0 0
    %3798 = vmatpush2.bf16.msra.mxu0 0
    %3799 = vmatprep.subr.bf16.mxu0 0
    %3800 = vmatpush2.bf16.msra.mxu0 0
    %3801 = vmatprep.subr.bf16.mxu0 0
    %3802 = vmatpush2.bf16.msra.mxu0 0
    %3803 = vmatprep.subr.bf16.mxu0 0
    %3804 = vmatpush2.bf16.msra.mxu0 0
    %3805 = vmatprep.subr.bf16.mxu0 0
    %3806 = vmatpush2.bf16.msra.mxu0 0
    %3807 = vmatprep.subr.bf16.mxu0 0
    %3808 = vmatpush2.bf16.msra.mxu0 0
    %3809 = vmatprep.subr.bf16.mxu0 0
    %3810 = vmatpush2.bf16.msra.mxu0 0
    %3811 = vmatprep.subr.bf16.mxu0 0
    %3812 = vmatpush2.bf16.msra.mxu0 0
    %3813 = vmatprep.mubr.bf16.mxu0 0
    %3814 = vmatmul.mubr.bf16.gmra.mxu0 %v3776
    %v3815 = vpop.f32.mrf.mxu0
    %v3816 = vadd.f32 0.0, %v3815
    %v3817 = vpop.f32.mrf.mxu0
    %v3818 = vadd.f32 0.0, %v3817
    %v3819 = vpop.f32.mrf.mxu0
    %v3820 = vadd.f32 0.0, %v3819
    %v3821 = vpop.f32.mrf.mxu0
    %v3822 = vadd.f32 0.0, %v3821
    %3823 = vmatprep.mubr.bf16.mxu0 0
    %3824 = vmatmul.mubr.bf16.gmra.mxu0 %v3779
    %v3825 = vpop.f32.mrf.mxu0
    %v3826 = vadd.f32 0.0, %v3825
    %v3827 = vpop.f32.mrf.mxu0
    %v3828 = vadd.f32 0.0, %v3827
    %v3829 = vpop.f32.mrf.mxu0
    %v3830 = vadd.f32 0.0, %v3829
    %v3831 = vpop.f32.mrf.mxu0
    %v3832 = vadd.f32 0.0, %v3831
    %3833 = vdwg.mxu0
    %3834 = vmatprep.subr.bf16.mxu0 0
    %3835 = vmatpush1.bf16.msra.mxu0 0
    %3836 = vmatprep.subr.bf16.mxu0 0
    %3837 = vmatpush1.bf16.msra.mxu0 0
    %3838 = vmatprep.subr.bf16.mxu0 0
    %3839 = vmatpush1.bf16.msra.mxu0 0
    %3840 = vmatprep.subr.bf16.mxu0 0
    %3841 = vmatpush1.bf16.msra.mxu0 0
    %3842 = vmatprep.subr.bf16.mxu0 0
    %3843 = vmatpush1.bf16.msra.mxu0 0
    %3844 = vmatprep.subr.bf16.mxu0 0
    %3845 = vmatpush1.bf16.msra.mxu0 0
    %3846 = vmatprep.subr.bf16.mxu0 %v3760
    %3847 = vmatpush1.bf16.msra.mxu0 %v3759
    %3848 = vmatprep.subr.bf16.mxu0 %v3756
    %3849 = vmatpush1.bf16.msra.mxu0 %v3755
    %3850 = vmatprep.subr.bf16.mxu0 0
    %3851 = vmatpush2.bf16.msra.mxu0 0
    %3852 = vmatprep.subr.bf16.mxu0 0
    %3853 = vmatpush2.bf16.msra.mxu0 0
    %3854 = vmatprep.subr.bf16.mxu0 0
    %3855 = vmatpush2.bf16.msra.mxu0 0
    %3856 = vmatprep.subr.bf16.mxu0 0
    %3857 = vmatpush2.bf16.msra.mxu0 0
    %3858 = vmatprep.subr.bf16.mxu0 0
    %3859 = vmatpush2.bf16.msra.mxu0 0
    %3860 = vmatprep.subr.bf16.mxu0 0
    %3861 = vmatpush2.bf16.msra.mxu0 0
    %3862 = vmatprep.subr.bf16.mxu0 0
    %3863 = vmatpush2.bf16.msra.mxu0 0
    %3864 = vmatprep.subr.bf16.mxu0 0
    %3865 = vmatpush2.bf16.msra.mxu0 0
    %3866 = vmatprep.mubr.bf16.mxu0 0
    %3867 = vmatmul.mubr.bf16.gmra.mxu0 %v3776
    %v3868 = vpop.f32.mrf.mxu0
    %v3869 = vadd.f32 0.0, %v3868
    %v3870 = vpop.f32.mrf.mxu0
    %v3871 = vadd.f32 0.0, %v3870
    %v3872 = vpop.f32.mrf.mxu0
    %v3873 = vadd.f32 0.0, %v3872
    %v3874 = vpop.f32.mrf.mxu0
    %v3875 = vadd.f32 0.0, %v3874
    %3876 = vmatprep.mubr.bf16.mxu0 0
    %3877 = vmatmul.mubr.bf16.gmra.mxu0 %v3779
    %v3878 = vpop.f32.mrf.mxu0
    %v3879 = vadd.f32 0.0, %v3878
    %v3880 = vpop.f32.mrf.mxu0
    %v3881 = vadd.f32 0.0, %v3880
    %v3882 = vpop.f32.mrf.mxu0
    %v3883 = vadd.f32 0.0, %v3882
    %v3884 = vpop.f32.mrf.mxu0
    %v3885 = vadd.f32 0.0, %v3884
    %3886 = vdwg.mxu0
    %v3887 = vmax.f32 %v3629, %v3633
    %v3888 = vmax.f32 %v3887, %v3639
    %v3889 = vmax.f32 %v3888, %v3643
    %v3890 = vrot.slane %v3889, 4
    %v3891 = vmax.f32 %v3889, %v3890
    %v3892 = vrot.slane %v3891, 2
    %v3893 = vmax.f32 %v3891, %v3892
    %v3894 = vrot.slane %v3893, 1
    %v3895 = vmax.f32 %v3893, %v3894
    %v3896 = vmax.f32 %v3631, %v3635
    %v3897 = vmax.f32 %v3896, %v3641
    %v3898 = vmax.f32 %v3897, %v3645
    %v3899 = vrot.slane %v3898, 4
    %v3900 = vmax.f32 %v3898, %v3899
    %v3901 = vrot.slane %v3900, 2
    %v3902 = vmax.f32 %v3900, %v3901
    %v3903 = vrot.slane %v3902, 1
    %v3904 = vmax.f32 %v3902, %v3903
    %v3905 = vmax.f32 %v3735, %v3739
    %v3906 = vmax.f32 %v3905, %v3745
    %v3907 = vmax.f32 %v3906, %v3749
    %v3908 = vrot.slane %v3907, 4
    %v3909 = vmax.f32 %v3907, %v3908
    %v3910 = vrot.slane %v3909, 2
    %v3911 = vmax.f32 %v3909, %v3910
    %v3912 = vrot.slane %v3911, 1
    %v3913 = vmax.f32 %v3911, %v3912
    %v3914 = vmax.f32 %v3737, %v3741
    %v3915 = vmax.f32 %v3914, %v3747
    %v3916 = vmax.f32 %v3915, %v3751
    %v3917 = vrot.slane %v3916, 4
    %v3918 = vmax.f32 %v3916, %v3917
    %v3919 = vrot.slane %v3918, 2
    %v3920 = vmax.f32 %v3918, %v3919
    %v3921 = vrot.slane %v3920, 1
    %v3922 = vmax.f32 %v3920, %v3921
    %v3923 = vadd.f32 %v3629, %v3633
    %v3924 = vadd.f32 %v3923, %v3639
    %v3925 = vadd.f32 %v3924, %v3643
    %v3926 = vrot.slane %v3925, 4
    %v3927 = vadd.f32 %v3925, %v3926
    %v3928 = vrot.slane %v3927, 2
    %v3929 = vadd.f32 %v3927, %v3928
    %v3930 = vrot.slane %v3929, 1
    %v3931 = vadd.f32 %v3929, %v3930
    %v3932 = vadd.f32 %v3631, %v3635
    %v3933 = vadd.f32 %v3932, %v3641
    %v3934 = vadd.f32 %v3933, %v3645
    %v3935 = vrot.slane %v3934, 4
    %v3936 = vadd.f32 %v3934, %v3935
    %v3937 = vrot.slane %v3936, 2
    %v3938 = vadd.f32 %v3936, %v3937
    %v3939 = vrot.slane %v3938, 1
    %v3940 = vadd.f32 %v3938, %v3939
    %v3941 = vadd.f32 %v3735, %v3739
    %v3942 = vadd.f32 %v3941, %v3745
    %v3943 = vadd.f32 %v3942, %v3749
    %v3944 = vrot.slane %v3943, 4
    %v3945 = vadd.f32 %v3943, %v3944
    %v3946 = vrot.slane %v3945, 2
    %v3947 = vadd.f32 %v3945, %v3946
    %v3948 = vrot.slane %v3947, 1
    %v3949 = vadd.f32 %v3947, %v3948
    %v3950 = vadd.f32 %v3737, %v3741
    %v3951 = vadd.f32 %v3950, %v3747
    %v3952 = vadd.f32 %v3951, %v3751
    %v3953 = vrot.slane %v3952, 4
    %v3954 = vadd.f32 %v3952, %v3953
    %v3955 = vrot.slane %v3954, 2
    %v3956 = vadd.f32 %v3954, %v3955
    %v3957 = vrot.slane %v3956, 1
    %v3958 = vadd.f32 %v3956, %v3957
    %v3959 = vrcp.pop 32.0
    %v3960 = vmul.f32 %v3931, %v3959
    %v3961 = vmul.f32 %v3940, %v3959
    %v3962 = vmul.f32 %v3949, %v3959
    %v3963 = vmul.f32 %v3958, %v3959
    %vm3964 = vcmask 1040384
    %v3965 = vsel %vm3964, %v3895, %v3960
    %v3966 = vsel %vm3964, %v3904, %v3961
    %v3967 = vsel %vm3964, %v3913, %v3962
    %v3968 = vsel %vm3964, %v3922, %v3963
    %s3969 = sld [smem:[#allocation3]]
    %v3970 = vstv %s3969
    %3971 = vrot.lane.b32.xlu0 %v3965, 17
    %v3972 = vpop.permute.xlu0 %3971
    %3973 = vrot.lane.b32.xlu0 %v3966, 17
    %v3974 = vpop.permute.xlu0 %3973
    %3975 = vrot.lane.b32.xlu0 %v3967, 17
    %v3976 = vpop.permute.xlu0 %3975
    %3977 = vrot.lane.b32.xlu0 %v3968, 17
    %v3978 = vpop.permute.xlu0 %3977
    %v3979 = vsel %vm180, %v3976, %v3978
    %v3980 = vsel %vm180, %v3974, %v3976
    %v3981 = vsel %vm180, %v3972, %v3974
    %v3982 = vsel %vm180, %v3978, %v3972
    %v3983 = vmul.f32 %v3982, %v200
    %v3984 = vmul.f32 %v3981, %v204
    %v3985 = vmul.f32 %v3980, %v208
    %v3986 = vmul.f32 %v3979, %v212
    %s3987 = sld [smem:[#allocation11]]
    %v3988 = vstv %s3987
    %v3989 = vmul.f32 %v3988, %v3983
    %v3990 = vmul.f32 %v3988, %v3984
    %v3991 = vmul.f32 %v3988, %v3985
    %v3992 = vmul.f32 %v3988, %v3986
    %v3993 = vadd.f32 %v3970, %v3989
    %v3994 = vadd.f32 %v3970, %v3990
    %v3995 = vadd.f32 %v3970, %v3991
    %v3996 = vadd.f32 %v3970, %v3992
    %s3997 = sld [smem:[#allocation11 + $0x9]]
    %v3998 = vstv %s3997
    %v3999 = vmul.f32 %v3998, %v3983
    %v4000 = vmul.f32 %v3998, %v3984
    %v4001 = vmul.f32 %v3998, %v3985
    %v4002 = vmul.f32 %v3998, %v3986
    %v4007 = vrot.slane %v3999, 1
    %v4008 = vrot.slane %v4000, 1
    %v4009 = vrot.slane %v4001, 1
    %v4010 = vrot.slane %v4002, 1
    %v4015 = vadd.f32 %v3993, %v4007
    %v4016 = vadd.f32 %v3994, %v4008
    %v4017 = vadd.f32 %v3995, %v4009
    %v4018 = vadd.f32 %v3996, %v4010
    %4019 = vrot.lane.b32.xlu0 %v3965, 16
    %v4020 = vpop.permute.xlu0 %4019
    %4021 = vrot.lane.b32.xlu0 %v3966, 16
    %v4022 = vpop.permute.xlu0 %4021
    %4023 = vrot.lane.b32.xlu0 %v3967, 16
    %v4024 = vpop.permute.xlu0 %4023
    %4025 = vrot.lane.b32.xlu0 %v3968, 16
    %v4026 = vpop.permute.xlu0 %4025
    %v4027 = vsel %vm317, %v4024, %v4026
    %v4028 = vsel %vm317, %v4022, %v4024
    %v4029 = vsel %vm317, %v4020, %v4022
    %v4030 = vsel %vm317, %v4026, %v4020
    %v4031 = vmul.f32 %v4030, %v337
    %v4032 = vmul.f32 %v4029, %v341
    %v4033 = vmul.f32 %v4028, %v345
    %v4034 = vmul.f32 %v4027, %v349
    %s4035 = sld [smem:[#allocation11 + $0x1]]
    %v4036 = vstv %s4035
    %v4037 = vmul.f32 %v4036, %v4031
    %v4038 = vmul.f32 %v4036, %v4032
    %v4039 = vmul.f32 %v4036, %v4033
    %v4040 = vmul.f32 %v4036, %v4034
    %v4041 = vadd.f32 %v4015, %v4037
    %v4042 = vadd.f32 %v4016, %v4038
    %v4043 = vadd.f32 %v4017, %v4039
    %v4044 = vadd.f32 %v4018, %v4040
    %s4045 = sld [smem:[#allocation11 + $0xa]]
    %v4046 = vstv %s4045
    %v4047 = vmul.f32 %v4046, %v4031
    %v4048 = vmul.f32 %v4046, %v4032
    %v4049 = vmul.f32 %v4046, %v4033
    %v4050 = vmul.f32 %v4046, %v4034
    %v4055 = vrot.slane %v4047, 1
    %v4056 = vrot.slane %v4048, 1
    %v4057 = vrot.slane %v4049, 1
    %v4058 = vrot.slane %v4050, 1
    %v4063 = vadd.f32 %v4041, %v4055
    %v4064 = vadd.f32 %v4042, %v4056
    %v4065 = vadd.f32 %v4043, %v4057
    %v4066 = vadd.f32 %v4044, %v4058
    %4067 = vrot.lane.b32.xlu0 %v3965, 15
    %v4068 = vpop.permute.xlu0 %4067
    %4069 = vrot.lane.b32.xlu0 %v3966, 15
    %v4070 = vpop.permute.xlu0 %4069
    %4071 = vrot.lane.b32.xlu0 %v3967, 15
    %v4072 = vpop.permute.xlu0 %4071
    %4073 = vrot.lane.b32.xlu0 %v3968, 15
    %v4074 = vpop.permute.xlu0 %4073
    %v4075 = vsel %vm454, %v4072, %v4074
    %v4076 = vsel %vm454, %v4070, %v4072
    %v4077 = vsel %vm454, %v4068, %v4070
    %v4078 = vsel %vm454, %v4074, %v4068
    %v4079 = vmul.f32 %v4078, %v474
    %v4080 = vmul.f32 %v4077, %v478
    %v4081 = vmul.f32 %v4076, %v482
    %v4082 = vmul.f32 %v4075, %v486
    %s4083 = sld [smem:[#allocation11 + $0x2]]
    %v4084 = vstv %s4083
    %v4085 = vmul.f32 %v4084, %v4079
    %v4086 = vmul.f32 %v4084, %v4080
    %v4087 = vmul.f32 %v4084, %v4081
    %v4088 = vmul.f32 %v4084, %v4082
    %v4089 = vadd.f32 %v4063, %v4085
    %v4090 = vadd.f32 %v4064, %v4086
    %v4091 = vadd.f32 %v4065, %v4087
    %v4092 = vadd.f32 %v4066, %v4088
    %s4093 = sld [smem:[#allocation11 + $0xb]]
    %v4094 = vstv %s4093
    %v4095 = vmul.f32 %v4094, %v4079
    %v4096 = vmul.f32 %v4094, %v4080
    %v4097 = vmul.f32 %v4094, %v4081
    %v4098 = vmul.f32 %v4094, %v4082
    %v4103 = vrot.slane %v4095, 1
    %v4104 = vrot.slane %v4096, 1
    %v4105 = vrot.slane %v4097, 1
    %v4106 = vrot.slane %v4098, 1
    %v4111 = vadd.f32 %v4089, %v4103
    %v4112 = vadd.f32 %v4090, %v4104
    %v4113 = vadd.f32 %v4091, %v4105
    %v4114 = vadd.f32 %v4092, %v4106
    %4115 = vrot.lane.b32.xlu0 %v3965, 1
    %v4116 = vpop.permute.xlu0 %4115
    %4117 = vrot.lane.b32.xlu0 %v3966, 1
    %v4118 = vpop.permute.xlu0 %4117
    %4119 = vrot.lane.b32.xlu0 %v3967, 1
    %v4120 = vpop.permute.xlu0 %4119
    %4121 = vrot.lane.b32.xlu0 %v3968, 1
    %v4122 = vpop.permute.xlu0 %4121
    %v4123 = vsel %vm591, %v4120, %v4122
    %v4124 = vsel %vm591, %v4118, %v4120
    %v4125 = vsel %vm591, %v4116, %v4118
    %v4126 = vsel %vm591, %v4122, %v4116
    %v4127 = vmul.f32 %v4126, %v611
    %v4128 = vmul.f32 %v4125, %v615
    %v4129 = vmul.f32 %v4124, %v619
    %v4130 = vmul.f32 %v4123, %v623
    %s4131 = sld [smem:[#allocation11 + $0x3]]
    %v4132 = vstv %s4131
    %v4133 = vmul.f32 %v4132, %v4127
    %v4134 = vmul.f32 %v4132, %v4128
    %v4135 = vmul.f32 %v4132, %v4129
    %v4136 = vmul.f32 %v4132, %v4130
    %v4137 = vadd.f32 %v4111, %v4133
    %v4138 = vadd.f32 %v4112, %v4134
    %v4139 = vadd.f32 %v4113, %v4135
    %v4140 = vadd.f32 %v4114, %v4136
    %s4141 = sld [smem:[#allocation11 + $0xc]]
    %v4142 = vstv %s4141
    %v4143 = vmul.f32 %v4142, %v4127
    %v4144 = vmul.f32 %v4142, %v4128
    %v4145 = vmul.f32 %v4142, %v4129
    %v4146 = vmul.f32 %v4142, %v4130
    %v4151 = vrot.slane %v4143, 1
    %v4152 = vrot.slane %v4144, 1
    %v4153 = vrot.slane %v4145, 1
    %v4154 = vrot.slane %v4146, 1
    %v4159 = vadd.f32 %v4137, %v4151
    %v4160 = vadd.f32 %v4138, %v4152
    %v4161 = vadd.f32 %v4139, %v4153
    %v4162 = vadd.f32 %v4140, %v4154
    %s4163 = sld [smem:[#allocation11 + $0x4]]
    %v4164 = vstv %s4163
    %v4165 = vmul.f32 %v4164, %v3965
    %v4166 = vmul.f32 %v4164, %v3966
    %v4167 = vmul.f32 %v4164, %v3967
    %v4168 = vmul.f32 %v4164, %v3968
    %v4169 = vadd.f32 %v4159, %v4165
    %v4170 = vadd.f32 %v4160, %v4166
    %v4171 = vadd.f32 %v4161, %v4167
    %v4172 = vadd.f32 %v4162, %v4168
    %s4173 = sld [smem:[#allocation11 + $0xd]]
    %v4174 = vstv %s4173
    %v4175 = vmul.f32 %v4174, %v3965
    %v4176 = vmul.f32 %v4174, %v3966
    %v4177 = vmul.f32 %v4174, %v3967
    %v4178 = vmul.f32 %v4174, %v3968
    %v4183 = vrot.slane %v4175, 1
    %v4184 = vrot.slane %v4176, 1
    %v4185 = vrot.slane %v4177, 1
    %v4186 = vrot.slane %v4178, 1
    %v4191 = vadd.f32 %v4169, %v4183
    %v4192 = vadd.f32 %v4170, %v4184
    %v4193 = vadd.f32 %v4171, %v4185
    %v4194 = vadd.f32 %v4172, %v4186
    %4195 = vrot.lane.b32.xlu0 %v3965, 127
    %v4196 = vpop.permute.xlu0 %4195
    %4197 = vrot.lane.b32.xlu0 %v3966, 127
    %v4198 = vpop.permute.xlu0 %4197
    %4199 = vrot.lane.b32.xlu0 %v3967, 127
    %v4200 = vpop.permute.xlu0 %4199
    %4201 = vrot.lane.b32.xlu0 %v3968, 127
    %v4202 = vpop.permute.xlu0 %4201
    %v4203 = vsel %vm784, %v4200, %v4202
    %v4204 = vsel %vm784, %v4198, %v4200
    %v4205 = vsel %vm784, %v4196, %v4198
    %v4206 = vsel %vm784, %v4202, %v4196
    %v4207 = vmul.f32 %v4205, %v804
    %v4208 = vmul.f32 %v4204, %v808
    %v4209 = vmul.f32 %v4203, %v812
    %v4210 = vmul.f32 %v4206, %v816
    %s4211 = sld [smem:[#allocation11 + $0x5]]
    %v4212 = vstv %s4211
    %v4213 = vmul.f32 %v4212, %v4207
    %v4214 = vmul.f32 %v4212, %v4208
    %v4215 = vmul.f32 %v4212, %v4209
    %v4216 = vmul.f32 %v4212, %v4210
    %v4217 = vadd.f32 %v4191, %v4213
    %v4218 = vadd.f32 %v4192, %v4214
    %v4219 = vadd.f32 %v4193, %v4215
    %v4220 = vadd.f32 %v4194, %v4216
    %s4221 = sld [smem:[#allocation11 + $0xe]]
    %v4222 = vstv %s4221
    %v4223 = vmul.f32 %v4222, %v4207
    %v4224 = vmul.f32 %v4222, %v4208
    %v4225 = vmul.f32 %v4222, %v4209
    %v4226 = vmul.f32 %v4222, %v4210
    %v4231 = vrot.slane %v4223, 1
    %v4232 = vrot.slane %v4224, 1
    %v4233 = vrot.slane %v4225, 1
    %v4234 = vrot.slane %v4226, 1
    %v4239 = vadd.f32 %v4217, %v4231
    %v4240 = vadd.f32 %v4218, %v4232
    %v4241 = vadd.f32 %v4219, %v4233
    %v4242 = vadd.f32 %v4220, %v4234
    %4243 = vrot.lane.b32.xlu0 %v3965, 113
    %v4244 = vpop.permute.xlu0 %4243
    %4245 = vrot.lane.b32.xlu0 %v3966, 113
    %v4246 = vpop.permute.xlu0 %4245
    %4247 = vrot.lane.b32.xlu0 %v3967, 113
    %v4248 = vpop.permute.xlu0 %4247
    %4249 = vrot.lane.b32.xlu0 %v3968, 113
    %v4250 = vpop.permute.xlu0 %4249
    %v4251 = vsel %vm921, %v4248, %v4250
    %v4252 = vsel %vm921, %v4246, %v4248
    %v4253 = vsel %vm921, %v4244, %v4246
    %v4254 = vsel %vm921, %v4250, %v4244
    %v4255 = vmul.f32 %v4253, %v941
    %v4256 = vmul.f32 %v4252, %v945
    %v4257 = vmul.f32 %v4251, %v949
    %v4258 = vmul.f32 %v4254, %v953
    %s4259 = sld [smem:[#allocation11 + $0x6]]
    %v4260 = vstv %s4259
    %v4261 = vmul.f32 %v4260, %v4255
    %v4262 = vmul.f32 %v4260, %v4256
    %v4263 = vmul.f32 %v4260, %v4257
    %v4264 = vmul.f32 %v4260, %v4258
    %v4265 = vadd.f32 %v4239, %v4261
    %v4266 = vadd.f32 %v4240, %v4262
    %v4267 = vadd.f32 %v4241, %v4263
    %v4268 = vadd.f32 %v4242, %v4264
    %s4269 = sld [smem:[#allocation11 + $0xf]]
    %v4270 = vstv %s4269
    %v4271 = vmul.f32 %v4270, %v4255
    %v4272 = vmul.f32 %v4270, %v4256
    %v4273 = vmul.f32 %v4270, %v4257
    %v4274 = vmul.f32 %v4270, %v4258
    %v4279 = vrot.slane %v4271, 1
    %v4280 = vrot.slane %v4272, 1
    %v4281 = vrot.slane %v4273, 1
    %v4282 = vrot.slane %v4274, 1
    %v4287 = vadd.f32 %v4265, %v4279
    %v4288 = vadd.f32 %v4266, %v4280
    %v4289 = vadd.f32 %v4267, %v4281
    %v4290 = vadd.f32 %v4268, %v4282
    %4291 = vrot.lane.b32.xlu0 %v3965, 112
    %v4292 = vpop.permute.xlu0 %4291
    %4293 = vrot.lane.b32.xlu0 %v3966, 112
    %v4294 = vpop.permute.xlu0 %4293
    %4295 = vrot.lane.b32.xlu0 %v3967, 112
    %v4296 = vpop.permute.xlu0 %4295
    %4297 = vrot.lane.b32.xlu0 %v3968, 112
    %v4298 = vpop.permute.xlu0 %4297
    %v4299 = vsel %vm1058, %v4296, %v4298
    %v4300 = vsel %vm1058, %v4294, %v4296
    %v4301 = vsel %vm1058, %v4292, %v4294
    %v4302 = vsel %vm1058, %v4298, %v4292
    %v4303 = vmul.f32 %v4301, %v1078
    %v4304 = vmul.f32 %v4300, %v1082
    %v4305 = vmul.f32 %v4299, %v1086
    %v4306 = vmul.f32 %v4302, %v1090
    %s4307 = sld [smem:[#allocation11 + $0x7]]
    %v4308 = vstv %s4307
    %v4309 = vmul.f32 %v4308, %v4303
    %v4310 = vmul.f32 %v4308, %v4304
    %v4311 = vmul.f32 %v4308, %v4305
    %v4312 = vmul.f32 %v4308, %v4306
    %v4313 = vadd.f32 %v4287, %v4309
    %v4314 = vadd.f32 %v4288, %v4310
    %v4315 = vadd.f32 %v4289, %v4311
    %v4316 = vadd.f32 %v4290, %v4312
    %s4317 = sld [smem:[#allocation11 + $0x10]]
    %v4318 = vstv %s4317
    %v4319 = vmul.f32 %v4318, %v4303
    %v4320 = vmul.f32 %v4318, %v4304
    %v4321 = vmul.f32 %v4318, %v4305
    %v4322 = vmul.f32 %v4318, %v4306
    %v4327 = vrot.slane %v4319, 1
    %v4328 = vrot.slane %v4320, 1
    %v4329 = vrot.slane %v4321, 1
    %v4330 = vrot.slane %v4322, 1
    %v4335 = vadd.f32 %v4313, %v4327
    %v4336 = vadd.f32 %v4314, %v4328
    %v4337 = vadd.f32 %v4315, %v4329
    %v4338 = vadd.f32 %v4316, %v4330
    %4339 = vrot.lane.b32.xlu0 %v3965, 111
    %v4340 = vpop.permute.xlu0 %4339
    %4341 = vrot.lane.b32.xlu0 %v3966, 111
    %v4342 = vpop.permute.xlu0 %4341
    %4343 = vrot.lane.b32.xlu0 %v3967, 111
    %v4344 = vpop.permute.xlu0 %4343
    %4345 = vrot.lane.b32.xlu0 %v3968, 111
    %v4346 = vpop.permute.xlu0 %4345
    %v4347 = vsel %vm1195, %v4344, %v4346
    %v4348 = vsel %vm1195, %v4342, %v4344
    %v4349 = vsel %vm1195, %v4340, %v4342
    %v4350 = vsel %vm1195, %v4346, %v4340
    %v4351 = vmul.f32 %v4349, %v1215
    %v4352 = vmul.f32 %v4348, %v1219
    %v4353 = vmul.f32 %v4347, %v1223
    %v4354 = vmul.f32 %v4350, %v1227
    %s4355 = sld [smem:[#allocation11 + $0x8]]
    %v4356 = vstv %s4355
    %v4357 = vmul.f32 %v4356, %v4351
    %v4358 = vmul.f32 %v4356, %v4352
    %v4359 = vmul.f32 %v4356, %v4353
    %v4360 = vmul.f32 %v4356, %v4354
    %v4361 = vadd.f32 %v4335, %v4357
    %v4362 = vadd.f32 %v4336, %v4358
    %v4363 = vadd.f32 %v4337, %v4359
    %v4364 = vadd.f32 %v4338, %v4360
    %s4365 = sld [smem:[#allocation11 + $0x11]]
    %v4366 = vstv %s4365
    %v4367 = vmul.f32 %v4366, %v4351
    %v4368 = vmul.f32 %v4366, %v4352
    %v4369 = vmul.f32 %v4366, %v4353
    %v4370 = vmul.f32 %v4366, %v4354
    %v4375 = vrot.slane %v4367, 1
    %v4376 = vrot.slane %v4368, 1
    %v4377 = vrot.slane %v4369, 1
    %v4378 = vrot.slane %v4370, 1
    %v4383 = vadd.f32 %v4361, %v4375
    %v4384 = vadd.f32 %v4362, %v4376
    %v4385 = vadd.f32 %v4363, %v4377
    %v4386 = vadd.f32 %v4364, %v4378
    %v4387 = vxor.u32 %v4383, 2147483648
    %v4388 = vxor.u32 %v4384, 2147483648
    %v4389 = vxor.u32 %v4385, 2147483648
    %v4390 = vxor.u32 %v4386, 2147483648
    %v4391 = vmul.f32 %v4387, 1.442695
    %v4392 = vpow.pop %v4391
    %v4393 = vmul.f32 %v4388, 1.442695
    %v4394 = vpow.pop %v4393
    %v4395 = vmul.f32 %v4389, 1.442695
    %v4396 = vpow.pop %v4395
    %v4397 = vmul.f32 %v4390, 1.442695
    %v4398 = vpow.pop %v4397
    %v4399 = vadd.f32 %v4392, 1.0
    %v4400 = vadd.f32 %v4394, 1.0
    %v4401 = vadd.f32 %v4396, 1.0
    %v4402 = vadd.f32 %v4398, 1.0
    %v4403 = vrcp.pop %v4399
    %v4404 = vmul.f32 1.0, %v4403
    %v4405 = vrcp.pop %v4400
    %v4406 = vmul.f32 1.0, %v4405
    %v4407 = vrcp.pop %v4401
    %v4408 = vmul.f32 1.0, %v4407
    %v4409 = vrcp.pop %v4402
    %v4410 = vmul.f32 1.0, %v4409
    %v4411 = vld [vmem:[%s9] sm:$0xff]
    %v4412 = vld [vmem:[%s9 + $0x8] sm:$0xff]
    %v4413 = vld [vmem:[%s9 + $0x10] sm:$0xff]
    %v4414 = vld [vmem:[%s9 + $0x18] sm:$0xff]
    %v4415 = vld [vmem:[#allocation12] sm:$0x1]
    %v4416 = vld [vmem:[%s11] sm:$0xff]
    %v4417 = vld [vmem:[%s11 + $0x8] sm:$0xff]
    %v4418 = vld [vmem:[%s11 + $0x10] sm:$0xff]
    %v4419 = vld [vmem:[%s11 + $0x18] sm:$0xff]
    %v4420 = vld [vmem:[%s12] sm:$0xff]
    %v4421 = vld [vmem:[%s12 + $0x8] sm:$0xff]
    %v4422 = vld [vmem:[%s12 + $0x10] sm:$0xff]
    %v4423 = vld [vmem:[%s12 + $0x18] sm:$0xff]
    %v4424 = vld [vmem:[#allocation4] sm:$0xff]
    %v4426 = vlaneseq
    %v4427 = vshrl.u32 %v4426, 7
    %v4428 = vsub.s32 0, %v4427
    %v4429 = vrot.slane %v4424, %v4428
    %v4430 = vlaneseq
    %v4431 = vshrl.u32 %v4430, 7
    %v4432 = vsub.s32 2, %v4431
    %v4433 = vrot.slane %v4424, %v4432
    %v4434 = vlaneseq
    %v4435 = vshrl.u32 %v4434, 7
    %v4436 = vsub.s32 4, %v4435
    %v4437 = vrot.slane %v4424, %v4436
    %v4438 = vlaneseq
    %v4439 = vshrl.u32 %v4438, 7
    %v4440 = vsub.s32 6, %v4439
    %v4441 = vrot.slane %v4424, %v4440
    %v4446 = vlaneseq
    %v4447 = vshrl.u32 %v4446, 7
    %v4448 = vsub.s32 0, %v4447
    %v4449 = vrot.slane %v4429, %v4448
    %v4450 = vlaneseq
    %v4451 = vshrl.u32 %v4450, 7
    %v4452 = vsub.s32 0, %v4451
    %v4453 = vrot.slane %v4433, %v4452
    %v4454 = vlaneseq
    %v4455 = vshrl.u32 %v4454, 7
    %v4456 = vsub.s32 0, %v4455
    %v4457 = vrot.slane %v4437, %v4456
    %v4458 = vlaneseq
    %v4459 = vshrl.u32 %v4458, 7
    %v4460 = vsub.s32 0, %v4459
    %v4461 = vrot.slane %v4441, %v4460
    %v4462 = vmul.f32 %v3629, %v4449
    %v4463 = vmul.f32 %v3631, %v4453
    %v4464 = vmul.f32 %v3735, %v4457
    %v4465 = vmul.f32 %v3737, %v4461
    %v4466 = vmul.f32 %v3633, %v4449
    %v4467 = vmul.f32 %v3635, %v4453
    %v4468 = vmul.f32 %v3739, %v4457
    %v4469 = vmul.f32 %v3741, %v4461
    %v4470 = vmul.f32 %v3639, %v4449
    %v4471 = vmul.f32 %v3641, %v4453
    %v4472 = vmul.f32 %v3745, %v4457
    %v4473 = vmul.f32 %v3747, %v4461
    %v4474 = vmul.f32 %v3643, %v4449
    %v4475 = vmul.f32 %v3645, %v4453
    %v4476 = vmul.f32 %v3749, %v4457
    %v4477 = vmul.f32 %v3751, %v4461
    %v4478 = vadd.f32 %v4462, %v4463
    %v4479 = vadd.f32 %v4478, %v4464
    %v4480 = vadd.f32 %v4479, %v4465
    %4481 = vadd.xlane.f32.xlu0 %v4480
    %v4482 = vpop.xlane.xlu0 %4481
    %v4483 = vadd.f32 %v4466, %v4467
    %v4484 = vadd.f32 %v4483, %v4468
    %v4485 = vadd.f32 %v4484, %v4469
    %4486 = vadd.xlane.f32.xlu0 %v4485
    %v4487 = vpop.xlane.xlu0 %4486
    %v4488 = vadd.f32 %v4470, %v4471
    %v4489 = vadd.f32 %v4488, %v4472
    %v4490 = vadd.f32 %v4489, %v4473
    %4491 = vadd.xlane.f32.xlu0 %v4490
    %v4492 = vpop.xlane.xlu0 %4491
    %v4493 = vadd.f32 %v4474, %v4475
    %v4494 = vadd.f32 %v4493, %v4476
    %v4495 = vadd.f32 %v4494, %v4477
    %4496 = vadd.xlane.f32.xlu0 %v4495
    %v4497 = vpop.xlane.xlu0 %4496
    %v4498 = vmul.f32 %v4411, %v4482
    %v4499 = vmul.f32 %v4412, %v4487
    %v4500 = vmul.f32 %v4413, %v4492
    %v4501 = vmul.f32 %v4414, %v4497
    %vm4502 = vcmask 31744
    %v4503 = vsel %vm4502, %v4498, 0.0
    %v4504 = vsel %vm4502, %v4499, 0.0
    %v4505 = vadd.f32 %v4503, %v4504
    %v4506 = vsel %vm4502, %v4500, 0.0
    %v4507 = vadd.f32 %v4505, %v4506
    %v4508 = vsel %vm4502, %v4501, 0.0
    %v4509 = vadd.f32 %v4507, %v4508
    %v4510 = vrot.slane %v4509, 4
    %v4511 = vadd.f32 %v4509, %v4510
    %v4512 = vrot.slane %v4511, 2
    %v4513 = vadd.f32 %v4511, %v4512
    %v4514 = vrot.slane %v4513, 1
    %v4515 = vadd.f32 %v4513, %v4514
    %v4516 = vadd.f32 %v4515, %v4415
    %v4517 = vmax.f32 %v4516, 0.0
    %v4518 = vlaneseq
    %v4519 = vshrl.u32 %v4518, 7
    %v4520 = vsub.s32 0, %v4519
    %v4521 = vrot.slane %v4517, %v4520
    %v4522 = vmul.f32 %v4416, %v4521
    %v4523 = vmul.f32 %v4417, %v4521
    %v4524 = vmul.f32 %v4418, %v4521
    %v4525 = vmul.f32 %v4419, %v4521
    %v4526 = vsel %vm4502, %v4522, 0.0
    %4527 = vadd.xlane.f32.xlu0 %v4526
    %v4528 = vpop.xlane.xlu0 %4527
    %v4529 = vsel %vm4502, %v4523, 0.0
    %4530 = vadd.xlane.f32.xlu0 %v4529
    %v4531 = vpop.xlane.xlu0 %4530
    %v4532 = vsel %vm4502, %v4524, 0.0
    %4533 = vadd.xlane.f32.xlu0 %v4532
    %v4534 = vpop.xlane.xlu0 %4533
    %v4535 = vsel %vm4502, %v4525, 0.0
    %4536 = vadd.xlane.f32.xlu0 %v4535
    %v4537 = vpop.xlane.xlu0 %4536
    %v4538 = vadd.f32 %v4528, %v4420
    %v4539 = vadd.f32 %v4531, %v4421
    %v4540 = vadd.f32 %v4534, %v4422
    %v4541 = vadd.f32 %v4537, %v4423
    %v4542 = vxor.u32 %v4538, 2147483648
    %v4543 = vxor.u32 %v4539, 2147483648
    %v4544 = vxor.u32 %v4540, 2147483648
    %v4545 = vxor.u32 %v4541, 2147483648
    %v4546 = vmul.f32 %v4542, 1.442695
    %v4547 = vpow.pop %v4546
    %v4548 = vmul.f32 %v4543, 1.442695
    %v4549 = vpow.pop %v4548
    %v4550 = vmul.f32 %v4544, 1.442695
    %v4551 = vpow.pop %v4550
    %v4552 = vmul.f32 %v4545, 1.442695
    %v4553 = vpow.pop %v4552
    %v4554 = vadd.f32 %v4547, 1.0
    %v4555 = vadd.f32 %v4549, 1.0
    %v4556 = vadd.f32 %v4551, 1.0
    %v4557 = vadd.f32 %v4553, 1.0
    %v4558 = vrcp.pop %v4554
    %v4559 = vmul.f32 1.0, %v4558
    %v4560 = vrcp.pop %v4555
    %v4561 = vmul.f32 1.0, %v4560
    %v4562 = vrcp.pop %v4556
    %v4563 = vmul.f32 1.0, %v4562
    %v4564 = vrcp.pop %v4557
    %v4565 = vmul.f32 1.0, %v4564
    %4567 = vset.pattern.permute.xlu0 0
    %4568 = vperm.xlu0 %4567, %v4559
    %v4569 = vpop.permute.xlu0 %4568
    %4572 = vset.pattern.permute.xlu0 0
    %4573 = vperm.xlu0 %4572, %v4561
    %v4574 = vpop.permute.xlu0 %4573
    %4577 = vset.pattern.permute.xlu0 0
    %4578 = vperm.xlu0 %4577, %v4563
    %v4579 = vpop.permute.xlu0 %4578
    %4582 = vset.pattern.permute.xlu0 0
    %4583 = vperm.xlu0 %4582, %v4565
    %v4584 = vpop.permute.xlu0 %4583
    %v4586 = vmul.f32 %v4569, %v4449
    %v4587 = vmul.f32 %v4569, %v4453
    %v4588 = vmul.f32 %v4569, %v4457
    %v4589 = vmul.f32 %v4569, %v4461
    %v4590 = vmul.f32 %v4574, %v4449
    %v4591 = vmul.f32 %v4574, %v4453
    %v4592 = vmul.f32 %v4574, %v4457
    %v4593 = vmul.f32 %v4574, %v4461
    %v4594 = vmul.f32 %v4579, %v4449
    %v4595 = vmul.f32 %v4579, %v4453
    %v4596 = vmul.f32 %v4579, %v4457
    %v4597 = vmul.f32 %v4579, %v4461
    %v4598 = vmul.f32 %v4584, %v4449
    %v4599 = vmul.f32 %v4584, %v4453
    %v4600 = vmul.f32 %v4584, %v4457
    %v4601 = vmul.f32 %v4584, %v4461
    %v4602 = vadd.f32 %v4586, 0.0
    %v4603 = vadd.f32 %v4587, 0.0
    %v4604 = vadd.f32 %v4588, 0.0
    %v4605 = vadd.f32 %v4589, 0.0
    %v4606 = vadd.f32 %v4590, 0.0
    %v4607 = vadd.f32 %v4591, 0.0
    %v4608 = vadd.f32 %v4592, 0.0
    %v4609 = vadd.f32 %v4593, 0.0
    %v4610 = vadd.f32 %v4594, 0.0
    %v4611 = vadd.f32 %v4595, 0.0
    %v4612 = vadd.f32 %v4596, 0.0
    %v4613 = vadd.f32 %v4597, 0.0
    %v4614 = vadd.f32 %v4598, 0.0
    %v4615 = vadd.f32 %v4599, 0.0
    %v4616 = vadd.f32 %v4600, 0.0
    %v4617 = vadd.f32 %v4601, 0.0
    %v4618 = vlaneseq
    %v4619 = vshrl.u32 %v4618, 7
    %v4620 = vsub.s32 1, %v4619
    %v4621 = vrot.slane %v4424, %v4620
    %v4622 = vlaneseq
    %v4623 = vshrl.u32 %v4622, 7
    %v4624 = vsub.s32 3, %v4623
    %v4625 = vrot.slane %v4424, %v4624
    %v4626 = vlaneseq
    %v4627 = vshrl.u32 %v4626, 7
    %v4628 = vsub.s32 5, %v4627
    %v4629 = vrot.slane %v4424, %v4628
    %v4630 = vlaneseq
    %v4631 = vshrl.u32 %v4630, 7
    %v4632 = vsub.s32 7, %v4631
    %v4633 = vrot.slane %v4424, %v4632
    %v4638 = vlaneseq
    %v4639 = vshrl.u32 %v4638, 7
    %v4640 = vsub.s32 1, %v4639
    %v4641 = vrot.slane %v4621, %v4640
    %v4642 = vlaneseq
    %v4643 = vshrl.u32 %v4642, 7
    %v4644 = vsub.s32 1, %v4643
    %v4645 = vrot.slane %v4625, %v4644
    %v4646 = vlaneseq
    %v4647 = vshrl.u32 %v4646, 7
    %v4648 = vsub.s32 1, %v4647
    %v4649 = vrot.slane %v4629, %v4648
    %v4650 = vlaneseq
    %v4651 = vshrl.u32 %v4650, 7
    %v4652 = vsub.s32 1, %v4651
    %v4653 = vrot.slane %v4633, %v4652
    %v4654 = vmul.f32 %v3629, %v4641
    %v4655 = vmul.f32 %v3631, %v4645
    %v4656 = vmul.f32 %v3735, %v4649
    %v4657 = vmul.f32 %v3737, %v4653
    %v4658 = vmul.f32 %v3633, %v4641
    %v4659 = vmul.f32 %v3635, %v4645
    %v4660 = vmul.f32 %v3739, %v4649
    %v4661 = vmul.f32 %v3741, %v4653
    %v4662 = vmul.f32 %v3639, %v4641
    %v4663 = vmul.f32 %v3641, %v4645
    %v4664 = vmul.f32 %v3745, %v4649
    %v4665 = vmul.f32 %v3747, %v4653
    %v4666 = vmul.f32 %v3643, %v4641
    %v4667 = vmul.f32 %v3645, %v4645
    %v4668 = vmul.f32 %v3749, %v4649
    %v4669 = vmul.f32 %v3751, %v4653
    %v4670 = vadd.f32 %v4654, %v4655
    %v4671 = vadd.f32 %v4670, %v4656
    %v4672 = vadd.f32 %v4671, %v4657
    %4673 = vadd.xlane.f32.xlu0 %v4672
    %v4674 = vpop.xlane.xlu0 %4673
    %v4675 = vadd.f32 %v4658, %v4659
    %v4676 = vadd.f32 %v4675, %v4660
    %v4677 = vadd.f32 %v4676, %v4661
    %4678 = vadd.xlane.f32.xlu0 %v4677
    %v4679 = vpop.xlane.xlu0 %4678
    %v4680 = vadd.f32 %v4662, %v4663
    %v4681 = vadd.f32 %v4680, %v4664
    %v4682 = vadd.f32 %v4681, %v4665
    %4683 = vadd.xlane.f32.xlu0 %v4682
    %v4684 = vpop.xlane.xlu0 %4683
    %v4685 = vadd.f32 %v4666, %v4667
    %v4686 = vadd.f32 %v4685, %v4668
    %v4687 = vadd.f32 %v4686, %v4669
    %4688 = vadd.xlane.f32.xlu0 %v4687
    %v4689 = vpop.xlane.xlu0 %4688
    %v4690 = vmul.f32 %v4411, %v4674
    %v4691 = vmul.f32 %v4412, %v4679
    %v4692 = vmul.f32 %v4413, %v4684
    %v4693 = vmul.f32 %v4414, %v4689
    %v4694 = vsel %vm4502, %v4690, 0.0
    %v4695 = vsel %vm4502, %v4691, 0.0
    %v4696 = vadd.f32 %v4694, %v4695
    %v4697 = vsel %vm4502, %v4692, 0.0
    %v4698 = vadd.f32 %v4696, %v4697
    %v4699 = vsel %vm4502, %v4693, 0.0
    %v4700 = vadd.f32 %v4698, %v4699
    %v4701 = vrot.slane %v4700, 4
    %v4702 = vadd.f32 %v4700, %v4701
    %v4703 = vrot.slane %v4702, 2
    %v4704 = vadd.f32 %v4702, %v4703
    %v4705 = vrot.slane %v4704, 1
    %v4706 = vadd.f32 %v4704, %v4705
    %v4707 = vadd.f32 %v4706, %v4415
    %v4708 = vmax.f32 %v4707, 0.0
    %v4709 = vlaneseq
    %v4710 = vshrl.u32 %v4709, 7
    %v4711 = vsub.s32 0, %v4710
    %v4712 = vrot.slane %v4708, %v4711
    %v4713 = vmul.f32 %v4416, %v4712
    %v4714 = vmul.f32 %v4417, %v4712
    %v4715 = vmul.f32 %v4418, %v4712
    %v4716 = vmul.f32 %v4419, %v4712
    %v4717 = vsel %vm4502, %v4713, 0.0
    %4718 = vadd.xlane.f32.xlu0 %v4717
    %v4719 = vpop.xlane.xlu0 %4718
    %v4720 = vsel %vm4502, %v4714, 0.0
    %4721 = vadd.xlane.f32.xlu0 %v4720
    %v4722 = vpop.xlane.xlu0 %4721
    %v4723 = vsel %vm4502, %v4715, 0.0
    %4724 = vadd.xlane.f32.xlu0 %v4723
    %v4725 = vpop.xlane.xlu0 %4724
    %v4726 = vsel %vm4502, %v4716, 0.0
    %4727 = vadd.xlane.f32.xlu0 %v4726
    %v4728 = vpop.xlane.xlu0 %4727
    %v4729 = vadd.f32 %v4719, %v4420
    %v4730 = vadd.f32 %v4722, %v4421
    %v4731 = vadd.f32 %v4725, %v4422
    %v4732 = vadd.f32 %v4728, %v4423
    %v4733 = vxor.u32 %v4729, 2147483648
    %v4734 = vxor.u32 %v4730, 2147483648
    %v4735 = vxor.u32 %v4731, 2147483648
    %v4736 = vxor.u32 %v4732, 2147483648
    %v4737 = vmul.f32 %v4733, 1.442695
    %v4738 = vpow.pop %v4737
    %v4739 = vmul.f32 %v4734, 1.442695
    %v4740 = vpow.pop %v4739
    %v4741 = vmul.f32 %v4735, 1.442695
    %v4742 = vpow.pop %v4741
    %v4743 = vmul.f32 %v4736, 1.442695
    %v4744 = vpow.pop %v4743
    %v4745 = vadd.f32 %v4738, 1.0
    %v4746 = vadd.f32 %v4740, 1.0
    %v4747 = vadd.f32 %v4742, 1.0
    %v4748 = vadd.f32 %v4744, 1.0
    %v4749 = vrcp.pop %v4745
    %v4750 = vmul.f32 1.0, %v4749
    %v4751 = vrcp.pop %v4746
    %v4752 = vmul.f32 1.0, %v4751
    %v4753 = vrcp.pop %v4747
    %v4754 = vmul.f32 1.0, %v4753
    %v4755 = vrcp.pop %v4748
    %v4756 = vmul.f32 1.0, %v4755
    %4758 = vset.pattern.permute.xlu0 0
    %4759 = vperm.xlu0 %4758, %v4750
    %v4760 = vpop.permute.xlu0 %4759
    %4763 = vset.pattern.permute.xlu0 0
    %4764 = vperm.xlu0 %4763, %v4752
    %v4765 = vpop.permute.xlu0 %4764
    %4768 = vset.pattern.permute.xlu0 0
    %4769 = vperm.xlu0 %4768, %v4754
    %v4770 = vpop.permute.xlu0 %4769
    %4773 = vset.pattern.permute.xlu0 0
    %4774 = vperm.xlu0 %4773, %v4756
    %v4775 = vpop.permute.xlu0 %4774
    %v4777 = vmul.f32 %v4760, %v4641
    %v4778 = vmul.f32 %v4760, %v4645
    %v4779 = vmul.f32 %v4760, %v4649
    %v4780 = vmul.f32 %v4760, %v4653
    %v4781 = vmul.f32 %v4765, %v4641
    %v4782 = vmul.f32 %v4765, %v4645
    %v4783 = vmul.f32 %v4765, %v4649
    %v4784 = vmul.f32 %v4765, %v4653
    %v4785 = vmul.f32 %v4770, %v4641
    %v4786 = vmul.f32 %v4770, %v4645
    %v4787 = vmul.f32 %v4770, %v4649
    %v4788 = vmul.f32 %v4770, %v4653
    %v4789 = vmul.f32 %v4775, %v4641
    %v4790 = vmul.f32 %v4775, %v4645
    %v4791 = vmul.f32 %v4775, %v4649
    %v4792 = vmul.f32 %v4775, %v4653
    %v4793 = vadd.f32 %v4602, %v4777
    %v4794 = vadd.f32 %v4603, %v4778
    %v4795 = vadd.f32 %v4604, %v4779
    %v4796 = vadd.f32 %v4605, %v4780
    %v4797 = vadd.f32 %v4606, %v4781
    %v4798 = vadd.f32 %v4607, %v4782
    %v4799 = vadd.f32 %v4608, %v4783
    %v4800 = vadd.f32 %v4609, %v4784
    %v4801 = vadd.f32 %v4610, %v4785
    %v4802 = vadd.f32 %v4611, %v4786
    %v4803 = vadd.f32 %v4612, %v4787
    %v4804 = vadd.f32 %v4613, %v4788
    %v4805 = vadd.f32 %v4614, %v4789
    %v4806 = vadd.f32 %v4615, %v4790
    %v4807 = vadd.f32 %v4616, %v4791
    %v4808 = vadd.f32 %v4617, %v4792
    %v4809 = vld [vmem:[%s14] sm:$0xf]
    %v4810 = vld [vmem:[%s14 + $0x4] sm:$0xf]
    %v4811 = vld [vmem:[%s14 + $0x8] sm:$0xf]
    %v4812 = vld [vmem:[%s14 + $0xc] sm:$0xf]
    %v4813 = vmul.f32 %v3629, %v4793
    %v4814 = vmul.f32 %v3631, %v4794
    %v4815 = vmul.f32 %v3735, %v4795
    %v4816 = vmul.f32 %v3737, %v4796
    %v4817 = vmul.f32 %v3633, %v4797
    %v4818 = vmul.f32 %v3635, %v4798
    %v4819 = vmul.f32 %v3739, %v4799
    %v4820 = vmul.f32 %v3741, %v4800
    %v4821 = vmul.f32 %v3639, %v4801
    %v4822 = vmul.f32 %v3641, %v4802
    %v4823 = vmul.f32 %v3745, %v4803
    %v4824 = vmul.f32 %v3747, %v4804
    %v4825 = vmul.f32 %v3643, %v4805
    %v4826 = vmul.f32 %v3645, %v4806
    %v4827 = vmul.f32 %v3749, %v4807
    %v4828 = vmul.f32 %v3751, %v4808
    %v4829 = vpack.c.bf16 %v4817, %v4813
    %v4830 = vpack.c.bf16 %v4818, %v4814
    %v4831 = vpack.c.bf16 %v4819, %v4815
    %v4832 = vpack.c.bf16 %v4820, %v4816
    %v4833 = vpack.c.bf16 %v4825, %v4821
    %v4834 = vpack.c.bf16 %v4826, %v4822
    %v4835 = vpack.c.bf16 %v4827, %v4823
    %v4836 = vpack.c.bf16 %v4828, %v4824
    %v4841 = vunpack.c.l.b16 %v4809
    %v4842 = vunpack.c.l.b16 %v4810
    %v4843 = vunpack.c.l.b16 %v4811
    %v4844 = vunpack.c.l.b16 %v4812
    %v4845 = vpack.c.b16 %v4842, %v4841
    %v4846 = vpack.c.b16 %v4844, %v4843
    %v4848 = vsel %vm1790, %v4845, 0
    %v4851 = vsel %vm1790, %v4846, 0
    %4853 = vmatprep.subr.bf16.mxu0 0
    %4854 = vmatpush1.bf16.msra.mxu0 0
    %4855 = vmatprep.subr.bf16.mxu0 0
    %4856 = vmatpush1.bf16.msra.mxu0 0
    %4857 = vmatprep.subr.bf16.mxu0 0
    %4858 = vmatpush1.bf16.msra.mxu0 0
    %4859 = vmatprep.subr.bf16.mxu0 0
    %4860 = vmatpush1.bf16.msra.mxu0 0
    %4861 = vmatprep.subr.bf16.mxu0 0
    %4862 = vmatpush1.bf16.msra.mxu0 0
    %4863 = vmatprep.subr.bf16.mxu0 0
    %4864 = vmatpush1.bf16.msra.mxu0 0
    %4865 = vmatprep.subr.bf16.mxu0 %v4834
    %4866 = vmatpush1.bf16.msra.mxu0 %v4833
    %4867 = vmatprep.subr.bf16.mxu0 %v4830
    %4868 = vmatpush1.bf16.msra.mxu0 %v4829
    %4869 = vmatprep.subr.bf16.mxu0 0
    %4870 = vmatpush2.bf16.msra.mxu0 0
    %4871 = vmatprep.subr.bf16.mxu0 0
    %4872 = vmatpush2.bf16.msra.mxu0 0
    %4873 = vmatprep.subr.bf16.mxu0 0
    %4874 = vmatpush2.bf16.msra.mxu0 0
    %4875 = vmatprep.subr.bf16.mxu0 0
    %4876 = vmatpush2.bf16.msra.mxu0 0
    %4877 = vmatprep.subr.bf16.mxu0 0
    %4878 = vmatpush2.bf16.msra.mxu0 0
    %4879 = vmatprep.subr.bf16.mxu0 0
    %4880 = vmatpush2.bf16.msra.mxu0 0
    %4881 = vmatprep.subr.bf16.mxu0 0
    %4882 = vmatpush2.bf16.msra.mxu0 0
    %4883 = vmatprep.subr.bf16.mxu0 0
    %4884 = vmatpush2.bf16.msra.mxu0 0
    %4885 = vmatprep.mubr.bf16.mxu0 0
    %4886 = vmatmul.mubr.bf16.gmra.mxu0 %v4848
    %v4887 = vpop.f32.mrf.mxu0
    %v4888 = vadd.f32 0.0, %v4887
    %v4889 = vpop.f32.mrf.mxu0
    %v4890 = vadd.f32 0.0, %v4889
    %v4891 = vpop.f32.mrf.mxu0
    %v4892 = vadd.f32 0.0, %v4891
    %v4893 = vpop.f32.mrf.mxu0
    %v4894 = vadd.f32 0.0, %v4893
    %4895 = vmatprep.mubr.bf16.mxu0 0
    %4896 = vmatmul.mubr.bf16.gmra.mxu0 %v4851
    %v4897 = vpop.f32.mrf.mxu0
    %v4898 = vadd.f32 0.0, %v4897
    %v4899 = vpop.f32.mrf.mxu0
    %v4900 = vadd.f32 0.0, %v4899
    %v4901 = vpop.f32.mrf.mxu0
    %v4902 = vadd.f32 0.0, %v4901
    %v4903 = vpop.f32.mrf.mxu0
    %v4904 = vadd.f32 0.0, %v4903
    %4905 = vdwg.mxu0
    %4906 = vmatprep.subr.bf16.mxu0 0
    %4907 = vmatpush1.bf16.msra.mxu0 0
    %4908 = vmatprep.subr.bf16.mxu0 0
    %4909 = vmatpush1.bf16.msra.mxu0 0
    %4910 = vmatprep.subr.bf16.mxu0 0
    %4911 = vmatpush1.bf16.msra.mxu0 0
    %4912 = vmatprep.subr.bf16.mxu0 0
    %4913 = vmatpush1.bf16.msra.mxu0 0
    %4914 = vmatprep.subr.bf16.mxu0 0
    %4915 = vmatpush1.bf16.msra.mxu0 0
    %4916 = vmatprep.subr.bf16.mxu0 0
    %4917 = vmatpush1.bf16.msra.mxu0 0
    %4918 = vmatprep.subr.bf16.mxu0 %v4836
    %4919 = vmatpush1.bf16.msra.mxu0 %v4835
    %4920 = vmatprep.subr.bf16.mxu0 %v4832
    %4921 = vmatpush1.bf16.msra.mxu0 %v4831
    %4922 = vmatprep.subr.bf16.mxu0 0
    %4923 = vmatpush2.bf16.msra.mxu0 0
    %4924 = vmatprep.subr.bf16.mxu0 0
    %4925 = vmatpush2.bf16.msra.mxu0 0
    %4926 = vmatprep.subr.bf16.mxu0 0
    %4927 = vmatpush2.bf16.msra.mxu0 0
    %4928 = vmatprep.subr.bf16.mxu0 0
    %4929 = vmatpush2.bf16.msra.mxu0 0
    %4930 = vmatprep.subr.bf16.mxu0 0
    %4931 = vmatpush2.bf16.msra.mxu0 0
    %4932 = vmatprep.subr.bf16.mxu0 0
    %4933 = vmatpush2.bf16.msra.mxu0 0
    %4934 = vmatprep.subr.bf16.mxu0 0
    %4935 = vmatpush2.bf16.msra.mxu0 0
    %4936 = vmatprep.subr.bf16.mxu0 0
    %4937 = vmatpush2.bf16.msra.mxu0 0
    %4938 = vmatprep.mubr.bf16.mxu0 0
    %4939 = vmatmul.mubr.bf16.gmra.mxu0 %v4848
    %v4940 = vpop.f32.mrf.mxu0
    %v4941 = vadd.f32 0.0, %v4940
    %v4942 = vpop.f32.mrf.mxu0
    %v4943 = vadd.f32 0.0, %v4942
    %v4944 = vpop.f32.mrf.mxu0
    %v4945 = vadd.f32 0.0, %v4944
    %v4946 = vpop.f32.mrf.mxu0
    %v4947 = vadd.f32 0.0, %v4946
    %4948 = vmatprep.mubr.bf16.mxu0 0
    %4949 = vmatmul.mubr.bf16.gmra.mxu0 %v4851
    %v4950 = vpop.f32.mrf.mxu0
    %v4951 = vadd.f32 0.0, %v4950
    %v4952 = vpop.f32.mrf.mxu0
    %v4953 = vadd.f32 0.0, %v4952
    %v4954 = vpop.f32.mrf.mxu0
    %v4955 = vadd.f32 0.0, %v4954
    %v4956 = vpop.f32.mrf.mxu0
    %v4957 = vadd.f32 0.0, %v4956
    %4958 = vdwg.mxu0
    %v4959 = vlaneseq
    %v4960 = vshrl.u32 %v4959, 7
    %v4961 = vsub.s32 0, %v4960
    %v4962 = vrot.slane %v4404, %v4961
    %v4963 = vlaneseq
    %v4964 = vshrl.u32 %v4963, 7
    %v4965 = vsub.s32 0, %v4964
    %v4966 = vrot.slane %v4406, %v4965
    %v4967 = vlaneseq
    %v4968 = vshrl.u32 %v4967, 7
    %v4969 = vsub.s32 0, %v4968
    %v4970 = vrot.slane %v4408, %v4969
    %v4971 = vlaneseq
    %v4972 = vshrl.u32 %v4971, 7
    %v4973 = vsub.s32 0, %v4972
    %v4974 = vrot.slane %v4410, %v4973
    %v4975 = vmul.f32 %v3816, %v4962
    %v4976 = vmul.f32 %v3818, %v4966
    %v4977 = vmul.f32 %v3869, %v4970
    %v4978 = vmul.f32 %v3871, %v4974
    %v4979 = vmul.f32 %v3820, %v4962
    %v4980 = vmul.f32 %v3822, %v4966
    %v4981 = vmul.f32 %v3873, %v4970
    %v4982 = vmul.f32 %v3875, %v4974
    %v4983 = vmul.f32 %v3826, %v4962
    %v4984 = vmul.f32 %v3828, %v4966
    %v4985 = vmul.f32 %v3879, %v4970
    %v4986 = vmul.f32 %v3881, %v4974
    %v4987 = vmul.f32 %v3830, %v4962
    %v4988 = vmul.f32 %v3832, %v4966
    %v4989 = vmul.f32 %v3883, %v4970
    %v4990 = vmul.f32 %v3885, %v4974
    %v4991 = vadd.f32 %v4975, %v4888
    %v4992 = vadd.f32 %v4976, %v4890
    %v4993 = vadd.f32 %v4977, %v4941
    %v4994 = vadd.f32 %v4978, %v4943
    %v4995 = vadd.f32 %v4979, %v4892
    %v4996 = vadd.f32 %v4980, %v4894
    %v4997 = vadd.f32 %v4981, %v4945
    %v4998 = vadd.f32 %v4982, %v4947
    %v4999 = vadd.f32 %v4983, %v4898
    %v5000 = vadd.f32 %v4984, %v4900
    %v5001 = vadd.f32 %v4985, %v4951
    %v5002 = vadd.f32 %v4986, %v4953
    %v5003 = vadd.f32 %v4987, %v4902
    %v5004 = vadd.f32 %v4988, %v4904
    %v5005 = vadd.f32 %v4989, %v4955
    %v5006 = vadd.f32 %v4990, %v4957
    %v5007 = vld [vmem:[%s15] sm:$0xff]
    %v5008 = vld [vmem:[%s15 + $0x8] sm:$0xff]
    %v5009 = vld [vmem:[%s15 + $0x10] sm:$0xff]
    %v5010 = vld [vmem:[%s15 + $0x18] sm:$0xff]
    %5012 = vset.pattern.permute.xlu0 0
    %5013 = vperm.xlu0 %5012, %v5007
    %v5014 = vpop.permute.xlu0 %5013
    %5017 = vset.pattern.permute.xlu0 0
    %5018 = vperm.xlu0 %5017, %v5008
    %v5019 = vpop.permute.xlu0 %5018
    %5022 = vset.pattern.permute.xlu0 0
    %5023 = vperm.xlu0 %5022, %v5009
    %v5024 = vpop.permute.xlu0 %5023
    %5027 = vset.pattern.permute.xlu0 0
    %5028 = vperm.xlu0 %5027, %v5010
    %v5029 = vpop.permute.xlu0 %5028
    %v5031 = vadd.f32 %v4991, %v5014
    %v5032 = vadd.f32 %v4992, %v5014
    %v5033 = vadd.f32 %v4993, %v5014
    %v5034 = vadd.f32 %v4994, %v5014
    %v5035 = vadd.f32 %v4995, %v5019
    %v5036 = vadd.f32 %v4996, %v5019
    %v5037 = vadd.f32 %v4997, %v5019
    %v5038 = vadd.f32 %v4998, %v5019
    %v5039 = vadd.f32 %v4999, %v5024
    %v5040 = vadd.f32 %v5000, %v5024
    %v5041 = vadd.f32 %v5001, %v5024
    %v5042 = vadd.f32 %v5002, %v5024
    %v5043 = vadd.f32 %v5003, %v5029
    %v5044 = vadd.f32 %v5004, %v5029
    %v5045 = vadd.f32 %v5005, %v5029
    %v5046 = vadd.f32 %v5006, %v5029
    %v5047 = vadd.f32 %v5031, %v126
    %v5048 = vadd.f32 %v5032, %v127
    %v5049 = vadd.f32 %v5033, %v128
    %v5050 = vadd.f32 %v5034, %v129
    %v5051 = vadd.f32 %v5035, %v130
    %v5052 = vadd.f32 %v5036, %v131
    %v5053 = vadd.f32 %v5037, %v132
    %v5054 = vadd.f32 %v5038, %v133
    %v5055 = vadd.f32 %v5039, %v134
    %v5056 = vadd.f32 %v5040, %v135
    %v5057 = vadd.f32 %v5041, %v136
    %v5058 = vadd.f32 %v5042, %v137
    %v5059 = vadd.f32 %v5043, %v138
    %v5060 = vadd.f32 %v5044, %v139
    %v5061 = vadd.f32 %v5045, %v140
    %v5062 = vadd.f32 %v5046, %v141
    %5063 = vst [vmem:[#allocation14] sm:$0xff] %v5047
    %5064 = vst [vmem:[#allocation14 + $0x8] sm:$0xff] %v5048
    %5065 = vst [vmem:[#allocation14 + $0x10] sm:$0xff] %v5049
    %5066 = vst [vmem:[#allocation14 + $0x18] sm:$0xff] %v5050
    %5067 = vst [vmem:[#allocation14 + $0x20] sm:$0xff] %v5051
    %5068 = vst [vmem:[#allocation14 + $0x28] sm:$0xff] %v5052
    %5069 = vst [vmem:[#allocation14 + $0x30] sm:$0xff] %v5053
    %5070 = vst [vmem:[#allocation14 + $0x38] sm:$0xff] %v5054
    %5071 = vst [vmem:[#allocation14 + $0x40] sm:$0xff] %v5055
    %5072 = vst [vmem:[#allocation14 + $0x48] sm:$0xff] %v5056
    %5073 = vst [vmem:[#allocation14 + $0x50] sm:$0xff] %v5057
    %5074 = vst [vmem:[#allocation14 + $0x58] sm:$0xff] %v5058
    %5075 = vst [vmem:[#allocation14 + $0x60] sm:$0xff] %v5059
    %5076 = vst [vmem:[#allocation14 + $0x68] sm:$0xff] %v5060
    %5077 = vst [vmem:[#allocation14 + $0x70] sm:$0xff] %v5061
    %5078 = vst [vmem:[#allocation14 + $0x78] sm:$0xff] %v5062
    // Predicated region
    $region86: #{tpu_custom_call.1} parent=1 // pred_check
      _
    $region87: #{tpu_custom_call.1} parent=1 // pred_check_branch
      %5080 = sbr.rel (0) target = $region89
    $region88: #{tpu_custom_call.1} parent=1 // pred_region
      %s5082 = ssub.s32 2048, 2048
      %5083 = vsyncadd [#allocation6], %s5082
      %s5084 = sshll.u32 [#allocation14], 4
      %s5085 = int_to_ptr.vmem [resolvable:$true] %s5084
      %5090 = dma.vmem_to_hbm [thread:$0]  %s5085, 2048, %s16, [#allocation6], 512, 512, 32
    $region89: #{tpu_custom_call.1} parent=1 // pred_fallthru
      _
    // Predicated region
    $region90: #{tpu_custom_call.1} parent=1 // pred_check
      _
    $region91: #{tpu_custom_call.1} parent=1 // pred_check_branch
      %5092 = sbr.rel (0) target = $region93
    $region92: #{tpu_custom_call.1} parent=1 // pred_region
      %5093 = dma.done [#allocation6], 2048
    $region93: #{tpu_custom_call.1} parent=1 // pred_fallthru
      _
    %5094 = vsyncpa [#allocation5], 1
    %5095 = vsyncpa [#allocation9], 1
    %5096 = vsyncpa [#allocation13], 1
    %5097 = vsyncpa [#allocation6], 1
    %5098 = vsyncpa [#allocation7], 1

</llo_original>
